<compile_context>
chip_gen: v6e
topology: v6e:2x2x1
jax: 0.10.0
libtpu: 0.0.40
codegen_flags: <defaults>
</compile_context>

<pallas_src>
import jax
import jax.numpy as jnp
from jax import lax
from jax.experimental import pallas as pl
from jax.experimental.pallas import tpu as pltpu

CIN, CHID, COUT = 1, 8, 2  # synthesized generator channel sizes


def _round_up(x, m):
    return ((x + m - 1) // m) * m


def _make_fused_generator_kernel(H, W, Hp, Wp):
    """Build the fused conv3x3(1->8)+ReLU -> conv3x3(8->2)+tanh kernel.

    H, W   : true image size (valid region)
    Hp, Wp : padded size seen by the kernel (Hp % 8 == 0, Wp % 128 == 0)
    """
    needs_valid_mask = (Hp > H) or (Wp > W)

    def kernel(x_ref, w1_ref, b1_ref, w2_ref, b2_ref, o_ref):
        # x_ref : (1, CIN, Hp, Wp) f32 VMEM     input L plane (zero-padded)
        # w1_ref: (9*CIN*CHID,)    f32 SMEM     flattened (ky, kx, ci, co)
        # b1_ref: (CHID,)          f32 SMEM
        # w2_ref: (9*CHID*COUT,)   f32 SMEM     flattened (ky, kx, ci, co)
        # b2_ref: (COUT,)          f32 SMEM
        # o_ref : (1, COUT, Hp, Wp) f32 VMEM    fake ab output (lane-dense)
        f32 = jnp.float32
        zrow = jnp.zeros((1, Wp), f32)   # zero fill strips (hoisted, reused)
        zcol = jnp.zeros((Hp, 1), f32)

        def col_shifts(p):
            # (left, center, right): shifted[kx][i, j] == p[i, j + kx - 1],
            # zero-filled at the frame edge.  Computed once per plane, reused.
            left = jnp.concatenate([zcol, p[:, : Wp - 1]], axis=1)   # dx = -1
            right = jnp.concatenate([p[:, 1:], zcol], axis=1)        # dx = +1
            return (left, p, right)

        def row_shift(p, dy):
            if dy == -1:
                return jnp.concatenate([zrow, p[: Hp - 1, :]], axis=0)
            if dy == 1:
                return jnp.concatenate([p[1:, :], zrow], axis=0)
            return p

        def taps9(p):
            # tap[t][i, j] == p[i + ky - 1, j + kx - 1] with t = ky*3 + kx,
            # zero outside the (Hp, Wp) frame (exact zero-padding semantics).
            cs = col_shifts(p)
            return [row_shift(cs[kx], ky - 1) for ky in range(3) for kx in range(3)]

        if needs_valid_mask:
            row = lax.broadcasted_iota(jnp.int32, (Hp, Wp), 0)
            col = lax.broadcasted_iota(jnp.int32, (Hp, Wp), 1)
            valid = ((row < H) & (col < W)).astype(f32)   # built once per step

        x = x_ref[0, 0, :, :]                 # load the input plane once
        taps1 = taps9(x)                      # shared across all hidden channels

        # Output accumulators stay in registers for the whole kernel.
        acc_out = [jnp.full((Hp, Wp), b2_ref[co], f32) for co in range(COUT)]

        for ci in range(CHID):
            # ---- layer 1: hidden channel ci (never written to memory) ----
            ws1 = [w1_ref[t * CHID + ci] for t in range(9)]   # hoisted scalars
            h = jnp.full((Hp, Wp), b1_ref[ci], f32)
            for t in range(9):
                h = h + taps1[t] * ws1[t]
            h = jnp.maximum(h, 0.0)
            if needs_valid_mask:
                h = h * valid        # keep exact zero-padding at the true edge

            # ---- layer 2: add this hidden channel's contribution ----
            taps2 = taps9(h)
            for co in range(COUT):
                ws2 = [w2_ref[(t * CHID + ci) * COUT + co] for t in range(9)]
                a = acc_out[co]
                for t in range(9):
                    a = a + taps2[t] * ws2[t]
                acc_out[co] = a

        for co in range(COUT):
            o_ref[0, co, :, :] = jnp.tanh(acc_out[co])   # tanh -> EUP slot

    return kernel


def net_g_forward(L_nchw, params):
    """Synthetic generator forward, fused into a single pallas_call."""
    B, cin, H, W = L_nchw.shape
    assert cin == CIN
    Hp = _round_up(H, 8)
    Wp = _round_up(W, 128)

    x = L_nchw.astype(jnp.float32)
    if (Hp, Wp) != (H, W):
        # Lane/sublane-dense layout: unmasked vst inside the kernel.
        x = jnp.pad(x, ((0, 0), (0, 0), (0, Hp - H), (0, Wp - W)))

    w1 = params["w1"].astype(jnp.float32).reshape(-1)   # (3,3,CIN,CHID) -> flat
    b1 = params["b1"].astype(jnp.float32)
    w2 = params["w2"].astype(jnp.float32).reshape(-1)   # (3,3,CHID,COUT) -> flat
    b2 = params["b2"].astype(jnp.float32)

    out = pl.pallas_call(
        _make_fused_generator_kernel(H, W, Hp, Wp),
        out_shape=jax.ShapeDtypeStruct((B, COUT, Hp, Wp), jnp.float32),
        grid=(B,),
        in_specs=[
            pl.BlockSpec((1, CIN, Hp, Wp), lambda b: (b, 0, 0, 0)),
            pl.BlockSpec(memory_space=pltpu.MemorySpace.SMEM),
            pl.BlockSpec(memory_space=pltpu.MemorySpace.SMEM),
            pl.BlockSpec(memory_space=pltpu.MemorySpace.SMEM),
            pl.BlockSpec(memory_space=pltpu.MemorySpace.SMEM),
        ],
        out_specs=pl.BlockSpec((1, COUT, Hp, Wp), lambda b: (b, 0, 0, 0)),
        compiler_params=pltpu.CompilerParams(
            dimension_semantics=("parallel",),   # shard batch over both TCs
        ),
        cost_estimate=pl.CostEstimate(
            flops=2 * 9 * (CIN * CHID + CHID * COUT) * B * Hp * Wp,
            transcendentals=COUT * B * Hp * Wp,
            bytes_accessed=(CIN + COUT) * 4 * B * Hp * Wp,
        ),
    )(x, w1, b1, w2, b2)

    if (Hp, Wp) != (H, W):
        out = out[:, :, :H, :W]
    return out


def main_model_forward(L_nchw, params):
    """MainModel.forward(): fake_color = net_G(L)."""
    return net_g_forward(L_nchw, params)


def init_generator_params(key):
    """Deterministic (PRNGKey-based) conv parameters, PyTorch-style uniform init."""
    k1, k2, k3, k4 = jax.random.split(key, 4)
    bound1 = 1.0 / (CIN * 9) ** 0.5
    bound2 = 1.0 / (CHID * 9) ** 0.5
    w1 = jax.random.uniform(k1, (3, 3, CIN, CHID), jnp.float32, -bound1, bound1)
    b1 = jax.random.uniform(k2, (CHID,), jnp.float32, -bound1, bound1)
    w2 = jax.random.uniform(k3, (3, 3, CHID, COUT), jnp.float32, -bound2, bound2)
    b2 = jax.random.uniform(k4, (COUT,), jnp.float32, -bound2, bound2)
    return dict(w1=w1, b1=b1, w2=w2, b2=b2)


# ---------- pure-JAX reference (correctness self-check only) ----------
def _conv3x3_ref(x, w, b):
    B, Cin, H, W = x.shape
    Cout = w.shape[-1]
    xp = jnp.pad(x, ((0, 0), (0, 0), (1, 1), (1, 1)))
    out = jnp.broadcast_to(b.reshape(1, Cout, 1, 1), (B, Cout, H, W)).astype(jnp.float32)
    for ky in range(3):
        for kx in range(3):
            patch = xp[:, :, ky:ky + H, kx:kx + W]
            out = out + jnp.einsum("bchw,co->bohw", patch, w[ky, kx],
                                   precision=lax.Precision.HIGHEST)
    return out


def _net_g_ref(L, params):
    h = jnp.maximum(_conv3x3_ref(L, params["w1"], params["b1"]), 0.0)
    return jnp.tanh(_conv3x3_ref(h, params["w2"], params["b2"]))


if __name__ == "__main__":
    key = jax.random.PRNGKey(0)
    k_data, k_params = jax.random.split(key)

    B, H, W = 2, 16, 16
    L = jax.random.normal(k_data, (B, CIN, H, W), dtype=jnp.float32)  # NCHW L channel
    params = init_generator_params(k_params)

    fake_color = main_model_forward(L, params)
    fake_color = jax.block_until_ready(fake_color)

    assert fake_color.shape == (B, COUT, H, W), fake_color.shape
    assert fake_color.dtype == jnp.float32
    assert float(jnp.max(jnp.abs(fake_color))) <= 1.0 + 1e-6  # tanh range

    ref = _net_g_ref(L, params)
    err = float(jnp.max(jnp.abs(fake_color - ref)))
    assert err < 1e-4, f"max abs error vs reference: {err}"

    print("KERNEL_OK")
</pallas_src>

<mosaic_0001>
module attributes {stable_mosaic.version = 11 : i64} {
  func.func @kernel(%arg0: i32, %arg1: memref<1x1x16x128xf32, #tpu.memory_space<vmem>>, %arg2: memref<72xf32, #tpu.memory_space<smem>>, %arg3: memref<8xf32, #tpu.memory_space<smem>>, %arg4: memref<144xf32, #tpu.memory_space<smem>>, %arg5: memref<2xf32, #tpu.memory_space<smem>>, %arg6: memref<1x2x16x128xf32, #tpu.memory_space<vmem>>) attributes {dimension_semantics = [#tpu.dimension_semantics<parallel>], iteration_bounds = array<i64: 2>, scalar_prefetch = 0 : i64, scratch_operands = 0 : i64, tpu.core_type = #tpu.core_type<tc>, window_params = [{transform_indices = @transform_0, window_bounds = array<i64: 1, 1, 16, 128>}, {transform_indices = @transform_1, window_bounds = array<i64: 72>}, {transform_indices = @transform_2, window_bounds = array<i64: 8>}, {transform_indices = @transform_3, window_bounds = array<i64: 144>}, {transform_indices = @transform_4, window_bounds = array<i64: 2>}, {transform_indices = @transform_5, window_bounds = array<i64: 1, 2, 16, 128>}]} {
    %cst = arith.constant 0.000000e+00 : f32
    %0 = vector.broadcast %cst : f32 to vector<1x128xf32>
    %cst_0 = arith.constant 0.000000e+00 : f32
    %1 = vector.broadcast %cst_0 : f32 to vector<16x1xf32>
    %2 = tpu.iota {dimensions = array<i32: 0>} : vector<16x128xi32>
    %3 = tpu.iota {dimensions = array<i32: 1>} : vector<16x128xi32>
    %c16_i32 = arith.constant 16 : i32
    %4 = vector.broadcast %c16_i32 : i32 to vector<16x128xi32>
    %5 = arith.cmpi slt, %2, %4 : vector<16x128xi32>
    %c16_i32_1 = arith.constant 16 : i32
    %6 = vector.broadcast %c16_i32_1 : i32 to vector<16x128xi32>
    %7 = arith.cmpi slt, %3, %6 : vector<16x128xi32>
    %8 = arith.andi %5, %7 : vector<16x128xi1>
    %9 = arith.extui %8 : vector<16x128xi1> to vector<16x128xi32>
    %10 = arith.sitofp %9 : vector<16x128xi32> to vector<16x128xf32>
    %c0 = arith.constant 0 : index
    %c0_2 = arith.constant 0 : index
    %c0_3 = arith.constant 0 : index
    %c0_4 = arith.constant 0 : index
    %11 = vector.load %arg1[%c0, %c0_2, %c0_3, %c0_4] : memref<1x1x16x128xf32, #tpu.memory_space<vmem>>, vector<1x1x16x128xf32>
    %12 = vector.shape_cast %11 : vector<1x1x16x128xf32> to vector<16x128xf32>
    %13 = vector.extract_strided_slice %12 {offsets = [0, 0], sizes = [16, 127], strides = [1, 1]} : vector<16x128xf32> to vector<16x127xf32>
    %14 = tpu.concatenate %1, %13 in 1 : vector<16x1xf32>, vector<16x127xf32> -> vector<16x128xf32>
    %15 = vector.extract_strided_slice %12 {offsets = [0, 1], sizes = [16, 127], strides = [1, 1]} : vector<16x128xf32> to vector<16x127xf32>
    %16 = tpu.concatenate %15, %1 in 1 : vector<16x127xf32>, vector<16x1xf32> -> vector<16x128xf32>
    %17 = vector.extract_strided_slice %14 {offsets = [0, 0], sizes = [15, 128], strides = [1, 1]} : vector<16x128xf32> to vector<15x128xf32>
    %18 = tpu.concatenate %0, %17 in 0 : vector<1x128xf32>, vector<15x128xf32> -> vector<16x128xf32>
    %19 = vector.extract_strided_slice %12 {offsets = [0, 0], sizes = [15, 128], strides = [1, 1]} : vector<16x128xf32> to vector<15x128xf32>
    %20 = tpu.concatenate %0, %19 in 0 : vector<1x128xf32>, vector<15x128xf32> -> vector<16x128xf32>
    %21 = vector.extract_strided_slice %16 {offsets = [0, 0], sizes = [15, 128], strides = [1, 1]} : vector<16x128xf32> to vector<15x128xf32>
    %22 = tpu.concatenate %0, %21 in 0 : vector<1x128xf32>, vector<15x128xf32> -> vector<16x128xf32>
    %23 = vector.extract_strided_slice %14 {offsets = [1, 0], sizes = [15, 128], strides = [1, 1]} : vector<16x128xf32> to vector<15x128xf32>
    %24 = tpu.concatenate %23, %0 in 0 : vector<15x128xf32>, vector<1x128xf32> -> vector<16x128xf32>
    %25 = vector.extract_strided_slice %12 {offsets = [1, 0], sizes = [15, 128], strides = [1, 1]} : vector<16x128xf32> to vector<15x128xf32>
    %26 = tpu.concatenate %25, %0 in 0 : vector<15x128xf32>, vector<1x128xf32> -> vector<16x128xf32>
    %27 = vector.extract_strided_slice %16 {offsets = [1, 0], sizes = [15, 128], strides = [1, 1]} : vector<16x128xf32> to vector<15x128xf32>
    %28 = tpu.concatenate %27, %0 in 0 : vector<15x128xf32>, vector<1x128xf32> -> vector<16x128xf32>
    %c0_5 = arith.constant 0 : index
    %29 = memref.load %arg5[%c0_5] : memref<2xf32, #tpu.memory_space<smem>>
    %30 = vector.broadcast %29 : f32 to vector<16x128xf32>
    %c1 = arith.constant 1 : index
    %31 = memref.load %arg5[%c1] : memref<2xf32, #tpu.memory_space<smem>>
    %32 = vector.broadcast %31 : f32 to vector<16x128xf32>
    %c0_6 = arith.constant 0 : index
    %33 = memref.load %arg2[%c0_6] : memref<72xf32, #tpu.memory_space<smem>>
    %c8 = arith.constant 8 : index
    %34 = memref.load %arg2[%c8] : memref<72xf32, #tpu.memory_space<smem>>
    %c16 = arith.constant 16 : index
    %35 = memref.load %arg2[%c16] : memref<72xf32, #tpu.memory_space<smem>>
    %c24 = arith.constant 24 : index
    %36 = memref.load %arg2[%c24] : memref<72xf32, #tpu.memory_space<smem>>
    %c32 = arith.constant 32 : index
    %37 = memref.load %arg2[%c32] : memref<72xf32, #tpu.memory_space<smem>>
    %c40 = arith.constant 40 : index
    %38 = memref.load %arg2[%c40] : memref<72xf32, #tpu.memory_space<smem>>
    %c48 = arith.constant 48 : index
    %39 = memref.load %arg2[%c48] : memref<72xf32, #tpu.memory_space<smem>>
    %c56 = arith.constant 56 : index
    %40 = memref.load %arg2[%c56] : memref<72xf32, #tpu.memory_space<smem>>
    %c64 = arith.constant 64 : index
    %41 = memref.load %arg2[%c64] : memref<72xf32, #tpu.memory_space<smem>>
    %c0_7 = arith.constant 0 : index
    %42 = memref.load %arg3[%c0_7] : memref<8xf32, #tpu.memory_space<smem>>
    %43 = vector.broadcast %42 : f32 to vector<16x128xf32>
    %44 = vector.broadcast %33 : f32 to vector<16x128xf32>
    %45 = arith.mulf %18, %44 : vector<16x128xf32>
    %46 = arith.addf %43, %45 : vector<16x128xf32>
    %47 = vector.broadcast %34 : f32 to vector<16x128xf32>
    %48 = arith.mulf %20, %47 : vector<16x128xf32>
    %49 = arith.addf %46, %48 : vector<16x128xf32>
    %50 = vector.broadcast %35 : f32 to vector<16x128xf32>
    %51 = arith.mulf %22, %50 : vector<16x128xf32>
    %52 = arith.addf %49, %51 : vector<16x128xf32>
    %53 = vector.broadcast %36 : f32 to vector<16x128xf32>
    %54 = arith.mulf %14, %53 : vector<16x128xf32>
    %55 = arith.addf %52, %54 : vector<16x128xf32>
    %56 = vector.broadcast %37 : f32 to vector<16x128xf32>
    %57 = arith.mulf %12, %56 : vector<16x128xf32>
    %58 = arith.addf %55, %57 : vector<16x128xf32>
    %59 = vector.broadcast %38 : f32 to vector<16x128xf32>
    %60 = arith.mulf %16, %59 : vector<16x128xf32>
    %61 = arith.addf %58, %60 : vector<16x128xf32>
    %62 = vector.broadcast %39 : f32 to vector<16x128xf32>
    %63 = arith.mulf %24, %62 : vector<16x128xf32>
    %64 = arith.addf %61, %63 : vector<16x128xf32>
    %65 = vector.broadcast %40 : f32 to vector<16x128xf32>
    %66 = arith.mulf %26, %65 : vector<16x128xf32>
    %67 = arith.addf %64, %66 : vector<16x128xf32>
    %68 = vector.broadcast %41 : f32 to vector<16x128xf32>
    %69 = arith.mulf %28, %68 : vector<16x128xf32>
    %70 = arith.addf %67, %69 : vector<16x128xf32>
    %cst_8 = arith.constant 0.000000e+00 : f32
    %71 = vector.broadcast %cst_8 : f32 to vector<16x128xf32>
    %72 = arith.maximumf %70, %71 : vector<16x128xf32>
    %73 = arith.mulf %72, %10 : vector<16x128xf32>
    %74 = vector.extract_strided_slice %73 {offsets = [0, 0], sizes = [16, 127], strides = [1, 1]} : vector<16x128xf32> to vector<16x127xf32>
    %75 = tpu.concatenate %1, %74 in 1 : vector<16x1xf32>, vector<16x127xf32> -> vector<16x128xf32>
    %76 = vector.extract_strided_slice %73 {offsets = [0, 1], sizes = [16, 127], strides = [1, 1]} : vector<16x128xf32> to vector<16x127xf32>
    %77 = tpu.concatenate %76, %1 in 1 : vector<16x127xf32>, vector<16x1xf32> -> vector<16x128xf32>
    %78 = vector.extract_strided_slice %75 {offsets = [0, 0], sizes = [15, 128], strides = [1, 1]} : vector<16x128xf32> to vector<15x128xf32>
    %79 = tpu.concatenate %0, %78 in 0 : vector<1x128xf32>, vector<15x128xf32> -> vector<16x128xf32>
    %80 = vector.extract_strided_slice %73 {offsets = [0, 0], sizes = [15, 128], strides = [1, 1]} : vector<16x128xf32> to vector<15x128xf32>
    %81 = tpu.concatenate %0, %80 in 0 : vector<1x128xf32>, vector<15x128xf32> -> vector<16x128xf32>
    %82 = vector.extract_strided_slice %77 {offsets = [0, 0], sizes = [15, 128], strides = [1, 1]} : vector<16x128xf32> to vector<15x128xf32>
    %83 = tpu.concatenate %0, %82 in 0 : vector<1x128xf32>, vector<15x128xf32> -> vector<16x128xf32>
    %84 = vector.extract_strided_slice %75 {offsets = [1, 0], sizes = [15, 128], strides = [1, 1]} : vector<16x128xf32> to vector<15x128xf32>
    %85 = tpu.concatenate %84, %0 in 0 : vector<15x128xf32>, vector<1x128xf32> -> vector<16x128xf32>
    %86 = vector.extract_strided_slice %73 {offsets = [1, 0], sizes = [15, 128], strides = [1, 1]} : vector<16x128xf32> to vector<15x128xf32>
    %87 = tpu.concatenate %86, %0 in 0 : vector<15x128xf32>, vector<1x128xf32> -> vector<16x128xf32>
    %88 = vector.extract_strided_slice %77 {offsets = [1, 0], sizes = [15, 128], strides = [1, 1]} : vector<16x128xf32> to vector<15x128xf32>
    %89 = tpu.concatenate %88, %0 in 0 : vector<15x128xf32>, vector<1x128xf32> -> vector<16x128xf32>
    %c0_9 = arith.constant 0 : index
    %90 = memref.load %arg4[%c0_9] : memref<144xf32, #tpu.memory_space<smem>>
    %c16_10 = arith.constant 16 : index
    %91 = memref.load %arg4[%c16_10] : memref<144xf32, #tpu.memory_space<smem>>
    %c32_11 = arith.constant 32 : index
    %92 = memref.load %arg4[%c32_11] : memref<144xf32, #tpu.memory_space<smem>>
    %c48_12 = arith.constant 48 : index
    %93 = memref.load %arg4[%c48_12] : memref<144xf32, #tpu.memory_space<smem>>
    %c64_13 = arith.constant 64 : index
    %94 = memref.load %arg4[%c64_13] : memref<144xf32, #tpu.memory_space<smem>>
    %c80 = arith.constant 80 : index
    %95 = memref.load %arg4[%c80] : memref<144xf32, #tpu.memory_space<smem>>
    %c96 = arith.constant 96 : index
    %96 = memref.load %arg4[%c96] : memref<144xf32, #tpu.memory_space<smem>>
    %c112 = arith.constant 112 : index
    %97 = memref.load %arg4[%c112] : memref<144xf32, #tpu.memory_space<smem>>
    %c128 = arith.constant 128 : index
    %98 = memref.load %arg4[%c128] : memref<144xf32, #tpu.memory_space<smem>>
    %99 = vector.broadcast %90 : f32 to vector<16x128xf32>
    %100 = arith.mulf %79, %99 : vector<16x128xf32>
    %101 = arith.addf %30, %100 : vector<16x128xf32>
    %102 = vector.broadcast %91 : f32 to vector<16x128xf32>
    %103 = arith.mulf %81, %102 : vector<16x128xf32>
    %104 = arith.addf %101, %103 : vector<16x128xf32>
    %105 = vector.broadcast %92 : f32 to vector<16x128xf32>
    %106 = arith.mulf %83, %105 : vector<16x128xf32>
    %107 = arith.addf %104, %106 : vector<16x128xf32>
    %108 = vector.broadcast %93 : f32 to vector<16x128xf32>
    %109 = arith.mulf %75, %108 : vector<16x128xf32>
    %110 = arith.addf %107, %109 : vector<16x128xf32>
    %111 = vector.broadcast %94 : f32 to vector<16x128xf32>
    %112 = arith.mulf %73, %111 : vector<16x128xf32>
    %113 = arith.addf %110, %112 : vector<16x128xf32>
    %114 = vector.broadcast %95 : f32 to vector<16x128xf32>
    %115 = arith.mulf %77, %114 : vector<16x128xf32>
    %116 = arith.addf %113, %115 : vector<16x128xf32>
    %117 = vector.broadcast %96 : f32 to vector<16x128xf32>
    %118 = arith.mulf %85, %117 : vector<16x128xf32>
    %119 = arith.addf %116, %118 : vector<16x128xf32>
    %120 = vector.broadcast %97 : f32 to vector<16x128xf32>
    %121 = arith.mulf %87, %120 : vector<16x128xf32>
    %122 = arith.addf %119, %121 : vector<16x128xf32>
    %123 = vector.broadcast %98 : f32 to vector<16x128xf32>
    %124 = arith.mulf %89, %123 : vector<16x128xf32>
    %125 = arith.addf %122, %124 : vector<16x128xf32>
    %c1_14 = arith.constant 1 : index
    %126 = memref.load %arg4[%c1_14] : memref<144xf32, #tpu.memory_space<smem>>
    %c17 = arith.constant 17 : index
    %127 = memref.load %arg4[%c17] : memref<144xf32, #tpu.memory_space<smem>>
    %c33 = arith.constant 33 : index
    %128 = memref.load %arg4[%c33] : memref<144xf32, #tpu.memory_space<smem>>
    %c49 = arith.constant 49 : index
    %129 = memref.load %arg4[%c49] : memref<144xf32, #tpu.memory_space<smem>>
    %c65 = arith.constant 65 : index
    %130 = memref.load %arg4[%c65] : memref<144xf32, #tpu.memory_space<smem>>
    %c81 = arith.constant 81 : index
    %131 = memref.load %arg4[%c81] : memref<144xf32, #tpu.memory_space<smem>>
    %c97 = arith.constant 97 : index
    %132 = memref.load %arg4[%c97] : memref<144xf32, #tpu.memory_space<smem>>
    %c113 = arith.constant 113 : index
    %133 = memref.load %arg4[%c113] : memref<144xf32, #tpu.memory_space<smem>>
    %c129 = arith.constant 129 : index
    %134 = memref.load %arg4[%c129] : memref<144xf32, #tpu.memory_space<smem>>
    %135 = vector.broadcast %126 : f32 to vector<16x128xf32>
    %136 = arith.mulf %79, %135 : vector<16x128xf32>
    %137 = arith.addf %32, %136 : vector<16x128xf32>
    %138 = vector.broadcast %127 : f32 to vector<16x128xf32>
    %139 = arith.mulf %81, %138 : vector<16x128xf32>
    %140 = arith.addf %137, %139 : vector<16x128xf32>
    %141 = vector.broadcast %128 : f32 to vector<16x128xf32>
    %142 = arith.mulf %83, %141 : vector<16x128xf32>
    %143 = arith.addf %140, %142 : vector<16x128xf32>
    %144 = vector.broadcast %129 : f32 to vector<16x128xf32>
    %145 = arith.mulf %75, %144 : vector<16x128xf32>
    %146 = arith.addf %143, %145 : vector<16x128xf32>
    %147 = vector.broadcast %130 : f32 to vector<16x128xf32>
    %148 = arith.mulf %73, %147 : vector<16x128xf32>
    %149 = arith.addf %146, %148 : vector<16x128xf32>
    %150 = vector.broadcast %131 : f32 to vector<16x128xf32>
    %151 = arith.mulf %77, %150 : vector<16x128xf32>
    %152 = arith.addf %149, %151 : vector<16x128xf32>
    %153 = vector.broadcast %132 : f32 to vector<16x128xf32>
    %154 = arith.mulf %85, %153 : vector<16x128xf32>
    %155 = arith.addf %152, %154 : vector<16x128xf32>
    %156 = vector.broadcast %133 : f32 to vector<16x128xf32>
    %157 = arith.mulf %87, %156 : vector<16x128xf32>
    %158 = arith.addf %155, %157 : vector<16x128xf32>
    %159 = vector.broadcast %134 : f32 to vector<16x128xf32>
    %160 = arith.mulf %89, %159 : vector<16x128xf32>
    %161 = arith.addf %158, %160 : vector<16x128xf32>
    %c1_15 = arith.constant 1 : index
    %162 = memref.load %arg2[%c1_15] : memref<72xf32, #tpu.memory_space<smem>>
    %c9 = arith.constant 9 : index
    %163 = memref.load %arg2[%c9] : memref<72xf32, #tpu.memory_space<smem>>
    %c17_16 = arith.constant 17 : index
    %164 = memref.load %arg2[%c17_16] : memref<72xf32, #tpu.memory_space<smem>>
    %c25 = arith.constant 25 : index
    %165 = memref.load %arg2[%c25] : memref<72xf32, #tpu.memory_space<smem>>
    %c33_17 = arith.constant 33 : index
    %166 = memref.load %arg2[%c33_17] : memref<72xf32, #tpu.memory_space<smem>>
    %c41 = arith.constant 41 : index
    %167 = memref.load %arg2[%c41] : memref<72xf32, #tpu.memory_space<smem>>
    %c49_18 = arith.constant 49 : index
    %168 = memref.load %arg2[%c49_18] : memref<72xf32, #tpu.memory_space<smem>>
    %c57 = arith.constant 57 : index
    %169 = memref.load %arg2[%c57] : memref<72xf32, #tpu.memory_space<smem>>
    %c65_19 = arith.constant 65 : index
    %170 = memref.load %arg2[%c65_19] : memref<72xf32, #tpu.memory_space<smem>>
    %c1_20 = arith.constant 1 : index
    %171 = memref.load %arg3[%c1_20] : memref<8xf32, #tpu.memory_space<smem>>
    %172 = vector.broadcast %171 : f32 to vector<16x128xf32>
    %173 = vector.broadcast %162 : f32 to vector<16x128xf32>
    %174 = arith.mulf %18, %173 : vector<16x128xf32>
    %175 = arith.addf %172, %174 : vector<16x128xf32>
    %176 = vector.broadcast %163 : f32 to vector<16x128xf32>
    %177 = arith.mulf %20, %176 : vector<16x128xf32>
    %178 = arith.addf %175, %177 : vector<16x128xf32>
    %179 = vector.broadcast %164 : f32 to vector<16x128xf32>
    %180 = arith.mulf %22, %179 : vector<16x128xf32>
    %181 = arith.addf %178, %180 : vector<16x128xf32>
    %182 = vector.broadcast %165 : f32 to vector<16x128xf32>
    %183 = arith.mulf %14, %182 : vector<16x128xf32>
    %184 = arith.addf %181, %183 : vector<16x128xf32>
    %185 = vector.broadcast %166 : f32 to vector<16x128xf32>
    %186 = arith.mulf %12, %185 : vector<16x128xf32>
    %187 = arith.addf %184, %186 : vector<16x128xf32>
    %188 = vector.broadcast %167 : f32 to vector<16x128xf32>
    %189 = arith.mulf %16, %188 : vector<16x128xf32>
    %190 = arith.addf %187, %189 : vector<16x128xf32>
    %191 = vector.broadcast %168 : f32 to vector<16x128xf32>
    %192 = arith.mulf %24, %191 : vector<16x128xf32>
    %193 = arith.addf %190, %192 : vector<16x128xf32>
    %194 = vector.broadcast %169 : f32 to vector<16x128xf32>
    %195 = arith.mulf %26, %194 : vector<16x128xf32>
    %196 = arith.addf %193, %195 : vector<16x128xf32>
    %197 = vector.broadcast %170 : f32 to vector<16x128xf32>
    %198 = arith.mulf %28, %197 : vector<16x128xf32>
    %199 = arith.addf %196, %198 : vector<16x128xf32>
    %cst_21 = arith.constant 0.000000e+00 : f32
    %200 = vector.broadcast %cst_21 : f32 to vector<16x128xf32>
    %201 = arith.maximumf %199, %200 : vector<16x128xf32>
    %202 = arith.mulf %201, %10 : vector<16x128xf32>
    %203 = vector.extract_strided_slice %202 {offsets = [0, 0], sizes = [16, 127], strides = [1, 1]} : vector<16x128xf32> to vector<16x127xf32>
    %204 = tpu.concatenate %1, %203 in 1 : vector<16x1xf32>, vector<16x127xf32> -> vector<16x128xf32>
    %205 = vector.extract_strided_slice %202 {offsets = [0, 1], sizes = [16, 127], strides = [1, 1]} : vector<16x128xf32> to vector<16x127xf32>
    %206 = tpu.concatenate %205, %1 in 1 : vector<16x127xf32>, vector<16x1xf32> -> vector<16x128xf32>
    %207 = vector.extract_strided_slice %204 {offsets = [0, 0], sizes = [15, 128], strides = [1, 1]} : vector<16x128xf32> to vector<15x128xf32>
    %208 = tpu.concatenate %0, %207 in 0 : vector<1x128xf32>, vector<15x128xf32> -> vector<16x128xf32>
    %209 = vector.extract_strided_slice %202 {offsets = [0, 0], sizes = [15, 128], strides = [1, 1]} : vector<16x128xf32> to vector<15x128xf32>
    %210 = tpu.concatenate %0, %209 in 0 : vector<1x128xf32>, vector<15x128xf32> -> vector<16x128xf32>
    %211 = vector.extract_strided_slice %206 {offsets = [0, 0], sizes = [15, 128], strides = [1, 1]} : vector<16x128xf32> to vector<15x128xf32>
    %212 = tpu.concatenate %0, %211 in 0 : vector<1x128xf32>, vector<15x128xf32> -> vector<16x128xf32>
    %213 = vector.extract_strided_slice %204 {offsets = [1, 0], sizes = [15, 128], strides = [1, 1]} : vector<16x128xf32> to vector<15x128xf32>
    %214 = tpu.concatenate %213, %0 in 0 : vector<15x128xf32>, vector<1x128xf32> -> vector<16x128xf32>
    %215 = vector.extract_strided_slice %202 {offsets = [1, 0], sizes = [15, 128], strides = [1, 1]} : vector<16x128xf32> to vector<15x128xf32>
    %216 = tpu.concatenate %215, %0 in 0 : vector<15x128xf32>, vector<1x128xf32> -> vector<16x128xf32>
    %217 = vector.extract_strided_slice %206 {offsets = [1, 0], sizes = [15, 128], strides = [1, 1]} : vector<16x128xf32> to vector<15x128xf32>
    %218 = tpu.concatenate %217, %0 in 0 : vector<15x128xf32>, vector<1x128xf32> -> vector<16x128xf32>
    %c2 = arith.constant 2 : index
    %219 = memref.load %arg4[%c2] : memref<144xf32, #tpu.memory_space<smem>>
    %c18 = arith.constant 18 : index
    %220 = memref.load %arg4[%c18] : memref<144xf32, #tpu.memory_space<smem>>
    %c34 = arith.constant 34 : index
    %221 = memref.load %arg4[%c34] : memref<144xf32, #tpu.memory_space<smem>>
    %c50 = arith.constant 50 : index
    %222 = memref.load %arg4[%c50] : memref<144xf32, #tpu.memory_space<smem>>
    %c66 = arith.constant 66 : index
    %223 = memref.load %arg4[%c66] : memref<144xf32, #tpu.memory_space<smem>>
    %c82 = arith.constant 82 : index
    %224 = memref.load %arg4[%c82] : memref<144xf32, #tpu.memory_space<smem>>
    %c98 = arith.constant 98 : index
    %225 = memref.load %arg4[%c98] : memref<144xf32, #tpu.memory_space<smem>>
    %c114 = arith.constant 114 : index
    %226 = memref.load %arg4[%c114] : memref<144xf32, #tpu.memory_space<smem>>
    %c130 = arith.constant 130 : index
    %227 = memref.load %arg4[%c130] : memref<144xf32, #tpu.memory_space<smem>>
    %228 = vector.broadcast %219 : f32 to vector<16x128xf32>
    %229 = arith.mulf %208, %228 : vector<16x128xf32>
    %230 = arith.addf %125, %229 : vector<16x128xf32>
    %231 = vector.broadcast %220 : f32 to vector<16x128xf32>
    %232 = arith.mulf %210, %231 : vector<16x128xf32>
    %233 = arith.addf %230, %232 : vector<16x128xf32>
    %234 = vector.broadcast %221 : f32 to vector<16x128xf32>
    %235 = arith.mulf %212, %234 : vector<16x128xf32>
    %236 = arith.addf %233, %235 : vector<16x128xf32>
    %237 = vector.broadcast %222 : f32 to vector<16x128xf32>
    %238 = arith.mulf %204, %237 : vector<16x128xf32>
    %239 = arith.addf %236, %238 : vector<16x128xf32>
    %240 = vector.broadcast %223 : f32 to vector<16x128xf32>
    %241 = arith.mulf %202, %240 : vector<16x128xf32>
    %242 = arith.addf %239, %241 : vector<16x128xf32>
    %243 = vector.broadcast %224 : f32 to vector<16x128xf32>
    %244 = arith.mulf %206, %243 : vector<16x128xf32>
    %245 = arith.addf %242, %244 : vector<16x128xf32>
    %246 = vector.broadcast %225 : f32 to vector<16x128xf32>
    %247 = arith.mulf %214, %246 : vector<16x128xf32>
    %248 = arith.addf %245, %247 : vector<16x128xf32>
    %249 = vector.broadcast %226 : f32 to vector<16x128xf32>
    %250 = arith.mulf %216, %249 : vector<16x128xf32>
    %251 = arith.addf %248, %250 : vector<16x128xf32>
    %252 = vector.broadcast %227 : f32 to vector<16x128xf32>
    %253 = arith.mulf %218, %252 : vector<16x128xf32>
    %254 = arith.addf %251, %253 : vector<16x128xf32>
    %c3 = arith.constant 3 : index
    %255 = memref.load %arg4[%c3] : memref<144xf32, #tpu.memory_space<smem>>
    %c19 = arith.constant 19 : index
    %256 = memref.load %arg4[%c19] : memref<144xf32, #tpu.memory_space<smem>>
    %c35 = arith.constant 35 : index
    %257 = memref.load %arg4[%c35] : memref<144xf32, #tpu.memory_space<smem>>
    %c51 = arith.constant 51 : index
    %258 = memref.load %arg4[%c51] : memref<144xf32, #tpu.memory_space<smem>>
    %c67 = arith.constant 67 : index
    %259 = memref.load %arg4[%c67] : memref<144xf32, #tpu.memory_space<smem>>
    %c83 = arith.constant 83 : index
    %260 = memref.load %arg4[%c83] : memref<144xf32, #tpu.memory_space<smem>>
    %c99 = arith.constant 99 : index
    %261 = memref.load %arg4[%c99] : memref<144xf32, #tpu.memory_space<smem>>
    %c115 = arith.constant 115 : index
    %262 = memref.load %arg4[%c115] : memref<144xf32, #tpu.memory_space<smem>>
    %c131 = arith.constant 131 : index
    %263 = memref.load %arg4[%c131] : memref<144xf32, #tpu.memory_space<smem>>
    %264 = vector.broadcast %255 : f32 to vector<16x128xf32>
    %265 = arith.mulf %208, %264 : vector<16x128xf32>
    %266 = arith.addf %161, %265 : vector<16x128xf32>
    %267 = vector.broadcast %256 : f32 to vector<16x128xf32>
    %268 = arith.mulf %210, %267 : vector<16x128xf32>
    %269 = arith.addf %266, %268 : vector<16x128xf32>
    %270 = vector.broadcast %257 : f32 to vector<16x128xf32>
    %271 = arith.mulf %212, %270 : vector<16x128xf32>
    %272 = arith.addf %269, %271 : vector<16x128xf32>
    %273 = vector.broadcast %258 : f32 to vector<16x128xf32>
    %274 = arith.mulf %204, %273 : vector<16x128xf32>
    %275 = arith.addf %272, %274 : vector<16x128xf32>
    %276 = vector.broadcast %259 : f32 to vector<16x128xf32>
    %277 = arith.mulf %202, %276 : vector<16x128xf32>
    %278 = arith.addf %275, %277 : vector<16x128xf32>
    %279 = vector.broadcast %260 : f32 to vector<16x128xf32>
    %280 = arith.mulf %206, %279 : vector<16x128xf32>
    %281 = arith.addf %278, %280 : vector<16x128xf32>
    %282 = vector.broadcast %261 : f32 to vector<16x128xf32>
    %283 = arith.mulf %214, %282 : vector<16x128xf32>
    %284 = arith.addf %281, %283 : vector<16x128xf32>
    %285 = vector.broadcast %262 : f32 to vector<16x128xf32>
    %286 = arith.mulf %216, %285 : vector<16x128xf32>
    %287 = arith.addf %284, %286 : vector<16x128xf32>
    %288 = vector.broadcast %263 : f32 to vector<16x128xf32>
    %289 = arith.mulf %218, %288 : vector<16x128xf32>
    %290 = arith.addf %287, %289 : vector<16x128xf32>
    %c2_22 = arith.constant 2 : index
    %291 = memref.load %arg2[%c2_22] : memref<72xf32, #tpu.memory_space<smem>>
    %c10 = arith.constant 10 : index
    %292 = memref.load %arg2[%c10] : memref<72xf32, #tpu.memory_space<smem>>
    %c18_23 = arith.constant 18 : index
    %293 = memref.load %arg2[%c18_23] : memref<72xf32, #tpu.memory_space<smem>>
    %c26 = arith.constant 26 : index
    %294 = memref.load %arg2[%c26] : memref<72xf32, #tpu.memory_space<smem>>
    %c34_24 = arith.constant 34 : index
    %295 = memref.load %arg2[%c34_24] : memref<72xf32, #tpu.memory_space<smem>>
    %c42 = arith.constant 42 : index
    %296 = memref.load %arg2[%c42] : memref<72xf32, #tpu.memory_space<smem>>
    %c50_25 = arith.constant 50 : index
    %297 = memref.load %arg2[%c50_25] : memref<72xf32, #tpu.memory_space<smem>>
    %c58 = arith.constant 58 : index
    %298 = memref.load %arg2[%c58] : memref<72xf32, #tpu.memory_space<smem>>
    %c66_26 = arith.constant 66 : index
    %299 = memref.load %arg2[%c66_26] : memref<72xf32, #tpu.memory_space<smem>>
    %c2_27 = arith.constant 2 : index
    %300 = memref.load %arg3[%c2_27] : memref<8xf32, #tpu.memory_space<smem>>
    %301 = vector.broadcast %300 : f32 to vector<16x128xf32>
    %302 = vector.broadcast %291 : f32 to vector<16x128xf32>
    %303 = arith.mulf %18, %302 : vector<16x128xf32>
    %304 = arith.addf %301, %303 : vector<16x128xf32>
    %305 = vector.broadcast %292 : f32 to vector<16x128xf32>
    %306 = arith.mulf %20, %305 : vector<16x128xf32>
    %307 = arith.addf %304, %306 : vector<16x128xf32>
    %308 = vector.broadcast %293 : f32 to vector<16x128xf32>
    %309 = arith.mulf %22, %308 : vector<16x128xf32>
    %310 = arith.addf %307, %309 : vector<16x128xf32>
    %311 = vector.broadcast %294 : f32 to vector<16x128xf32>
    %312 = arith.mulf %14, %311 : vector<16x128xf32>
    %313 = arith.addf %310, %312 : vector<16x128xf32>
    %314 = vector.broadcast %295 : f32 to vector<16x128xf32>
    %315 = arith.mulf %12, %314 : vector<16x128xf32>
    %316 = arith.addf %313, %315 : vector<16x128xf32>
    %317 = vector.broadcast %296 : f32 to vector<16x128xf32>
    %318 = arith.mulf %16, %317 : vector<16x128xf32>
    %319 = arith.addf %316, %318 : vector<16x128xf32>
    %320 = vector.broadcast %297 : f32 to vector<16x128xf32>
    %321 = arith.mulf %24, %320 : vector<16x128xf32>
    %322 = arith.addf %319, %321 : vector<16x128xf32>
    %323 = vector.broadcast %298 : f32 to vector<16x128xf32>
    %324 = arith.mulf %26, %323 : vector<16x128xf32>
    %325 = arith.addf %322, %324 : vector<16x128xf32>
    %326 = vector.broadcast %299 : f32 to vector<16x128xf32>
    %327 = arith.mulf %28, %326 : vector<16x128xf32>
    %328 = arith.addf %325, %327 : vector<16x128xf32>
    %cst_28 = arith.constant 0.000000e+00 : f32
    %329 = vector.broadcast %cst_28 : f32 to vector<16x128xf32>
    %330 = arith.maximumf %328, %329 : vector<16x128xf32>
    %331 = arith.mulf %330, %10 : vector<16x128xf32>
    %332 = vector.extract_strided_slice %331 {offsets = [0, 0], sizes = [16, 127], strides = [1, 1]} : vector<16x128xf32> to vector<16x127xf32>
    %333 = tpu.concatenate %1, %332 in 1 : vector<16x1xf32>, vector<16x127xf32> -> vector<16x128xf32>
    %334 = vector.extract_strided_slice %331 {offsets = [0, 1], sizes = [16, 127], strides = [1, 1]} : vector<16x128xf32> to vector<16x127xf32>
    %335 = tpu.concatenate %334, %1 in 1 : vector<16x127xf32>, vector<16x1xf32> -> vector<16x128xf32>
    %336 = vector.extract_strided_slice %333 {offsets = [0, 0], sizes = [15, 128], strides = [1, 1]} : vector<16x128xf32> to vector<15x128xf32>
    %337 = tpu.concatenate %0, %336 in 0 : vector<1x128xf32>, vector<15x128xf32> -> vector<16x128xf32>
    %338 = vector.extract_strided_slice %331 {offsets = [0, 0], sizes = [15, 128], strides = [1, 1]} : vector<16x128xf32> to vector<15x128xf32>
    %339 = tpu.concatenate %0, %338 in 0 : vector<1x128xf32>, vector<15x128xf32> -> vector<16x128xf32>
    %340 = vector.extract_strided_slice %335 {offsets = [0, 0], sizes = [15, 128], strides = [1, 1]} : vector<16x128xf32> to vector<15x128xf32>
    %341 = tpu.concatenate %0, %340 in 0 : vector<1x128xf32>, vector<15x128xf32> -> vector<16x128xf32>
    %342 = vector.extract_strided_slice %333 {offsets = [1, 0], sizes = [15, 128], strides = [1, 1]} : vector<16x128xf32> to vector<15x128xf32>
    %343 = tpu.concatenate %342, %0 in 0 : vector<15x128xf32>, vector<1x128xf32> -> vector<16x128xf32>
    %344 = vector.extract_strided_slice %331 {offsets = [1, 0], sizes = [15, 128], strides = [1, 1]} : vector<16x128xf32> to vector<15x128xf32>
    %345 = tpu.concatenate %344, %0 in 0 : vector<15x128xf32>, vector<1x128xf32> -> vector<16x128xf32>
    %346 = vector.extract_strided_slice %335 {offsets = [1, 0], sizes = [15, 128], strides = [1, 1]} : vector<16x128xf32> to vector<15x128xf32>
    %347 = tpu.concatenate %346, %0 in 0 : vector<15x128xf32>, vector<1x128xf32> -> vector<16x128xf32>
    %c4 = arith.constant 4 : index
    %348 = memref.load %arg4[%c4] : memref<144xf32, #tpu.memory_space<smem>>
    %c20 = arith.constant 20 : index
    %349 = memref.load %arg4[%c20] : memref<144xf32, #tpu.memory_space<smem>>
    %c36 = arith.constant 36 : index
    %350 = memref.load %arg4[%c36] : memref<144xf32, #tpu.memory_space<smem>>
    %c52 = arith.constant 52 : index
    %351 = memref.load %arg4[%c52] : memref<144xf32, #tpu.memory_space<smem>>
    %c68 = arith.constant 68 : index
    %352 = memref.load %arg4[%c68] : memref<144xf32, #tpu.memory_space<smem>>
    %c84 = arith.constant 84 : index
    %353 = memref.load %arg4[%c84] : memref<144xf32, #tpu.memory_space<smem>>
    %c100 = arith.constant 100 : index
    %354 = memref.load %arg4[%c100] : memref<144xf32, #tpu.memory_space<smem>>
    %c116 = arith.constant 116 : index
    %355 = memref.load %arg4[%c116] : memref<144xf32, #tpu.memory_space<smem>>
    %c132 = arith.constant 132 : index
    %356 = memref.load %arg4[%c132] : memref<144xf32, #tpu.memory_space<smem>>
    %357 = vector.broadcast %348 : f32 to vector<16x128xf32>
    %358 = arith.mulf %337, %357 : vector<16x128xf32>
    %359 = arith.addf %254, %358 : vector<16x128xf32>
    %360 = vector.broadcast %349 : f32 to vector<16x128xf32>
    %361 = arith.mulf %339, %360 : vector<16x128xf32>
    %362 = arith.addf %359, %361 : vector<16x128xf32>
    %363 = vector.broadcast %350 : f32 to vector<16x128xf32>
    %364 = arith.mulf %341, %363 : vector<16x128xf32>
    %365 = arith.addf %362, %364 : vector<16x128xf32>
    %366 = vector.broadcast %351 : f32 to vector<16x128xf32>
    %367 = arith.mulf %333, %366 : vector<16x128xf32>
    %368 = arith.addf %365, %367 : vector<16x128xf32>
    %369 = vector.broadcast %352 : f32 to vector<16x128xf32>
    %370 = arith.mulf %331, %369 : vector<16x128xf32>
    %371 = arith.addf %368, %370 : vector<16x128xf32>
    %372 = vector.broadcast %353 : f32 to vector<16x128xf32>
    %373 = arith.mulf %335, %372 : vector<16x128xf32>
    %374 = arith.addf %371, %373 : vector<16x128xf32>
    %375 = vector.broadcast %354 : f32 to vector<16x128xf32>
    %376 = arith.mulf %343, %375 : vector<16x128xf32>
    %377 = arith.addf %374, %376 : vector<16x128xf32>
    %378 = vector.broadcast %355 : f32 to vector<16x128xf32>
    %379 = arith.mulf %345, %378 : vector<16x128xf32>
    %380 = arith.addf %377, %379 : vector<16x128xf32>
    %381 = vector.broadcast %356 : f32 to vector<16x128xf32>
    %382 = arith.mulf %347, %381 : vector<16x128xf32>
    %383 = arith.addf %380, %382 : vector<16x128xf32>
    %c5 = arith.constant 5 : index
    %384 = memref.load %arg4[%c5] : memref<144xf32, #tpu.memory_space<smem>>
    %c21 = arith.constant 21 : index
    %385 = memref.load %arg4[%c21] : memref<144xf32, #tpu.memory_space<smem>>
    %c37 = arith.constant 37 : index
    %386 = memref.load %arg4[%c37] : memref<144xf32, #tpu.memory_space<smem>>
    %c53 = arith.constant 53 : index
    %387 = memref.load %arg4[%c53] : memref<144xf32, #tpu.memory_space<smem>>
    %c69 = arith.constant 69 : index
    %388 = memref.load %arg4[%c69] : memref<144xf32, #tpu.memory_space<smem>>
    %c85 = arith.constant 85 : index
    %389 = memref.load %arg4[%c85] : memref<144xf32, #tpu.memory_space<smem>>
    %c101 = arith.constant 101 : index
    %390 = memref.load %arg4[%c101] : memref<144xf32, #tpu.memory_space<smem>>
    %c117 = arith.constant 117 : index
    %391 = memref.load %arg4[%c117] : memref<144xf32, #tpu.memory_space<smem>>
    %c133 = arith.constant 133 : index
    %392 = memref.load %arg4[%c133] : memref<144xf32, #tpu.memory_space<smem>>
    %393 = vector.broadcast %384 : f32 to vector<16x128xf32>
    %394 = arith.mulf %337, %393 : vector<16x128xf32>
    %395 = arith.addf %290, %394 : vector<16x128xf32>
    %396 = vector.broadcast %385 : f32 to vector<16x128xf32>
    %397 = arith.mulf %339, %396 : vector<16x128xf32>
    %398 = arith.addf %395, %397 : vector<16x128xf32>
    %399 = vector.broadcast %386 : f32 to vector<16x128xf32>
    %400 = arith.mulf %341, %399 : vector<16x128xf32>
    %401 = arith.addf %398, %400 : vector<16x128xf32>
    %402 = vector.broadcast %387 : f32 to vector<16x128xf32>
    %403 = arith.mulf %333, %402 : vector<16x128xf32>
    %404 = arith.addf %401, %403 : vector<16x128xf32>
    %405 = vector.broadcast %388 : f32 to vector<16x128xf32>
    %406 = arith.mulf %331, %405 : vector<16x128xf32>
    %407 = arith.addf %404, %406 : vector<16x128xf32>
    %408 = vector.broadcast %389 : f32 to vector<16x128xf32>
    %409 = arith.mulf %335, %408 : vector<16x128xf32>
    %410 = arith.addf %407, %409 : vector<16x128xf32>
    %411 = vector.broadcast %390 : f32 to vector<16x128xf32>
    %412 = arith.mulf %343, %411 : vector<16x128xf32>
    %413 = arith.addf %410, %412 : vector<16x128xf32>
    %414 = vector.broadcast %391 : f32 to vector<16x128xf32>
    %415 = arith.mulf %345, %414 : vector<16x128xf32>
    %416 = arith.addf %413, %415 : vector<16x128xf32>
    %417 = vector.broadcast %392 : f32 to vector<16x128xf32>
    %418 = arith.mulf %347, %417 : vector<16x128xf32>
    %419 = arith.addf %416, %418 : vector<16x128xf32>
    %c3_29 = arith.constant 3 : index
    %420 = memref.load %arg2[%c3_29] : memref<72xf32, #tpu.memory_space<smem>>
    %c11 = arith.constant 11 : index
    %421 = memref.load %arg2[%c11] : memref<72xf32, #tpu.memory_space<smem>>
    %c19_30 = arith.constant 19 : index
    %422 = memref.load %arg2[%c19_30] : memref<72xf32, #tpu.memory_space<smem>>
    %c27 = arith.constant 27 : index
    %423 = memref.load %arg2[%c27] : memref<72xf32, #tpu.memory_space<smem>>
    %c35_31 = arith.constant 35 : index
    %424 = memref.load %arg2[%c35_31] : memref<72xf32, #tpu.memory_space<smem>>
    %c43 = arith.constant 43 : index
    %425 = memref.load %arg2[%c43] : memref<72xf32, #tpu.memory_space<smem>>
    %c51_32 = arith.constant 51 : index
    %426 = memref.load %arg2[%c51_32] : memref<72xf32, #tpu.memory_space<smem>>
    %c59 = arith.constant 59 : index
    %427 = memref.load %arg2[%c59] : memref<72xf32, #tpu.memory_space<smem>>
    %c67_33 = arith.constant 67 : index
    %428 = memref.load %arg2[%c67_33] : memref<72xf32, #tpu.memory_space<smem>>
    %c3_34 = arith.constant 3 : index
    %429 = memref.load %arg3[%c3_34] : memref<8xf32, #tpu.memory_space<smem>>
    %430 = vector.broadcast %429 : f32 to vector<16x128xf32>
    %431 = vector.broadcast %420 : f32 to vector<16x128xf32>
    %432 = arith.mulf %18, %431 : vector<16x128xf32>
    %433 = arith.addf %430, %432 : vector<16x128xf32>
    %434 = vector.broadcast %421 : f32 to vector<16x128xf32>
    %435 = arith.mulf %20, %434 : vector<16x128xf32>
    %436 = arith.addf %433, %435 : vector<16x128xf32>
    %437 = vector.broadcast %422 : f32 to vector<16x128xf32>
    %438 = arith.mulf %22, %437 : vector<16x128xf32>
    %439 = arith.addf %436, %438 : vector<16x128xf32>
    %440 = vector.broadcast %423 : f32 to vector<16x128xf32>
    %441 = arith.mulf %14, %440 : vector<16x128xf32>
    %442 = arith.addf %439, %441 : vector<16x128xf32>
    %443 = vector.broadcast %424 : f32 to vector<16x128xf32>
    %444 = arith.mulf %12, %443 : vector<16x128xf32>
    %445 = arith.addf %442, %444 : vector<16x128xf32>
    %446 = vector.broadcast %425 : f32 to vector<16x128xf32>
    %447 = arith.mulf %16, %446 : vector<16x128xf32>
    %448 = arith.addf %445, %447 : vector<16x128xf32>
    %449 = vector.broadcast %426 : f32 to vector<16x128xf32>
    %450 = arith.mulf %24, %449 : vector<16x128xf32>
    %451 = arith.addf %448, %450 : vector<16x128xf32>
    %452 = vector.broadcast %427 : f32 to vector<16x128xf32>
    %453 = arith.mulf %26, %452 : vector<16x128xf32>
    %454 = arith.addf %451, %453 : vector<16x128xf32>
    %455 = vector.broadcast %428 : f32 to vector<16x128xf32>
    %456 = arith.mulf %28, %455 : vector<16x128xf32>
    %457 = arith.addf %454, %456 : vector<16x128xf32>
    %cst_35 = arith.constant 0.000000e+00 : f32
    %458 = vector.broadcast %cst_35 : f32 to vector<16x128xf32>
    %459 = arith.maximumf %457, %458 : vector<16x128xf32>
    %460 = arith.mulf %459, %10 : vector<16x128xf32>
    %461 = vector.extract_strided_slice %460 {offsets = [0, 0], sizes = [16, 127], strides = [1, 1]} : vector<16x128xf32> to vector<16x127xf32>
    %462 = tpu.concatenate %1, %461 in 1 : vector<16x1xf32>, vector<16x127xf32> -> vector<16x128xf32>
    %463 = vector.extract_strided_slice %460 {offsets = [0, 1], sizes = [16, 127], strides = [1, 1]} : vector<16x128xf32> to vector<16x127xf32>
    %464 = tpu.concatenate %463, %1 in 1 : vector<16x127xf32>, vector<16x1xf32> -> vector<16x128xf32>
    %465 = vector.extract_strided_slice %462 {offsets = [0, 0], sizes = [15, 128], strides = [1, 1]} : vector<16x128xf32> to vector<15x128xf32>
    %466 = tpu.concatenate %0, %465 in 0 : vector<1x128xf32>, vector<15x128xf32> -> vector<16x128xf32>
    %467 = vector.extract_strided_slice %460 {offsets = [0, 0], sizes = [15, 128], strides = [1, 1]} : vector<16x128xf32> to vector<15x128xf32>
    %468 = tpu.concatenate %0, %467 in 0 : vector<1x128xf32>, vector<15x128xf32> -> vector<16x128xf32>
    %469 = vector.extract_strided_slice %464 {offsets = [0, 0], sizes = [15, 128], strides = [1, 1]} : vector<16x128xf32> to vector<15x128xf32>
    %470 = tpu.concatenate %0, %469 in 0 : vector<1x128xf32>, vector<15x128xf32> -> vector<16x128xf32>
    %471 = vector.extract_strided_slice %462 {offsets = [1, 0], sizes = [15, 128], strides = [1, 1]} : vector<16x128xf32> to vector<15x128xf32>
    %472 = tpu.concatenate %471, %0 in 0 : vector<15x128xf32>, vector<1x128xf32> -> vector<16x128xf32>
    %473 = vector.extract_strided_slice %460 {offsets = [1, 0], sizes = [15, 128], strides = [1, 1]} : vector<16x128xf32> to vector<15x128xf32>
    %474 = tpu.concatenate %473, %0 in 0 : vector<15x128xf32>, vector<1x128xf32> -> vector<16x128xf32>
    %475 = vector.extract_strided_slice %464 {offsets = [1, 0], sizes = [15, 128], strides = [1, 1]} : vector<16x128xf32> to vector<15x128xf32>
    %476 = tpu.concatenate %475, %0 in 0 : vector<15x128xf32>, vector<1x128xf32> -> vector<16x128xf32>
    %c6 = arith.constant 6 : index
    %477 = memref.load %arg4[%c6] : memref<144xf32, #tpu.memory_space<smem>>
    %c22 = arith.constant 22 : index
    %478 = memref.load %arg4[%c22] : memref<144xf32, #tpu.memory_space<smem>>
    %c38 = arith.constant 38 : index
    %479 = memref.load %arg4[%c38] : memref<144xf32, #tpu.memory_space<smem>>
    %c54 = arith.constant 54 : index
    %480 = memref.load %arg4[%c54] : memref<144xf32, #tpu.memory_space<smem>>
    %c70 = arith.constant 70 : index
    %481 = memref.load %arg4[%c70] : memref<144xf32, #tpu.memory_space<smem>>
    %c86 = arith.constant 86 : index
    %482 = memref.load %arg4[%c86] : memref<144xf32, #tpu.memory_space<smem>>
    %c102 = arith.constant 102 : index
    %483 = memref.load %arg4[%c102] : memref<144xf32, #tpu.memory_space<smem>>
    %c118 = arith.constant 118 : index
    %484 = memref.load %arg4[%c118] : memref<144xf32, #tpu.memory_space<smem>>
    %c134 = arith.constant 134 : index
    %485 = memref.load %arg4[%c134] : memref<144xf32, #tpu.memory_space<smem>>
    %486 = vector.broadcast %477 : f32 to vector<16x128xf32>
    %487 = arith.mulf %466, %486 : vector<16x128xf32>
    %488 = arith.addf %383, %487 : vector<16x128xf32>
    %489 = vector.broadcast %478 : f32 to vector<16x128xf32>
    %490 = arith.mulf %468, %489 : vector<16x128xf32>
    %491 = arith.addf %488, %490 : vector<16x128xf32>
    %492 = vector.broadcast %479 : f32 to vector<16x128xf32>
    %493 = arith.mulf %470, %492 : vector<16x128xf32>
    %494 = arith.addf %491, %493 : vector<16x128xf32>
    %495 = vector.broadcast %480 : f32 to vector<16x128xf32>
    %496 = arith.mulf %462, %495 : vector<16x128xf32>
    %497 = arith.addf %494, %496 : vector<16x128xf32>
    %498 = vector.broadcast %481 : f32 to vector<16x128xf32>
    %499 = arith.mulf %460, %498 : vector<16x128xf32>
    %500 = arith.addf %497, %499 : vector<16x128xf32>
    %501 = vector.broadcast %482 : f32 to vector<16x128xf32>
    %502 = arith.mulf %464, %501 : vector<16x128xf32>
    %503 = arith.addf %500, %502 : vector<16x128xf32>
    %504 = vector.broadcast %483 : f32 to vector<16x128xf32>
    %505 = arith.mulf %472, %504 : vector<16x128xf32>
    %506 = arith.addf %503, %505 : vector<16x128xf32>
    %507 = vector.broadcast %484 : f32 to vector<16x128xf32>
    %508 = arith.mulf %474, %507 : vector<16x128xf32>
    %509 = arith.addf %506, %508 : vector<16x128xf32>
    %510 = vector.broadcast %485 : f32 to vector<16x128xf32>
    %511 = arith.mulf %476, %510 : vector<16x128xf32>
    %512 = arith.addf %509, %511 : vector<16x128xf32>
    %c7 = arith.constant 7 : index
    %513 = memref.load %arg4[%c7] : memref<144xf32, #tpu.memory_space<smem>>
    %c23 = arith.constant 23 : index
    %514 = memref.load %arg4[%c23] : memref<144xf32, #tpu.memory_space<smem>>
    %c39 = arith.constant 39 : index
    %515 = memref.load %arg4[%c39] : memref<144xf32, #tpu.memory_space<smem>>
    %c55 = arith.constant 55 : index
    %516 = memref.load %arg4[%c55] : memref<144xf32, #tpu.memory_space<smem>>
    %c71 = arith.constant 71 : index
    %517 = memref.load %arg4[%c71] : memref<144xf32, #tpu.memory_space<smem>>
    %c87 = arith.constant 87 : index
    %518 = memref.load %arg4[%c87] : memref<144xf32, #tpu.memory_space<smem>>
    %c103 = arith.constant 103 : index
    %519 = memref.load %arg4[%c103] : memref<144xf32, #tpu.memory_space<smem>>
    %c119 = arith.constant 119 : index
    %520 = memref.load %arg4[%c119] : memref<144xf32, #tpu.memory_space<smem>>
    %c135 = arith.constant 135 : index
    %521 = memref.load %arg4[%c135] : memref<144xf32, #tpu.memory_space<smem>>
    %522 = vector.broadcast %513 : f32 to vector<16x128xf32>
    %523 = arith.mulf %466, %522 : vector<16x128xf32>
    %524 = arith.addf %419, %523 : vector<16x128xf32>
    %525 = vector.broadcast %514 : f32 to vector<16x128xf32>
    %526 = arith.mulf %468, %525 : vector<16x128xf32>
    %527 = arith.addf %524, %526 : vector<16x128xf32>
    %528 = vector.broadcast %515 : f32 to vector<16x128xf32>
    %529 = arith.mulf %470, %528 : vector<16x128xf32>
    %530 = arith.addf %527, %529 : vector<16x128xf32>
    %531 = vector.broadcast %516 : f32 to vector<16x128xf32>
    %532 = arith.mulf %462, %531 : vector<16x128xf32>
    %533 = arith.addf %530, %532 : vector<16x128xf32>
    %534 = vector.broadcast %517 : f32 to vector<16x128xf32>
    %535 = arith.mulf %460, %534 : vector<16x128xf32>
    %536 = arith.addf %533, %535 : vector<16x128xf32>
    %537 = vector.broadcast %518 : f32 to vector<16x128xf32>
    %538 = arith.mulf %464, %537 : vector<16x128xf32>
    %539 = arith.addf %536, %538 : vector<16x128xf32>
    %540 = vector.broadcast %519 : f32 to vector<16x128xf32>
    %541 = arith.mulf %472, %540 : vector<16x128xf32>
    %542 = arith.addf %539, %541 : vector<16x128xf32>
    %543 = vector.broadcast %520 : f32 to vector<16x128xf32>
    %544 = arith.mulf %474, %543 : vector<16x128xf32>
    %545 = arith.addf %542, %544 : vector<16x128xf32>
    %546 = vector.broadcast %521 : f32 to vector<16x128xf32>
    %547 = arith.mulf %476, %546 : vector<16x128xf32>
    %548 = arith.addf %545, %547 : vector<16x128xf32>
    %c4_36 = arith.constant 4 : index
    %549 = memref.load %arg2[%c4_36] : memref<72xf32, #tpu.memory_space<smem>>
    %c12 = arith.constant 12 : index
    %550 = memref.load %arg2[%c12] : memref<72xf32, #tpu.memory_space<smem>>
    %c20_37 = arith.constant 20 : index
    %551 = memref.load %arg2[%c20_37] : memref<72xf32, #tpu.memory_space<smem>>
    %c28 = arith.constant 28 : index
    %552 = memref.load %arg2[%c28] : memref<72xf32, #tpu.memory_space<smem>>
    %c36_38 = arith.constant 36 : index
    %553 = memref.load %arg2[%c36_38] : memref<72xf32, #tpu.memory_space<smem>>
    %c44 = arith.constant 44 : index
    %554 = memref.load %arg2[%c44] : memref<72xf32, #tpu.memory_space<smem>>
    %c52_39 = arith.constant 52 : index
    %555 = memref.load %arg2[%c52_39] : memref<72xf32, #tpu.memory_space<smem>>
    %c60 = arith.constant 60 : index
    %556 = memref.load %arg2[%c60] : memref<72xf32, #tpu.memory_space<smem>>
    %c68_40 = arith.constant 68 : index
    %557 = memref.load %arg2[%c68_40] : memref<72xf32, #tpu.memory_space<smem>>
    %c4_41 = arith.constant 4 : index
    %558 = memref.load %arg3[%c4_41] : memref<8xf32, #tpu.memory_space<smem>>
    %559 = vector.broadcast %558 : f32 to vector<16x128xf32>
    %560 = vector.broadcast %549 : f32 to vector<16x128xf32>
    %561 = arith.mulf %18, %560 : vector<16x128xf32>
    %562 = arith.addf %559, %561 : vector<16x128xf32>
    %563 = vector.broadcast %550 : f32 to vector<16x128xf32>
    %564 = arith.mulf %20, %563 : vector<16x128xf32>
    %565 = arith.addf %562, %564 : vector<16x128xf32>
    %566 = vector.broadcast %551 : f32 to vector<16x128xf32>
    %567 = arith.mulf %22, %566 : vector<16x128xf32>
    %568 = arith.addf %565, %567 : vector<16x128xf32>
    %569 = vector.broadcast %552 : f32 to vector<16x128xf32>
    %570 = arith.mulf %14, %569 : vector<16x128xf32>
    %571 = arith.addf %568, %570 : vector<16x128xf32>
    %572 = vector.broadcast %553 : f32 to vector<16x128xf32>
    %573 = arith.mulf %12, %572 : vector<16x128xf32>
    %574 = arith.addf %571, %573 : vector<16x128xf32>
    %575 = vector.broadcast %554 : f32 to vector<16x128xf32>
    %576 = arith.mulf %16, %575 : vector<16x128xf32>
    %577 = arith.addf %574, %576 : vector<16x128xf32>
    %578 = vector.broadcast %555 : f32 to vector<16x128xf32>
    %579 = arith.mulf %24, %578 : vector<16x128xf32>
    %580 = arith.addf %577, %579 : vector<16x128xf32>
    %581 = vector.broadcast %556 : f32 to vector<16x128xf32>
    %582 = arith.mulf %26, %581 : vector<16x128xf32>
    %583 = arith.addf %580, %582 : vector<16x128xf32>
    %584 = vector.broadcast %557 : f32 to vector<16x128xf32>
    %585 = arith.mulf %28, %584 : vector<16x128xf32>
    %586 = arith.addf %583, %585 : vector<16x128xf32>
    %cst_42 = arith.constant 0.000000e+00 : f32
    %587 = vector.broadcast %cst_42 : f32 to vector<16x128xf32>
    %588 = arith.maximumf %586, %587 : vector<16x128xf32>
    %589 = arith.mulf %588, %10 : vector<16x128xf32>
    %590 = vector.extract_strided_slice %589 {offsets = [0, 0], sizes = [16, 127], strides = [1, 1]} : vector<16x128xf32> to vector<16x127xf32>
    %591 = tpu.concatenate %1, %590 in 1 : vector<16x1xf32>, vector<16x127xf32> -> vector<16x128xf32>
    %592 = vector.extract_strided_slice %589 {offsets = [0, 1], sizes = [16, 127], strides = [1, 1]} : vector<16x128xf32> to vector<16x127xf32>
    %593 = tpu.concatenate %592, %1 in 1 : vector<16x127xf32>, vector<16x1xf32> -> vector<16x128xf32>
    %594 = vector.extract_strided_slice %591 {offsets = [0, 0], sizes = [15, 128], strides = [1, 1]} : vector<16x128xf32> to vector<15x128xf32>
    %595 = tpu.concatenate %0, %594 in 0 : vector<1x128xf32>, vector<15x128xf32> -> vector<16x128xf32>
    %596 = vector.extract_strided_slice %589 {offsets = [0, 0], sizes = [15, 128], strides = [1, 1]} : vector<16x128xf32> to vector<15x128xf32>
    %597 = tpu.concatenate %0, %596 in 0 : vector<1x128xf32>, vector<15x128xf32> -> vector<16x128xf32>
    %598 = vector.extract_strided_slice %593 {offsets = [0, 0], sizes = [15, 128], strides = [1, 1]} : vector<16x128xf32> to vector<15x128xf32>
    %599 = tpu.concatenate %0, %598 in 0 : vector<1x128xf32>, vector<15x128xf32> -> vector<16x128xf32>
    %600 = vector.extract_strided_slice %591 {offsets = [1, 0], sizes = [15, 128], strides = [1, 1]} : vector<16x128xf32> to vector<15x128xf32>
    %601 = tpu.concatenate %600, %0 in 0 : vector<15x128xf32>, vector<1x128xf32> -> vector<16x128xf32>
    %602 = vector.extract_strided_slice %589 {offsets = [1, 0], sizes = [15, 128], strides = [1, 1]} : vector<16x128xf32> to vector<15x128xf32>
    %603 = tpu.concatenate %602, %0 in 0 : vector<15x128xf32>, vector<1x128xf32> -> vector<16x128xf32>
    %604 = vector.extract_strided_slice %593 {offsets = [1, 0], sizes = [15, 128], strides = [1, 1]} : vector<16x128xf32> to vector<15x128xf32>
    %605 = tpu.concatenate %604, %0 in 0 : vector<15x128xf32>, vector<1x128xf32> -> vector<16x128xf32>
    %c8_43 = arith.constant 8 : index
    %606 = memref.load %arg4[%c8_43] : memref<144xf32, #tpu.memory_space<smem>>
    %c24_44 = arith.constant 24 : index
    %607 = memref.load %arg4[%c24_44] : memref<144xf32, #tpu.memory_space<smem>>
    %c40_45 = arith.constant 40 : index
    %608 = memref.load %arg4[%c40_45] : memref<144xf32, #tpu.memory_space<smem>>
    %c56_46 = arith.constant 56 : index
    %609 = memref.load %arg4[%c56_46] : memref<144xf32, #tpu.memory_space<smem>>
    %c72 = arith.constant 72 : index
    %610 = memref.load %arg4[%c72] : memref<144xf32, #tpu.memory_space<smem>>
    %c88 = arith.constant 88 : index
    %611 = memref.load %arg4[%c88] : memref<144xf32, #tpu.memory_space<smem>>
    %c104 = arith.constant 104 : index
    %612 = memref.load %arg4[%c104] : memref<144xf32, #tpu.memory_space<smem>>
    %c120 = arith.constant 120 : index
    %613 = memref.load %arg4[%c120] : memref<144xf32, #tpu.memory_space<smem>>
    %c136 = arith.constant 136 : index
    %614 = memref.load %arg4[%c136] : memref<144xf32, #tpu.memory_space<smem>>
    %615 = vector.broadcast %606 : f32 to vector<16x128xf32>
    %616 = arith.mulf %595, %615 : vector<16x128xf32>
    %617 = arith.addf %512, %616 : vector<16x128xf32>
    %618 = vector.broadcast %607 : f32 to vector<16x128xf32>
    %619 = arith.mulf %597, %618 : vector<16x128xf32>
    %620 = arith.addf %617, %619 : vector<16x128xf32>
    %621 = vector.broadcast %608 : f32 to vector<16x128xf32>
    %622 = arith.mulf %599, %621 : vector<16x128xf32>
    %623 = arith.addf %620, %622 : vector<16x128xf32>
    %624 = vector.broadcast %609 : f32 to vector<16x128xf32>
    %625 = arith.mulf %591, %624 : vector<16x128xf32>
    %626 = arith.addf %623, %625 : vector<16x128xf32>
    %627 = vector.broadcast %610 : f32 to vector<16x128xf32>
    %628 = arith.mulf %589, %627 : vector<16x128xf32>
    %629 = arith.addf %626, %628 : vector<16x128xf32>
    %630 = vector.broadcast %611 : f32 to vector<16x128xf32>
    %631 = arith.mulf %593, %630 : vector<16x128xf32>
    %632 = arith.addf %629, %631 : vector<16x128xf32>
    %633 = vector.broadcast %612 : f32 to vector<16x128xf32>
    %634 = arith.mulf %601, %633 : vector<16x128xf32>
    %635 = arith.addf %632, %634 : vector<16x128xf32>
    %636 = vector.broadcast %613 : f32 to vector<16x128xf32>
    %637 = arith.mulf %603, %636 : vector<16x128xf32>
    %638 = arith.addf %635, %637 : vector<16x128xf32>
    %639 = vector.broadcast %614 : f32 to vector<16x128xf32>
    %640 = arith.mulf %605, %639 : vector<16x128xf32>
    %641 = arith.addf %638, %640 : vector<16x128xf32>
    %c9_47 = arith.constant 9 : index
    %642 = memref.load %arg4[%c9_47] : memref<144xf32, #tpu.memory_space<smem>>
    %c25_48 = arith.constant 25 : index
    %643 = memref.load %arg4[%c25_48] : memref<144xf32, #tpu.memory_space<smem>>
    %c41_49 = arith.constant 41 : index
    %644 = memref.load %arg4[%c41_49] : memref<144xf32, #tpu.memory_space<smem>>
    %c57_50 = arith.constant 57 : index
    %645 = memref.load %arg4[%c57_50] : memref<144xf32, #tpu.memory_space<smem>>
    %c73 = arith.constant 73 : index
    %646 = memref.load %arg4[%c73] : memref<144xf32, #tpu.memory_space<smem>>
    %c89 = arith.constant 89 : index
    %647 = memref.load %arg4[%c89] : memref<144xf32, #tpu.memory_space<smem>>
    %c105 = arith.constant 105 : index
    %648 = memref.load %arg4[%c105] : memref<144xf32, #tpu.memory_space<smem>>
    %c121 = arith.constant 121 : index
    %649 = memref.load %arg4[%c121] : memref<144xf32, #tpu.memory_space<smem>>
    %c137 = arith.constant 137 : index
    %650 = memref.load %arg4[%c137] : memref<144xf32, #tpu.memory_space<smem>>
    %651 = vector.broadcast %642 : f32 to vector<16x128xf32>
    %652 = arith.mulf %595, %651 : vector<16x128xf32>
    %653 = arith.addf %548, %652 : vector<16x128xf32>
    %654 = vector.broadcast %643 : f32 to vector<16x128xf32>
    %655 = arith.mulf %597, %654 : vector<16x128xf32>
    %656 = arith.addf %653, %655 : vector<16x128xf32>
    %657 = vector.broadcast %644 : f32 to vector<16x128xf32>
    %658 = arith.mulf %599, %657 : vector<16x128xf32>
    %659 = arith.addf %656, %658 : vector<16x128xf32>
    %660 = vector.broadcast %645 : f32 to vector<16x128xf32>
    %661 = arith.mulf %591, %660 : vector<16x128xf32>
    %662 = arith.addf %659, %661 : vector<16x128xf32>
    %663 = vector.broadcast %646 : f32 to vector<16x128xf32>
    %664 = arith.mulf %589, %663 : vector<16x128xf32>
    %665 = arith.addf %662, %664 : vector<16x128xf32>
    %666 = vector.broadcast %647 : f32 to vector<16x128xf32>
    %667 = arith.mulf %593, %666 : vector<16x128xf32>
    %668 = arith.addf %665, %667 : vector<16x128xf32>
    %669 = vector.broadcast %648 : f32 to vector<16x128xf32>
    %670 = arith.mulf %601, %669 : vector<16x128xf32>
    %671 = arith.addf %668, %670 : vector<16x128xf32>
    %672 = vector.broadcast %649 : f32 to vector<16x128xf32>
    %673 = arith.mulf %603, %672 : vector<16x128xf32>
    %674 = arith.addf %671, %673 : vector<16x128xf32>
    %675 = vector.broadcast %650 : f32 to vector<16x128xf32>
    %676 = arith.mulf %605, %675 : vector<16x128xf32>
    %677 = arith.addf %674, %676 : vector<16x128xf32>
    %c5_51 = arith.constant 5 : index
    %678 = memref.load %arg2[%c5_51] : memref<72xf32, #tpu.memory_space<smem>>
    %c13 = arith.constant 13 : index
    %679 = memref.load %arg2[%c13] : memref<72xf32, #tpu.memory_space<smem>>
    %c21_52 = arith.constant 21 : index
    %680 = memref.load %arg2[%c21_52] : memref<72xf32, #tpu.memory_space<smem>>
    %c29 = arith.constant 29 : index
    %681 = memref.load %arg2[%c29] : memref<72xf32, #tpu.memory_space<smem>>
    %c37_53 = arith.constant 37 : index
    %682 = memref.load %arg2[%c37_53] : memref<72xf32, #tpu.memory_space<smem>>
    %c45 = arith.constant 45 : index
    %683 = memref.load %arg2[%c45] : memref<72xf32, #tpu.memory_space<smem>>
    %c53_54 = arith.constant 53 : index
    %684 = memref.load %arg2[%c53_54] : memref<72xf32, #tpu.memory_space<smem>>
    %c61 = arith.constant 61 : index
    %685 = memref.load %arg2[%c61] : memref<72xf32, #tpu.memory_space<smem>>
    %c69_55 = arith.constant 69 : index
    %686 = memref.load %arg2[%c69_55] : memref<72xf32, #tpu.memory_space<smem>>
    %c5_56 = arith.constant 5 : index
    %687 = memref.load %arg3[%c5_56] : memref<8xf32, #tpu.memory_space<smem>>
    %688 = vector.broadcast %687 : f32 to vector<16x128xf32>
    %689 = vector.broadcast %678 : f32 to vector<16x128xf32>
    %690 = arith.mulf %18, %689 : vector<16x128xf32>
    %691 = arith.addf %688, %690 : vector<16x128xf32>
    %692 = vector.broadcast %679 : f32 to vector<16x128xf32>
    %693 = arith.mulf %20, %692 : vector<16x128xf32>
    %694 = arith.addf %691, %693 : vector<16x128xf32>
    %695 = vector.broadcast %680 : f32 to vector<16x128xf32>
    %696 = arith.mulf %22, %695 : vector<16x128xf32>
    %697 = arith.addf %694, %696 : vector<16x128xf32>
    %698 = vector.broadcast %681 : f32 to vector<16x128xf32>
    %699 = arith.mulf %14, %698 : vector<16x128xf32>
    %700 = arith.addf %697, %699 : vector<16x128xf32>
    %701 = vector.broadcast %682 : f32 to vector<16x128xf32>
    %702 = arith.mulf %12, %701 : vector<16x128xf32>
    %703 = arith.addf %700, %702 : vector<16x128xf32>
    %704 = vector.broadcast %683 : f32 to vector<16x128xf32>
    %705 = arith.mulf %16, %704 : vector<16x128xf32>
    %706 = arith.addf %703, %705 : vector<16x128xf32>
    %707 = vector.broadcast %684 : f32 to vector<16x128xf32>
    %708 = arith.mulf %24, %707 : vector<16x128xf32>
    %709 = arith.addf %706, %708 : vector<16x128xf32>
    %710 = vector.broadcast %685 : f32 to vector<16x128xf32>
    %711 = arith.mulf %26, %710 : vector<16x128xf32>
    %712 = arith.addf %709, %711 : vector<16x128xf32>
    %713 = vector.broadcast %686 : f32 to vector<16x128xf32>
    %714 = arith.mulf %28, %713 : vector<16x128xf32>
    %715 = arith.addf %712, %714 : vector<16x128xf32>
    %cst_57 = arith.constant 0.000000e+00 : f32
    %716 = vector.broadcast %cst_57 : f32 to vector<16x128xf32>
    %717 = arith.maximumf %715, %716 : vector<16x128xf32>
    %718 = arith.mulf %717, %10 : vector<16x128xf32>
    %719 = vector.extract_strided_slice %718 {offsets = [0, 0], sizes = [16, 127], strides = [1, 1]} : vector<16x128xf32> to vector<16x127xf32>
    %720 = tpu.concatenate %1, %719 in 1 : vector<16x1xf32>, vector<16x127xf32> -> vector<16x128xf32>
    %721 = vector.extract_strided_slice %718 {offsets = [0, 1], sizes = [16, 127], strides = [1, 1]} : vector<16x128xf32> to vector<16x127xf32>
    %722 = tpu.concatenate %721, %1 in 1 : vector<16x127xf32>, vector<16x1xf32> -> vector<16x128xf32>
    %723 = vector.extract_strided_slice %720 {offsets = [0, 0], sizes = [15, 128], strides = [1, 1]} : vector<16x128xf32> to vector<15x128xf32>
    %724 = tpu.concatenate %0, %723 in 0 : vector<1x128xf32>, vector<15x128xf32> -> vector<16x128xf32>
    %725 = vector.extract_strided_slice %718 {offsets = [0, 0], sizes = [15, 128], strides = [1, 1]} : vector<16x128xf32> to vector<15x128xf32>
    %726 = tpu.concatenate %0, %725 in 0 : vector<1x128xf32>, vector<15x128xf32> -> vector<16x128xf32>
    %727 = vector.extract_strided_slice %722 {offsets = [0, 0], sizes = [15, 128], strides = [1, 1]} : vector<16x128xf32> to vector<15x128xf32>
    %728 = tpu.concatenate %0, %727 in 0 : vector<1x128xf32>, vector<15x128xf32> -> vector<16x128xf32>
    %729 = vector.extract_strided_slice %720 {offsets = [1, 0], sizes = [15, 128], strides = [1, 1]} : vector<16x128xf32> to vector<15x128xf32>
    %730 = tpu.concatenate %729, %0 in 0 : vector<15x128xf32>, vector<1x128xf32> -> vector<16x128xf32>
    %731 = vector.extract_strided_slice %718 {offsets = [1, 0], sizes = [15, 128], strides = [1, 1]} : vector<16x128xf32> to vector<15x128xf32>
    %732 = tpu.concatenate %731, %0 in 0 : vector<15x128xf32>, vector<1x128xf32> -> vector<16x128xf32>
    %733 = vector.extract_strided_slice %722 {offsets = [1, 0], sizes = [15, 128], strides = [1, 1]} : vector<16x128xf32> to vector<15x128xf32>
    %734 = tpu.concatenate %733, %0 in 0 : vector<15x128xf32>, vector<1x128xf32> -> vector<16x128xf32>
    %c10_58 = arith.constant 10 : index
    %735 = memref.load %arg4[%c10_58] : memref<144xf32, #tpu.memory_space<smem>>
    %c26_59 = arith.constant 26 : index
    %736 = memref.load %arg4[%c26_59] : memref<144xf32, #tpu.memory_space<smem>>
    %c42_60 = arith.constant 42 : index
    %737 = memref.load %arg4[%c42_60] : memref<144xf32, #tpu.memory_space<smem>>
    %c58_61 = arith.constant 58 : index
    %738 = memref.load %arg4[%c58_61] : memref<144xf32, #tpu.memory_space<smem>>
    %c74 = arith.constant 74 : index
    %739 = memref.load %arg4[%c74] : memref<144xf32, #tpu.memory_space<smem>>
    %c90 = arith.constant 90 : index
    %740 = memref.load %arg4[%c90] : memref<144xf32, #tpu.memory_space<smem>>
    %c106 = arith.constant 106 : index
    %741 = memref.load %arg4[%c106] : memref<144xf32, #tpu.memory_space<smem>>
    %c122 = arith.constant 122 : index
    %742 = memref.load %arg4[%c122] : memref<144xf32, #tpu.memory_space<smem>>
    %c138 = arith.constant 138 : index
    %743 = memref.load %arg4[%c138] : memref<144xf32, #tpu.memory_space<smem>>
    %744 = vector.broadcast %735 : f32 to vector<16x128xf32>
    %745 = arith.mulf %724, %744 : vector<16x128xf32>
    %746 = arith.addf %641, %745 : vector<16x128xf32>
    %747 = vector.broadcast %736 : f32 to vector<16x128xf32>
    %748 = arith.mulf %726, %747 : vector<16x128xf32>
    %749 = arith.addf %746, %748 : vector<16x128xf32>
    %750 = vector.broadcast %737 : f32 to vector<16x128xf32>
    %751 = arith.mulf %728, %750 : vector<16x128xf32>
    %752 = arith.addf %749, %751 : vector<16x128xf32>
    %753 = vector.broadcast %738 : f32 to vector<16x128xf32>
    %754 = arith.mulf %720, %753 : vector<16x128xf32>
    %755 = arith.addf %752, %754 : vector<16x128xf32>
    %756 = vector.broadcast %739 : f32 to vector<16x128xf32>
    %757 = arith.mulf %718, %756 : vector<16x128xf32>
    %758 = arith.addf %755, %757 : vector<16x128xf32>
    %759 = vector.broadcast %740 : f32 to vector<16x128xf32>
    %760 = arith.mulf %722, %759 : vector<16x128xf32>
    %761 = arith.addf %758, %760 : vector<16x128xf32>
    %762 = vector.broadcast %741 : f32 to vector<16x128xf32>
    %763 = arith.mulf %730, %762 : vector<16x128xf32>
    %764 = arith.addf %761, %763 : vector<16x128xf32>
    %765 = vector.broadcast %742 : f32 to vector<16x128xf32>
    %766 = arith.mulf %732, %765 : vector<16x128xf32>
    %767 = arith.addf %764, %766 : vector<16x128xf32>
    %768 = vector.broadcast %743 : f32 to vector<16x128xf32>
    %769 = arith.mulf %734, %768 : vector<16x128xf32>
    %770 = arith.addf %767, %769 : vector<16x128xf32>
    %c11_62 = arith.constant 11 : index
    %771 = memref.load %arg4[%c11_62] : memref<144xf32, #tpu.memory_space<smem>>
    %c27_63 = arith.constant 27 : index
    %772 = memref.load %arg4[%c27_63] : memref<144xf32, #tpu.memory_space<smem>>
    %c43_64 = arith.constant 43 : index
    %773 = memref.load %arg4[%c43_64] : memref<144xf32, #tpu.memory_space<smem>>
    %c59_65 = arith.constant 59 : index
    %774 = memref.load %arg4[%c59_65] : memref<144xf32, #tpu.memory_space<smem>>
    %c75 = arith.constant 75 : index
    %775 = memref.load %arg4[%c75] : memref<144xf32, #tpu.memory_space<smem>>
    %c91 = arith.constant 91 : index
    %776 = memref.load %arg4[%c91] : memref<144xf32, #tpu.memory_space<smem>>
    %c107 = arith.constant 107 : index
    %777 = memref.load %arg4[%c107] : memref<144xf32, #tpu.memory_space<smem>>
    %c123 = arith.constant 123 : index
    %778 = memref.load %arg4[%c123] : memref<144xf32, #tpu.memory_space<smem>>
    %c139 = arith.constant 139 : index
    %779 = memref.load %arg4[%c139] : memref<144xf32, #tpu.memory_space<smem>>
    %780 = vector.broadcast %771 : f32 to vector<16x128xf32>
    %781 = arith.mulf %724, %780 : vector<16x128xf32>
    %782 = arith.addf %677, %781 : vector<16x128xf32>
    %783 = vector.broadcast %772 : f32 to vector<16x128xf32>
    %784 = arith.mulf %726, %783 : vector<16x128xf32>
    %785 = arith.addf %782, %784 : vector<16x128xf32>
    %786 = vector.broadcast %773 : f32 to vector<16x128xf32>
    %787 = arith.mulf %728, %786 : vector<16x128xf32>
    %788 = arith.addf %785, %787 : vector<16x128xf32>
    %789 = vector.broadcast %774 : f32 to vector<16x128xf32>
    %790 = arith.mulf %720, %789 : vector<16x128xf32>
    %791 = arith.addf %788, %790 : vector<16x128xf32>
    %792 = vector.broadcast %775 : f32 to vector<16x128xf32>
    %793 = arith.mulf %718, %792 : vector<16x128xf32>
    %794 = arith.addf %791, %793 : vector<16x128xf32>
    %795 = vector.broadcast %776 : f32 to vector<16x128xf32>
    %796 = arith.mulf %722, %795 : vector<16x128xf32>
    %797 = arith.addf %794, %796 : vector<16x128xf32>
    %798 = vector.broadcast %777 : f32 to vector<16x128xf32>
    %799 = arith.mulf %730, %798 : vector<16x128xf32>
    %800 = arith.addf %797, %799 : vector<16x128xf32>
    %801 = vector.broadcast %778 : f32 to vector<16x128xf32>
    %802 = arith.mulf %732, %801 : vector<16x128xf32>
    %803 = arith.addf %800, %802 : vector<16x128xf32>
    %804 = vector.broadcast %779 : f32 to vector<16x128xf32>
    %805 = arith.mulf %734, %804 : vector<16x128xf32>
    %806 = arith.addf %803, %805 : vector<16x128xf32>
    %c6_66 = arith.constant 6 : index
    %807 = memref.load %arg2[%c6_66] : memref<72xf32, #tpu.memory_space<smem>>
    %c14 = arith.constant 14 : index
    %808 = memref.load %arg2[%c14] : memref<72xf32, #tpu.memory_space<smem>>
    %c22_67 = arith.constant 22 : index
    %809 = memref.load %arg2[%c22_67] : memref<72xf32, #tpu.memory_space<smem>>
    %c30 = arith.constant 30 : index
    %810 = memref.load %arg2[%c30] : memref<72xf32, #tpu.memory_space<smem>>
    %c38_68 = arith.constant 38 : index
    %811 = memref.load %arg2[%c38_68] : memref<72xf32, #tpu.memory_space<smem>>
    %c46 = arith.constant 46 : index
    %812 = memref.load %arg2[%c46] : memref<72xf32, #tpu.memory_space<smem>>
    %c54_69 = arith.constant 54 : index
    %813 = memref.load %arg2[%c54_69] : memref<72xf32, #tpu.memory_space<smem>>
    %c62 = arith.constant 62 : index
    %814 = memref.load %arg2[%c62] : memref<72xf32, #tpu.memory_space<smem>>
    %c70_70 = arith.constant 70 : index
    %815 = memref.load %arg2[%c70_70] : memref<72xf32, #tpu.memory_space<smem>>
    %c6_71 = arith.constant 6 : index
    %816 = memref.load %arg3[%c6_71] : memref<8xf32, #tpu.memory_space<smem>>
    %817 = vector.broadcast %816 : f32 to vector<16x128xf32>
    %818 = vector.broadcast %807 : f32 to vector<16x128xf32>
    %819 = arith.mulf %18, %818 : vector<16x128xf32>
    %820 = arith.addf %817, %819 : vector<16x128xf32>
    %821 = vector.broadcast %808 : f32 to vector<16x128xf32>
    %822 = arith.mulf %20, %821 : vector<16x128xf32>
    %823 = arith.addf %820, %822 : vector<16x128xf32>
    %824 = vector.broadcast %809 : f32 to vector<16x128xf32>
    %825 = arith.mulf %22, %824 : vector<16x128xf32>
    %826 = arith.addf %823, %825 : vector<16x128xf32>
    %827 = vector.broadcast %810 : f32 to vector<16x128xf32>
    %828 = arith.mulf %14, %827 : vector<16x128xf32>
    %829 = arith.addf %826, %828 : vector<16x128xf32>
    %830 = vector.broadcast %811 : f32 to vector<16x128xf32>
    %831 = arith.mulf %12, %830 : vector<16x128xf32>
    %832 = arith.addf %829, %831 : vector<16x128xf32>
    %833 = vector.broadcast %812 : f32 to vector<16x128xf32>
    %834 = arith.mulf %16, %833 : vector<16x128xf32>
    %835 = arith.addf %832, %834 : vector<16x128xf32>
    %836 = vector.broadcast %813 : f32 to vector<16x128xf32>
    %837 = arith.mulf %24, %836 : vector<16x128xf32>
    %838 = arith.addf %835, %837 : vector<16x128xf32>
    %839 = vector.broadcast %814 : f32 to vector<16x128xf32>
    %840 = arith.mulf %26, %839 : vector<16x128xf32>
    %841 = arith.addf %838, %840 : vector<16x128xf32>
    %842 = vector.broadcast %815 : f32 to vector<16x128xf32>
    %843 = arith.mulf %28, %842 : vector<16x128xf32>
    %844 = arith.addf %841, %843 : vector<16x128xf32>
    %cst_72 = arith.constant 0.000000e+00 : f32
    %845 = vector.broadcast %cst_72 : f32 to vector<16x128xf32>
    %846 = arith.maximumf %844, %845 : vector<16x128xf32>
    %847 = arith.mulf %846, %10 : vector<16x128xf32>
    %848 = vector.extract_strided_slice %847 {offsets = [0, 0], sizes = [16, 127], strides = [1, 1]} : vector<16x128xf32> to vector<16x127xf32>
    %849 = tpu.concatenate %1, %848 in 1 : vector<16x1xf32>, vector<16x127xf32> -> vector<16x128xf32>
    %850 = vector.extract_strided_slice %847 {offsets = [0, 1], sizes = [16, 127], strides = [1, 1]} : vector<16x128xf32> to vector<16x127xf32>
    %851 = tpu.concatenate %850, %1 in 1 : vector<16x127xf32>, vector<16x1xf32> -> vector<16x128xf32>
    %852 = vector.extract_strided_slice %849 {offsets = [0, 0], sizes = [15, 128], strides = [1, 1]} : vector<16x128xf32> to vector<15x128xf32>
    %853 = tpu.concatenate %0, %852 in 0 : vector<1x128xf32>, vector<15x128xf32> -> vector<16x128xf32>
    %854 = vector.extract_strided_slice %847 {offsets = [0, 0], sizes = [15, 128], strides = [1, 1]} : vector<16x128xf32> to vector<15x128xf32>
    %855 = tpu.concatenate %0, %854 in 0 : vector<1x128xf32>, vector<15x128xf32> -> vector<16x128xf32>
    %856 = vector.extract_strided_slice %851 {offsets = [0, 0], sizes = [15, 128], strides = [1, 1]} : vector<16x128xf32> to vector<15x128xf32>
    %857 = tpu.concatenate %0, %856 in 0 : vector<1x128xf32>, vector<15x128xf32> -> vector<16x128xf32>
    %858 = vector.extract_strided_slice %849 {offsets = [1, 0], sizes = [15, 128], strides = [1, 1]} : vector<16x128xf32> to vector<15x128xf32>
    %859 = tpu.concatenate %858, %0 in 0 : vector<15x128xf32>, vector<1x128xf32> -> vector<16x128xf32>
    %860 = vector.extract_strided_slice %847 {offsets = [1, 0], sizes = [15, 128], strides = [1, 1]} : vector<16x128xf32> to vector<15x128xf32>
    %861 = tpu.concatenate %860, %0 in 0 : vector<15x128xf32>, vector<1x128xf32> -> vector<16x128xf32>
    %862 = vector.extract_strided_slice %851 {offsets = [1, 0], sizes = [15, 128], strides = [1, 1]} : vector<16x128xf32> to vector<15x128xf32>
    %863 = tpu.concatenate %862, %0 in 0 : vector<15x128xf32>, vector<1x128xf32> -> vector<16x128xf32>
    %c12_73 = arith.constant 12 : index
    %864 = memref.load %arg4[%c12_73] : memref<144xf32, #tpu.memory_space<smem>>
    %c28_74 = arith.constant 28 : index
    %865 = memref.load %arg4[%c28_74] : memref<144xf32, #tpu.memory_space<smem>>
    %c44_75 = arith.constant 44 : index
    %866 = memref.load %arg4[%c44_75] : memref<144xf32, #tpu.memory_space<smem>>
    %c60_76 = arith.constant 60 : index
    %867 = memref.load %arg4[%c60_76] : memref<144xf32, #tpu.memory_space<smem>>
    %c76 = arith.constant 76 : index
    %868 = memref.load %arg4[%c76] : memref<144xf32, #tpu.memory_space<smem>>
    %c92 = arith.constant 92 : index
    %869 = memref.load %arg4[%c92] : memref<144xf32, #tpu.memory_space<smem>>
    %c108 = arith.constant 108 : index
    %870 = memref.load %arg4[%c108] : memref<144xf32, #tpu.memory_space<smem>>
    %c124 = arith.constant 124 : index
    %871 = memref.load %arg4[%c124] : memref<144xf32, #tpu.memory_space<smem>>
    %c140 = arith.constant 140 : index
    %872 = memref.load %arg4[%c140] : memref<144xf32, #tpu.memory_space<smem>>
    %873 = vector.broadcast %864 : f32 to vector<16x128xf32>
    %874 = arith.mulf %853, %873 : vector<16x128xf32>
    %875 = arith.addf %770, %874 : vector<16x128xf32>
    %876 = vector.broadcast %865 : f32 to vector<16x128xf32>
    %877 = arith.mulf %855, %876 : vector<16x128xf32>
    %878 = arith.addf %875, %877 : vector<16x128xf32>
    %879 = vector.broadcast %866 : f32 to vector<16x128xf32>
    %880 = arith.mulf %857, %879 : vector<16x128xf32>
    %881 = arith.addf %878, %880 : vector<16x128xf32>
    %882 = vector.broadcast %867 : f32 to vector<16x128xf32>
    %883 = arith.mulf %849, %882 : vector<16x128xf32>
    %884 = arith.addf %881, %883 : vector<16x128xf32>
    %885 = vector.broadcast %868 : f32 to vector<16x128xf32>
    %886 = arith.mulf %847, %885 : vector<16x128xf32>
    %887 = arith.addf %884, %886 : vector<16x128xf32>
    %888 = vector.broadcast %869 : f32 to vector<16x128xf32>
    %889 = arith.mulf %851, %888 : vector<16x128xf32>
    %890 = arith.addf %887, %889 : vector<16x128xf32>
    %891 = vector.broadcast %870 : f32 to vector<16x128xf32>
    %892 = arith.mulf %859, %891 : vector<16x128xf32>
    %893 = arith.addf %890, %892 : vector<16x128xf32>
    %894 = vector.broadcast %871 : f32 to vector<16x128xf32>
    %895 = arith.mulf %861, %894 : vector<16x128xf32>
    %896 = arith.addf %893, %895 : vector<16x128xf32>
    %897 = vector.broadcast %872 : f32 to vector<16x128xf32>
    %898 = arith.mulf %863, %897 : vector<16x128xf32>
    %899 = arith.addf %896, %898 : vector<16x128xf32>
    %c13_77 = arith.constant 13 : index
    %900 = memref.load %arg4[%c13_77] : memref<144xf32, #tpu.memory_space<smem>>
    %c29_78 = arith.constant 29 : index
    %901 = memref.load %arg4[%c29_78] : memref<144xf32, #tpu.memory_space<smem>>
    %c45_79 = arith.constant 45 : index
    %902 = memref.load %arg4[%c45_79] : memref<144xf32, #tpu.memory_space<smem>>
    %c61_80 = arith.constant 61 : index
    %903 = memref.load %arg4[%c61_80] : memref<144xf32, #tpu.memory_space<smem>>
    %c77 = arith.constant 77 : index
    %904 = memref.load %arg4[%c77] : memref<144xf32, #tpu.memory_space<smem>>
    %c93 = arith.constant 93 : index
    %905 = memref.load %arg4[%c93] : memref<144xf32, #tpu.memory_space<smem>>
    %c109 = arith.constant 109 : index
    %906 = memref.load %arg4[%c109] : memref<144xf32, #tpu.memory_space<smem>>
    %c125 = arith.constant 125 : index
    %907 = memref.load %arg4[%c125] : memref<144xf32, #tpu.memory_space<smem>>
    %c141 = arith.constant 141 : index
    %908 = memref.load %arg4[%c141] : memref<144xf32, #tpu.memory_space<smem>>
    %909 = vector.broadcast %900 : f32 to vector<16x128xf32>
    %910 = arith.mulf %853, %909 : vector<16x128xf32>
    %911 = arith.addf %806, %910 : vector<16x128xf32>
    %912 = vector.broadcast %901 : f32 to vector<16x128xf32>
    %913 = arith.mulf %855, %912 : vector<16x128xf32>
    %914 = arith.addf %911, %913 : vector<16x128xf32>
    %915 = vector.broadcast %902 : f32 to vector<16x128xf32>
    %916 = arith.mulf %857, %915 : vector<16x128xf32>
    %917 = arith.addf %914, %916 : vector<16x128xf32>
    %918 = vector.broadcast %903 : f32 to vector<16x128xf32>
    %919 = arith.mulf %849, %918 : vector<16x128xf32>
    %920 = arith.addf %917, %919 : vector<16x128xf32>
    %921 = vector.broadcast %904 : f32 to vector<16x128xf32>
    %922 = arith.mulf %847, %921 : vector<16x128xf32>
    %923 = arith.addf %920, %922 : vector<16x128xf32>
    %924 = vector.broadcast %905 : f32 to vector<16x128xf32>
    %925 = arith.mulf %851, %924 : vector<16x128xf32>
    %926 = arith.addf %923, %925 : vector<16x128xf32>
    %927 = vector.broadcast %906 : f32 to vector<16x128xf32>
    %928 = arith.mulf %859, %927 : vector<16x128xf32>
    %929 = arith.addf %926, %928 : vector<16x128xf32>
    %930 = vector.broadcast %907 : f32 to vector<16x128xf32>
    %931 = arith.mulf %861, %930 : vector<16x128xf32>
    %932 = arith.addf %929, %931 : vector<16x128xf32>
    %933 = vector.broadcast %908 : f32 to vector<16x128xf32>
    %934 = arith.mulf %863, %933 : vector<16x128xf32>
    %935 = arith.addf %932, %934 : vector<16x128xf32>
    %c7_81 = arith.constant 7 : index
    %936 = memref.load %arg2[%c7_81] : memref<72xf32, #tpu.memory_space<smem>>
    %c15 = arith.constant 15 : index
    %937 = memref.load %arg2[%c15] : memref<72xf32, #tpu.memory_space<smem>>
    %c23_82 = arith.constant 23 : index
    %938 = memref.load %arg2[%c23_82] : memref<72xf32, #tpu.memory_space<smem>>
    %c31 = arith.constant 31 : index
    %939 = memref.load %arg2[%c31] : memref<72xf32, #tpu.memory_space<smem>>
    %c39_83 = arith.constant 39 : index
    %940 = memref.load %arg2[%c39_83] : memref<72xf32, #tpu.memory_space<smem>>
    %c47 = arith.constant 47 : index
    %941 = memref.load %arg2[%c47] : memref<72xf32, #tpu.memory_space<smem>>
    %c55_84 = arith.constant 55 : index
    %942 = memref.load %arg2[%c55_84] : memref<72xf32, #tpu.memory_space<smem>>
    %c63 = arith.constant 63 : index
    %943 = memref.load %arg2[%c63] : memref<72xf32, #tpu.memory_space<smem>>
    %c71_85 = arith.constant 71 : index
    %944 = memref.load %arg2[%c71_85] : memref<72xf32, #tpu.memory_space<smem>>
    %c7_86 = arith.constant 7 : index
    %945 = memref.load %arg3[%c7_86] : memref<8xf32, #tpu.memory_space<smem>>
    %946 = vector.broadcast %945 : f32 to vector<16x128xf32>
    %947 = vector.broadcast %936 : f32 to vector<16x128xf32>
    %948 = arith.mulf %18, %947 : vector<16x128xf32>
    %949 = arith.addf %946, %948 : vector<16x128xf32>
    %950 = vector.broadcast %937 : f32 to vector<16x128xf32>
    %951 = arith.mulf %20, %950 : vector<16x128xf32>
    %952 = arith.addf %949, %951 : vector<16x128xf32>
    %953 = vector.broadcast %938 : f32 to vector<16x128xf32>
    %954 = arith.mulf %22, %953 : vector<16x128xf32>
    %955 = arith.addf %952, %954 : vector<16x128xf32>
    %956 = vector.broadcast %939 : f32 to vector<16x128xf32>
    %957 = arith.mulf %14, %956 : vector<16x128xf32>
    %958 = arith.addf %955, %957 : vector<16x128xf32>
    %959 = vector.broadcast %940 : f32 to vector<16x128xf32>
    %960 = arith.mulf %12, %959 : vector<16x128xf32>
    %961 = arith.addf %958, %960 : vector<16x128xf32>
    %962 = vector.broadcast %941 : f32 to vector<16x128xf32>
    %963 = arith.mulf %16, %962 : vector<16x128xf32>
    %964 = arith.addf %961, %963 : vector<16x128xf32>
    %965 = vector.broadcast %942 : f32 to vector<16x128xf32>
    %966 = arith.mulf %24, %965 : vector<16x128xf32>
    %967 = arith.addf %964, %966 : vector<16x128xf32>
    %968 = vector.broadcast %943 : f32 to vector<16x128xf32>
    %969 = arith.mulf %26, %968 : vector<16x128xf32>
    %970 = arith.addf %967, %969 : vector<16x128xf32>
    %971 = vector.broadcast %944 : f32 to vector<16x128xf32>
    %972 = arith.mulf %28, %971 : vector<16x128xf32>
    %973 = arith.addf %970, %972 : vector<16x128xf32>
    %cst_87 = arith.constant 0.000000e+00 : f32
    %974 = vector.broadcast %cst_87 : f32 to vector<16x128xf32>
    %975 = arith.maximumf %973, %974 : vector<16x128xf32>
    %976 = arith.mulf %975, %10 : vector<16x128xf32>
    %977 = vector.extract_strided_slice %976 {offsets = [0, 0], sizes = [16, 127], strides = [1, 1]} : vector<16x128xf32> to vector<16x127xf32>
    %978 = tpu.concatenate %1, %977 in 1 : vector<16x1xf32>, vector<16x127xf32> -> vector<16x128xf32>
    %979 = vector.extract_strided_slice %976 {offsets = [0, 1], sizes = [16, 127], strides = [1, 1]} : vector<16x128xf32> to vector<16x127xf32>
    %980 = tpu.concatenate %979, %1 in 1 : vector<16x127xf32>, vector<16x1xf32> -> vector<16x128xf32>
    %981 = vector.extract_strided_slice %978 {offsets = [0, 0], sizes = [15, 128], strides = [1, 1]} : vector<16x128xf32> to vector<15x128xf32>
    %982 = tpu.concatenate %0, %981 in 0 : vector<1x128xf32>, vector<15x128xf32> -> vector<16x128xf32>
    %983 = vector.extract_strided_slice %976 {offsets = [0, 0], sizes = [15, 128], strides = [1, 1]} : vector<16x128xf32> to vector<15x128xf32>
    %984 = tpu.concatenate %0, %983 in 0 : vector<1x128xf32>, vector<15x128xf32> -> vector<16x128xf32>
    %985 = vector.extract_strided_slice %980 {offsets = [0, 0], sizes = [15, 128], strides = [1, 1]} : vector<16x128xf32> to vector<15x128xf32>
    %986 = tpu.concatenate %0, %985 in 0 : vector<1x128xf32>, vector<15x128xf32> -> vector<16x128xf32>
    %987 = vector.extract_strided_slice %978 {offsets = [1, 0], sizes = [15, 128], strides = [1, 1]} : vector<16x128xf32> to vector<15x128xf32>
    %988 = tpu.concatenate %987, %0 in 0 : vector<15x128xf32>, vector<1x128xf32> -> vector<16x128xf32>
    %989 = vector.extract_strided_slice %976 {offsets = [1, 0], sizes = [15, 128], strides = [1, 1]} : vector<16x128xf32> to vector<15x128xf32>
    %990 = tpu.concatenate %989, %0 in 0 : vector<15x128xf32>, vector<1x128xf32> -> vector<16x128xf32>
    %991 = vector.extract_strided_slice %980 {offsets = [1, 0], sizes = [15, 128], strides = [1, 1]} : vector<16x128xf32> to vector<15x128xf32>
    %992 = tpu.concatenate %991, %0 in 0 : vector<15x128xf32>, vector<1x128xf32> -> vector<16x128xf32>
    %c14_88 = arith.constant 14 : index
    %993 = memref.load %arg4[%c14_88] : memref<144xf32, #tpu.memory_space<smem>>
    %c30_89 = arith.constant 30 : index
    %994 = memref.load %arg4[%c30_89] : memref<144xf32, #tpu.memory_space<smem>>
    %c46_90 = arith.constant 46 : index
    %995 = memref.load %arg4[%c46_90] : memref<144xf32, #tpu.memory_space<smem>>
    %c62_91 = arith.constant 62 : index
    %996 = memref.load %arg4[%c62_91] : memref<144xf32, #tpu.memory_space<smem>>
    %c78 = arith.constant 78 : index
    %997 = memref.load %arg4[%c78] : memref<144xf32, #tpu.memory_space<smem>>
    %c94 = arith.constant 94 : index
    %998 = memref.load %arg4[%c94] : memref<144xf32, #tpu.memory_space<smem>>
    %c110 = arith.constant 110 : index
    %999 = memref.load %arg4[%c110] : memref<144xf32, #tpu.memory_space<smem>>
    %c126 = arith.constant 126 : index
    %1000 = memref.load %arg4[%c126] : memref<144xf32, #tpu.memory_space<smem>>
    %c142 = arith.constant 142 : index
    %1001 = memref.load %arg4[%c142] : memref<144xf32, #tpu.memory_space<smem>>
    %1002 = vector.broadcast %993 : f32 to vector<16x128xf32>
    %1003 = arith.mulf %982, %1002 : vector<16x128xf32>
    %1004 = arith.addf %899, %1003 : vector<16x128xf32>
    %1005 = vector.broadcast %994 : f32 to vector<16x128xf32>
    %1006 = arith.mulf %984, %1005 : vector<16x128xf32>
    %1007 = arith.addf %1004, %1006 : vector<16x128xf32>
    %1008 = vector.broadcast %995 : f32 to vector<16x128xf32>
    %1009 = arith.mulf %986, %1008 : vector<16x128xf32>
    %1010 = arith.addf %1007, %1009 : vector<16x128xf32>
    %1011 = vector.broadcast %996 : f32 to vector<16x128xf32>
    %1012 = arith.mulf %978, %1011 : vector<16x128xf32>
    %1013 = arith.addf %1010, %1012 : vector<16x128xf32>
    %1014 = vector.broadcast %997 : f32 to vector<16x128xf32>
    %1015 = arith.mulf %976, %1014 : vector<16x128xf32>
    %1016 = arith.addf %1013, %1015 : vector<16x128xf32>
    %1017 = vector.broadcast %998 : f32 to vector<16x128xf32>
    %1018 = arith.mulf %980, %1017 : vector<16x128xf32>
    %1019 = arith.addf %1016, %1018 : vector<16x128xf32>
    %1020 = vector.broadcast %999 : f32 to vector<16x128xf32>
    %1021 = arith.mulf %988, %1020 : vector<16x128xf32>
    %1022 = arith.addf %1019, %1021 : vector<16x128xf32>
    %1023 = vector.broadcast %1000 : f32 to vector<16x128xf32>
    %1024 = arith.mulf %990, %1023 : vector<16x128xf32>
    %1025 = arith.addf %1022, %1024 : vector<16x128xf32>
    %1026 = vector.broadcast %1001 : f32 to vector<16x128xf32>
    %1027 = arith.mulf %992, %1026 : vector<16x128xf32>
    %1028 = arith.addf %1025, %1027 : vector<16x128xf32>
    %c15_92 = arith.constant 15 : index
    %1029 = memref.load %arg4[%c15_92] : memref<144xf32, #tpu.memory_space<smem>>
    %c31_93 = arith.constant 31 : index
    %1030 = memref.load %arg4[%c31_93] : memref<144xf32, #tpu.memory_space<smem>>
    %c47_94 = arith.constant 47 : index
    %1031 = memref.load %arg4[%c47_94] : memref<144xf32, #tpu.memory_space<smem>>
    %c63_95 = arith.constant 63 : index
    %1032 = memref.load %arg4[%c63_95] : memref<144xf32, #tpu.memory_space<smem>>
    %c79 = arith.constant 79 : index
    %1033 = memref.load %arg4[%c79] : memref<144xf32, #tpu.memory_space<smem>>
    %c95 = arith.constant 95 : index
    %1034 = memref.load %arg4[%c95] : memref<144xf32, #tpu.memory_space<smem>>
    %c111 = arith.constant 111 : index
    %1035 = memref.load %arg4[%c111] : memref<144xf32, #tpu.memory_space<smem>>
    %c127 = arith.constant 127 : index
    %1036 = memref.load %arg4[%c127] : memref<144xf32, #tpu.memory_space<smem>>
    %c143 = arith.constant 143 : index
    %1037 = memref.load %arg4[%c143] : memref<144xf32, #tpu.memory_space<smem>>
    %1038 = vector.broadcast %1029 : f32 to vector<16x128xf32>
    %1039 = arith.mulf %982, %1038 : vector<16x128xf32>
    %1040 = arith.addf %935, %1039 : vector<16x128xf32>
    %1041 = vector.broadcast %1030 : f32 to vector<16x128xf32>
    %1042 = arith.mulf %984, %1041 : vector<16x128xf32>
    %1043 = arith.addf %1040, %1042 : vector<16x128xf32>
    %1044 = vector.broadcast %1031 : f32 to vector<16x128xf32>
    %1045 = arith.mulf %986, %1044 : vector<16x128xf32>
    %1046 = arith.addf %1043, %1045 : vector<16x128xf32>
    %1047 = vector.broadcast %1032 : f32 to vector<16x128xf32>
    %1048 = arith.mulf %978, %1047 : vector<16x128xf32>
    %1049 = arith.addf %1046, %1048 : vector<16x128xf32>
    %1050 = vector.broadcast %1033 : f32 to vector<16x128xf32>
    %1051 = arith.mulf %976, %1050 : vector<16x128xf32>
    %1052 = arith.addf %1049, %1051 : vector<16x128xf32>
    %1053 = vector.broadcast %1034 : f32 to vector<16x128xf32>
    %1054 = arith.mulf %980, %1053 : vector<16x128xf32>
    %1055 = arith.addf %1052, %1054 : vector<16x128xf32>
    %1056 = vector.broadcast %1035 : f32 to vector<16x128xf32>
    %1057 = arith.mulf %988, %1056 : vector<16x128xf32>
    %1058 = arith.addf %1055, %1057 : vector<16x128xf32>
    %1059 = vector.broadcast %1036 : f32 to vector<16x128xf32>
    %1060 = arith.mulf %990, %1059 : vector<16x128xf32>
    %1061 = arith.addf %1058, %1060 : vector<16x128xf32>
    %1062 = vector.broadcast %1037 : f32 to vector<16x128xf32>
    %1063 = arith.mulf %992, %1062 : vector<16x128xf32>
    %1064 = arith.addf %1061, %1063 : vector<16x128xf32>
    %1065 = math.tanh %1028 : vector<16x128xf32>
    %c0_96 = arith.constant 0 : index
    %c0_97 = arith.constant 0 : index
    %c0_98 = arith.constant 0 : index
    %c0_99 = arith.constant 0 : index
    %1066 = vector.load %arg6[%c0_96, %c0_97, %c0_98, %c0_99] : memref<1x2x16x128xf32, #tpu.memory_space<vmem>>, vector<1x1x16x128xf32>
    %1067 = vector.shape_cast %1066 : vector<1x1x16x128xf32> to vector<16x128xf32>
    %1068 = vector.shape_cast %1065 : vector<16x128xf32> to vector<1x1x16x128xf32>
    tpu.vector_store %arg6[%c0_96, %c0_97, %c0_98, %c0_99], %1068 {strides = array<i32>} : memref<1x2x16x128xf32, #tpu.memory_space<vmem>>, vector<1x1x16x128xf32>,
    %1069 = math.tanh %1064 : vector<16x128xf32>
    %c0_100 = arith.constant 0 : index
    %c1_101 = arith.constant 1 : index
    %c0_102 = arith.constant 0 : index
    %c0_103 = arith.constant 0 : index
    %1070 = vector.load %arg6[%c0_100, %c1_101, %c0_102, %c0_103] : memref<1x2x16x128xf32, #tpu.memory_space<vmem>>, vector<1x1x16x128xf32>
    %1071 = vector.shape_cast %1070 : vector<1x1x16x128xf32> to vector<16x128xf32>
    %1072 = vector.shape_cast %1069 : vector<16x128xf32> to vector<1x1x16x128xf32>
    tpu.vector_store %arg6[%c0_100, %c1_101, %c0_102, %c0_103], %1072 {strides = array<i32>} : memref<1x2x16x128xf32, #tpu.memory_space<vmem>>, vector<1x1x16x128xf32>,
    return
  }
  func.func @transform_0(%arg0: i32) -> (i32, i32, i32, i32) {
    %c0_i32 = arith.constant 0 : i32
    %c0_i32_0 = arith.constant 0 : i32
    %c0_i32_1 = arith.constant 0 : i32
    %c0_i32_2 = arith.constant 0 : i32
    return %arg0, %c0_i32, %c0_i32_0, %c0_i32_1 : i32, i32, i32, i32
  }
  func.func @transform_1(%arg0: i32) -> i32 {
    %c0_i32 = arith.constant 0 : i32
    %c0_i32_0 = arith.constant 0 : i32
    return %c0_i32 : i32
  }
  func.func @transform_2(%arg0: i32) -> i32 {
    %c0_i32 = arith.constant 0 : i32
    %c0_i32_0 = arith.constant 0 : i32
    return %c0_i32 : i32
  }
  func.func @transform_3(%arg0: i32) -> i32 {
    %c0_i32 = arith.constant 0 : i32
    %c0_i32_0 = arith.constant 0 : i32
    return %c0_i32 : i32
  }
  func.func @transform_4(%arg0: i32) -> i32 {
    %c0_i32 = arith.constant 0 : i32
    %c0_i32_0 = arith.constant 0 : i32
    return %c0_i32 : i32
  }
  func.func @transform_5(%arg0: i32) -> (i32, i32, i32, i32) {
    %c0_i32 = arith.constant 0 : i32
    %c0_i32_0 = arith.constant 0 : i32
    %c0_i32_1 = arith.constant 0 : i32
    %c0_i32_2 = arith.constant 0 : i32
    return %arg0, %c0_i32, %c0_i32_0, %c0_i32_1 : i32, i32, i32, i32
  }
}

</mosaic_0001>

<llo_original>
// kernel: tpu_custom_call.1
$region0: #{tpu_custom_call.1}
  #allocation0 [shape = 'u32[]', space=smem, size = 0x4, offset = 0x4, fixed_abs, tag = 'smem constant byte address 0x4 - core index']
  #allocation1 [shape = 'u32[144,128]{1,0:T(1,128)}', space=vmem, size = 0x12000, scoped, tag = 'internal scratch']
  %s0 = inlined_call_operand.hbm [shape: f32[2,1,16,128], index: 0, kind: input, shape index: {}]
  %s1 = inlined_call_operand.vmem [shape: f32[72], index: 1, kind: input, shape index: {}]
  %s2 = inlined_call_operand.hbm [shape: f32[8], index: 2, kind: input, shape index: {}]
  %s3 = inlined_call_operand.vmem [shape: f32[144], index: 3, kind: input, shape index: {}]
  %s4 = inlined_call_operand.vmem [shape: f32[2], index: 4, kind: input, shape index: {}]
  %s5 = inlined_call_operand.hbm [shape: f32[2,2,16,128], index: 5, kind: output, shape index: {}]
  %s6 = sld [smem:[#allocation0]]
  $region73: #{tpu_custom_call.1} parent=0
    _
  %s8 = ssub.s32 1, %s6
  %s9 = scalar_select 0, %s8, %s6
  $region1: #{tpu_custom_call.1} parent=0
    #allocation2 [shape = 'u8[16384]{0}', space=vmem, size = 0x4000, scoped, tag = 'input window, operand 0']
    #allocation3 [shape = 's32[2]{0}', space=sflag, size = 0x8, scoped, tag = 'scoped memory for tpu_custom_call.1']
    #allocation4 [shape = 's32[2]{0}', space=sflag, size = 0x8, scoped, tag = 'scoped memory for tpu_custom_call.1']
    #allocation5 [shape = 's32[2]{0}', space=sflag, size = 0x8, scoped, tag = 'scoped memory for tpu_custom_call.1']
    #allocation6 [shape = 's32[2]{0}', space=sflag, size = 0x8, scoped, tag = 'scoped memory for tpu_custom_call.1']
    #allocation7 [shape = 'u8[512]{0}', space=smem, size = 0x200, scoped, tag = 'input window, operand 1, single buffered']
    #allocation8 [shape = 'u8[512]{0}', space=smem, size = 0x200, scoped, tag = 'input window, operand 2, single buffered']
    #allocation9 [shape = 'u8[1024]{0}', space=smem, size = 0x400, scoped, tag = 'input window, operand 3, single buffered']
    #allocation10 [shape = 's32[1]{0}', space=sflag, size = 0x4, scoped, tag = 'scoped memory for tpu_custom_call.1']
    #allocation11 [shape = 'u8[512]{0}', space=smem, size = 0x200, scoped, tag = 'input window, operand 4, single buffered']
    #allocation12 [shape = 'u8[32768]{0}', space=vmem, size = 0x8000, scoped, tag = 'output window, operand 0']
    %10 = vsyncpa [#allocation3], 0
    %s11 = scalar_lea.sflag [#allocation3], 1
    %12 = vsyncpa %s11, 0
    %13 = vsyncpa [#allocation6], 0
    %14 = vsyncpa [#allocation5], 0
    %15 = vsyncpa [#allocation10], 0
    %16 = vsyncpa [#allocation4], 0
    %s17 = scalar_lea.sflag [#allocation4], 1
    %18 = vsyncpa %s17, 0
    loop: start=0, step=1, limit=4
    $region2: #{tpu_custom_call.1} parent=1 // loop_pre_header
      _
    $region3: #{tpu_custom_call.1} parent=1 // loop_header
      %s20 = sphi 0, %s24
      %p21 = scmp.ge.s32.totalorder %s20, 4
      %s30 = sphi 0, %s32
      %s33 = sphi 0, %s30
      %s34 = sphi 0, %s33
      %s50 = sphi 0, %s34
      %s54 = sphi 0, %s54
      %s56 = sphi 0, %s54
      %s57 = sphi 0, %s56
      %s71 = sphi 0, %s57
      %s75 = sphi 0, %s75
      %s77 = sphi 0, %s75
      %s78 = sphi 0, %s77
      %s92 = sphi 0, %s78
      %s96 = sphi 0, %s96
      %s98 = sphi 0, %s96
      %s99 = sphi 0, %s98
      %s113 = sphi 0, %s99
      %s117 = sphi 0, %s117
      %s119 = sphi 0, %s117
      %s120 = sphi 0, %s119
      %s134 = sphi 0, %s120
      %s140 = sphi 0, %s142
      %s143 = sphi 0, %s140
      %s144 = sphi 0, %s143
      %s160 = sphi 0, %s144
    $region4: #{tpu_custom_call.1} parent=1 // loop_header_branch
      %23 = sbr.rel (%p21) target = $region8
    $region5: #{tpu_custom_call.1} parent=1 // loop_body
      %s25 = ssub.s32 %s20, 1
      %s26 = ssub.s32 %s20, 2
      %s27 = sadd.s32 %s20, 1
      %s28 = ssub.s32 %s20, %s27
      %p29 = scmp.eq.s32.totalorder %s28, 0
      %s31 = sadd.s32 %s30, 1
      %s32 = scalar_select %p29, %s30, %s31
      %p35 = pneg %p29
      %p36 = scmp.eq.s32.totalorder %s20, 1
      %p37 = por %p35, %p36
      %p38 = scmp.ne.s32.totalorder %s30, %s33
      %p39 = scmp.eq.s32.totalorder %s20, 0
      %p40 = por %p38, %p39
      %p41 = scmp.ne.s32.totalorder %s30, %s33
      %p42 = scmp.eq.s32.totalorder %s25, 1
      %p43 = por %p41, %p42
      %p44 = scmp.ne.s32.totalorder %s33, %s34
      %p45 = scmp.eq.s32.totalorder %s25, 0
      %p46 = por %p44, %p45
      %p47 = scmp.ne.s32.totalorder %s33, %s34
      %p48 = scmp.eq.s32.totalorder %s26, 1
      %p49 = por %p47, %p48
      %p51 = scmp.ne.s32.totalorder %s34, %s50
      %p52 = scmp.eq.s32.totalorder %s26, 0
      %p53 = por %p51, %p52
      %s55 = sadd.s32 %s54, 1
      %p58 = scmp.eq.s32.totalorder %s20, 1
      %p59 = scmp.ne.s32.totalorder %s54, %s56
      %p60 = scmp.eq.s32.totalorder %s20, 0
      %p61 = por %p59, %p60
      %p62 = scmp.ne.s32.totalorder %s54, %s56
      %p63 = scmp.eq.s32.totalorder %s25, 1
      %p64 = por %p62, %p63
      %p65 = scmp.ne.s32.totalorder %s56, %s57
      %p66 = scmp.eq.s32.totalorder %s25, 0
      %p67 = por %p65, %p66
      %p68 = scmp.ne.s32.totalorder %s56, %s57
      %p69 = scmp.eq.s32.totalorder %s26, 1
      %p70 = por %p68, %p69
      %p72 = scmp.ne.s32.totalorder %s57, %s71
      %p73 = scmp.eq.s32.totalorder %s26, 0
      %p74 = por %p72, %p73
      %s76 = sadd.s32 %s75, 1
      %p79 = scmp.eq.s32.totalorder %s20, 1
      %p80 = scmp.ne.s32.totalorder %s75, %s77
      %p81 = scmp.eq.s32.totalorder %s20, 0
      %p82 = por %p80, %p81
      %p83 = scmp.ne.s32.totalorder %s75, %s77
      %p84 = scmp.eq.s32.totalorder %s25, 1
      %p85 = por %p83, %p84
      %p86 = scmp.ne.s32.totalorder %s77, %s78
      %p87 = scmp.eq.s32.totalorder %s25, 0
      %p88 = por %p86, %p87
      %p89 = scmp.ne.s32.totalorder %s77, %s78
      %p90 = scmp.eq.s32.totalorder %s26, 1
      %p91 = por %p89, %p90
      %p93 = scmp.ne.s32.totalorder %s78, %s92
      %p94 = scmp.eq.s32.totalorder %s26, 0
      %p95 = por %p93, %p94
      %s97 = sadd.s32 %s96, 1
      %p100 = scmp.eq.s32.totalorder %s20, 1
      %p101 = scmp.ne.s32.totalorder %s96, %s98
      %p102 = scmp.eq.s32.totalorder %s20, 0
      %p103 = por %p101, %p102
      %p104 = scmp.ne.s32.totalorder %s96, %s98
      %p105 = scmp.eq.s32.totalorder %s25, 1
      %p106 = por %p104, %p105
      %p107 = scmp.ne.s32.totalorder %s98, %s99
      %p108 = scmp.eq.s32.totalorder %s25, 0
      %p109 = por %p107, %p108
      %p110 = scmp.ne.s32.totalorder %s98, %s99
      %p111 = scmp.eq.s32.totalorder %s26, 1
      %p112 = por %p110, %p111
      %p114 = scmp.ne.s32.totalorder %s99, %s113
      %p115 = scmp.eq.s32.totalorder %s26, 0
      %p116 = por %p114, %p115
      %s118 = sadd.s32 %s117, 1
      %p121 = scmp.eq.s32.totalorder %s20, 1
      %p122 = scmp.ne.s32.totalorder %s117, %s119
      %p123 = scmp.eq.s32.totalorder %s20, 0
      %p124 = por %p122, %p123
      %p125 = scmp.ne.s32.totalorder %s117, %s119
      %p126 = scmp.eq.s32.totalorder %s25, 1
      %p127 = por %p125, %p126
      %p128 = scmp.ne.s32.totalorder %s119, %s120
      %p129 = scmp.eq.s32.totalorder %s25, 0
      %p130 = por %p128, %p129
      %p131 = scmp.ne.s32.totalorder %s119, %s120
      %p132 = scmp.eq.s32.totalorder %s26, 1
      %p133 = por %p131, %p132
      %p135 = scmp.ne.s32.totalorder %s120, %s134
      %p136 = scmp.eq.s32.totalorder %s26, 0
      %p137 = por %p135, %p136
      %s138 = ssub.s32 %s20, %s27
      %p139 = scmp.eq.s32.totalorder %s138, 0
      %s141 = sadd.s32 %s140, 1
      %s142 = scalar_select %p139, %s140, %s141
      %p145 = pneg %p139
      %p146 = scmp.eq.s32.totalorder %s20, 1
      %p147 = por %p145, %p146
      %p148 = scmp.ne.s32.totalorder %s140, %s143
      %p149 = scmp.eq.s32.totalorder %s20, 0
      %p150 = por %p148, %p149
      %p151 = scmp.ne.s32.totalorder %s140, %s143
      %p152 = scmp.eq.s32.totalorder %s25, 1
      %p153 = por %p151, %p152
      %p154 = scmp.ne.s32.totalorder %s143, %s144
      %p155 = scmp.eq.s32.totalorder %s25, 0
      %p156 = por %p154, %p155
      %p157 = scmp.ne.s32.totalorder %s143, %s144
      %p158 = scmp.eq.s32.totalorder %s26, 1
      %p159 = por %p157, %p158
      %p161 = scmp.ne.s32.totalorder %s144, %s160
      %p162 = scmp.eq.s32.totalorder %s26, 0
      %p163 = por %p161, %p162
      %p164 = scmp.le.s32.totalorder 1, %s20
      %p165 = scmp.lt.s32.totalorder %s20, 3
      %p166 = pnand %p164, %p165
      %p167 = pneg %p166
      // Predicated region
      $region9: #{tpu_custom_call.1} parent=5 // pred_check
        _
      $region10: #{tpu_custom_call.1} parent=5 // pred_check_branch
        %169 = sbr.rel (%p166) target = $region12
      $region11: #{tpu_custom_call.1} parent=5 // pred_region
        %s170 = ssub.s32 %s20, 1
        // Predicated region
        $region13: #{tpu_custom_call.1} parent=11 // pred_check
          %p171 = pneg %p67
        $region14: #{tpu_custom_call.1} parent=11 // pred_check_branch
          %173 = sbr.rel (%p171) target = $region16
        $region15: #{tpu_custom_call.1} parent=11 // pred_region
          %s175 = ssub.s32 16, 16
          %176 = vsyncadd [#allocation6], %s175
          %s178 = sshll.u32 %s1, 4
          %s179 = int_to_ptr.vmem [resolvable:$true] %s178
          %181 = dma.vmem_to_smem %s179, 16, [#allocation7], [#allocation6]
        $region16: #{tpu_custom_call.1} parent=11 // pred_fallthru
          _
        // Predicated region
        $region17: #{tpu_custom_call.1} parent=11 // pred_check
          %p182 = pneg %p88
        $region18: #{tpu_custom_call.1} parent=11 // pred_check_branch
          %184 = sbr.rel (%p182) target = $region20
        $region19: #{tpu_custom_call.1} parent=11 // pred_region
          %s186 = ssub.s32 16, 16
          %187 = vsyncadd [#allocation5], %s186
          %190 = dma.hbm_to_smem %s2, 16, [#allocation8], [#allocation5]
        $region20: #{tpu_custom_call.1} parent=11 // pred_fallthru
          _
        // Predicated region
        $region21: #{tpu_custom_call.1} parent=11 // pred_check
          %p191 = pneg %p109
        $region22: #{tpu_custom_call.1} parent=11 // pred_check_branch
          %193 = sbr.rel (%p191) target = $region24
        $region23: #{tpu_custom_call.1} parent=11 // pred_region
          %s195 = ssub.s32 32, 32
          %196 = vsyncadd [#allocation10], %s195
          %s198 = sshll.u32 %s3, 4
          %s199 = int_to_ptr.vmem [resolvable:$true] %s198
          %201 = dma.vmem_to_smem %s199, 32, [#allocation9], [#allocation10]
        $region24: #{tpu_custom_call.1} parent=11 // pred_fallthru
          _
        // Predicated region
        $region25: #{tpu_custom_call.1} parent=11 // pred_check
          %p202 = pneg %p130
        $region26: #{tpu_custom_call.1} parent=11 // pred_check_branch
          %204 = sbr.rel (%p202) target = $region28
        $region27: #{tpu_custom_call.1} parent=11 // pred_region
          %s206 = ssub.s32 16, 16
          %207 = vsyncadd [#allocation10], %s206
          %s209 = sshll.u32 %s4, 4
          %s210 = int_to_ptr.vmem [resolvable:$true] %s209
          %212 = dma.vmem_to_smem %s210, 16, [#allocation11], [#allocation10]
        $region28: #{tpu_custom_call.1} parent=11 // pred_fallthru
          _
      $region12: #{tpu_custom_call.1} parent=5 // pred_fallthru
        _
      %p213 = scmp.lt.s32.totalorder %s20, 2
      // Predicated region
      $region29: #{tpu_custom_call.1} parent=5 // pred_check
        %p214 = pneg %p213
      $region30: #{tpu_custom_call.1} parent=5 // pred_check_branch
        %216 = sbr.rel (%p214) target = $region32
      $region31: #{tpu_custom_call.1} parent=5 // pred_region
        // Predicated region
        $region33: #{tpu_custom_call.1} parent=31 // pred_check
          %p217 = pneg %p40
        $region34: #{tpu_custom_call.1} parent=31 // pred_check_branch
          %219 = sbr.rel (%p217) target = $region36
        $region35: #{tpu_custom_call.1} parent=31 // pred_region
          %s220 = sand.u32 %s30, 1
          %s221 = scalar_lea.sflag [#allocation3], %s220
          %s222 = sand.u32 %s30, 1
          %s223 = smul.addr %s222, 16
          %s224 = scalar_lea.vmem [#allocation2], %s223
          %s226 = ssub.s32 256, 256
          %227 = vsyncadd %s221, %s226
          %s228 = smul.addr %s20, 2
          %s229 = smul.addr %s228, 128
          %s230 = scalar_lea.hbm %s0, %s229
          %s231 = sshll.u32 %s224, 4
          %s232 = int_to_ptr.vmem [resolvable:$true] %s231
          %237 = dma.hbm_to_vmem [thread:$0]  %s230, 256, %s232, %s221, 128, 128, 8
        $region36: #{tpu_custom_call.1} parent=31 // pred_fallthru
          _
      $region32: #{tpu_custom_call.1} parent=5 // pred_fallthru
        _
      %p238 = scmp.le.s32.totalorder 1, %s20
      %p239 = scmp.lt.s32.totalorder %s20, 3
      %p240 = pnand %p238, %p239
      %p241 = pneg %p240
      // Predicated region
      $region37: #{tpu_custom_call.1} parent=5 // pred_check
        _
      $region38: #{tpu_custom_call.1} parent=5 // pred_check_branch
        %243 = sbr.rel (%p240) target = $region40
      $region39: #{tpu_custom_call.1} parent=5 // pred_region
        %s244 = ssub.s32 %s20, 1
        %s245 = sand.u32 %s33, 1
        %s246 = scalar_lea.sflag [#allocation3], %s245
        %s247 = sand.u32 %s33, 1
        %s248 = smul.addr %s247, 16
        %s249 = scalar_lea.vmem [#allocation2], %s248
        // Predicated region
        $region41: #{tpu_custom_call.1} parent=39 // pred_check
          %p250 = pneg %p46
        $region42: #{tpu_custom_call.1} parent=39 // pred_check_branch
          %252 = sbr.rel (%p250) target = $region44
        $region43: #{tpu_custom_call.1} parent=39 // pred_region
          %253 = dma.done %s246, 256
        $region44: #{tpu_custom_call.1} parent=39 // pred_fallthru
          _
        // Predicated region
        $region45: #{tpu_custom_call.1} parent=39 // pred_check
          %p254 = pneg %p67
        $region46: #{tpu_custom_call.1} parent=39 // pred_check_branch
          %256 = sbr.rel (%p254) target = $region48
        $region47: #{tpu_custom_call.1} parent=39 // pred_region
          %257 = dma.done [#allocation6], 16
        $region48: #{tpu_custom_call.1} parent=39 // pred_fallthru
          _
        // Predicated region
        $region49: #{tpu_custom_call.1} parent=39 // pred_check
          %p258 = pneg %p88
        $region50: #{tpu_custom_call.1} parent=39 // pred_check_branch
          %260 = sbr.rel (%p258) target = $region52
        $region51: #{tpu_custom_call.1} parent=39 // pred_region
          %261 = dma.done [#allocation5], 16
        $region52: #{tpu_custom_call.1} parent=39 // pred_fallthru
          _
        // Predicated region
        $region53: #{tpu_custom_call.1} parent=39 // pred_check
          %p262 = pneg %p109
        $region54: #{tpu_custom_call.1} parent=39 // pred_check_branch
          %264 = sbr.rel (%p262) target = $region56
        $region55: #{tpu_custom_call.1} parent=39 // pred_region
          %265 = dma.done [#allocation10], 32
        $region56: #{tpu_custom_call.1} parent=39 // pred_fallthru
          _
        // Predicated region
        $region57: #{tpu_custom_call.1} parent=39 // pred_check
          %p266 = pneg %p130
        $region58: #{tpu_custom_call.1} parent=39 // pred_check_branch
          %268 = sbr.rel (%p266) target = $region60
        $region59: #{tpu_custom_call.1} parent=39 // pred_region
          %269 = dma.done [#allocation10], 16
        $region60: #{tpu_custom_call.1} parent=39 // pred_fallthru
          _
        %270 = sfence
        %s271 = sand.u32 %s33, 1
        %s272 = scalar_lea.sflag [#allocation3], %s271
        %s273 = sand.u32 %s33, 1
        %s274 = smul.addr %s273, 16
        %s275 = scalar_lea.vmem [#allocation2], %s274
        %p276 = pneg %p46
        %p277 = pneg %p43
        %p278 = pneg %p67
        %p279 = pneg %p64
        %p280 = pneg %p88
        %p281 = pneg %p85
        %p282 = pneg %p109
        %p283 = pneg %p106
        %p284 = pneg %p130
        %p285 = pneg %p127
        %p286 = pneg %p156
        %p287 = pneg %p153
        %s288 = sand.u32 %s143, 1
        %s289 = scalar_lea.sflag [#allocation4], %s288
        %s290 = sand.u32 %s143, 1
        %s291 = smul.addr %s290, 32
        %s292 = scalar_lea.vmem [#allocation12], %s291
        %v293 = vlaneseq
        %v294 = vshrl.u32 %v293, 7
        %v295 = vadd.s32 %v294, 8
        %v296 = vlaneseq
        %v297 = vand.u32 %v296, 127
        %vm298 = vcmp.lt.s32.totalorder %v294, 16
        %vm299 = vcmp.lt.s32.totalorder %v295, 16
        %vm300 = vcmp.lt.s32.totalorder %v297, 16
        %vm301 = vmand %vm298, %vm300
        %vm302 = vmand %vm299, %vm300
        %v303 = vsel %vm301, 1, 0
        %v304 = vsel %vm302, 1, 0
        %v305 = vcvt.s32.f32 %v303
        %v306 = vcvt.s32.f32 %v304
        %v307 = vld [vmem:[%s249] sm:$0xff]
        %v308 = vld [vmem:[%s249 + $0x8] sm:$0xff]
        %311 = vrot.lane.b32.xlu0 %v307, 1
        %v312 = vpop.permute.xlu0 %311
        %313 = vrot.lane.b32.xlu0 %v308, 1
        %v314 = vpop.permute.xlu0 %313
        %vm317 = vcmask 7168
        %v318 = vsel %vm317, 0.0, %v312
        %v319 = vsel %vm317, 0.0, %v314
        %320 = vrot.lane.b32.xlu0 %v307, 127
        %v321 = vpop.permute.xlu0 %320
        %322 = vrot.lane.b32.xlu0 %v308, 127
        %v323 = vpop.permute.xlu0 %322
        %vm326 = vcmask 1039360
        %v327 = vsel %vm326, %v321, 0.0
        %v328 = vsel %vm326, %v323, 0.0
        %vm331 = vcmask 1040384
        %v332 = vrot.slane %v318, 7
        %v333 = vrot.slane %v319, 7
        %v334 = vsel %vm331, %v332, %v333
        %v337 = vsel %vm331, 0.0, %v332
        %v338 = vrot.slane %v307, 7
        %v339 = vrot.slane %v308, 7
        %v340 = vsel %vm331, %v338, %v339
        %v343 = vsel %vm331, 0.0, %v338
        %v346 = vrot.slane %v327, 7
        %v347 = vrot.slane %v328, 7
        %v348 = vsel %vm331, %v346, %v347
        %v351 = vsel %vm331, 0.0, %v346
        %vm352 = vcmask 1046528
        %v353 = vrot.slane %v318, 1
        %v354 = vrot.slane %v319, 1
        %v355 = vsel %vm352, %v353, %v354
        %v358 = vsel %vm352, %v354, 0.0
        %v359 = vrot.slane %v307, 1
        %v360 = vrot.slane %v308, 1
        %v361 = vsel %vm352, %v359, %v360
        %v364 = vsel %vm352, %v360, 0.0
        %v365 = vrot.slane %v327, 1
        %v366 = vrot.slane %v328, 1
        %v367 = vsel %vm352, %v365, %v366
        %v370 = vsel %vm352, %v366, 0.0
        %s371 = sld [smem:[#allocation11]]
        %v372 = vstv %s371
        %s373 = sld [smem:[#allocation11 + $0x1]]
        %v374 = vstv %s373
        %s375 = sld [smem:[#allocation7]]
        %s376 = sld [smem:[#allocation7 + $0x8]]
        %s377 = sld [smem:[#allocation7 + $0x10]]
        %s378 = sld [smem:[#allocation7 + $0x18]]
        %s379 = sld [smem:[#allocation7 + $0x20]]
        %s380 = sld [smem:[#allocation7 + $0x28]]
        %s381 = sld [smem:[#allocation7 + $0x30]]
        %s382 = sld [smem:[#allocation7 + $0x38]]
        %s383 = sld [smem:[#allocation7 + $0x40]]
        %s384 = sld [smem:[#allocation8]]
        %v385 = vstv %s384
        %v386 = vstv %s375
        %v387 = vmul.f32 %v337, %v386
        %v388 = vmul.f32 %v334, %v386
        %v389 = vadd.f32 %v385, %v387
        %v390 = vadd.f32 %v385, %v388
        %v391 = vstv %s376
        %v392 = vmul.f32 %v343, %v391
        %v393 = vmul.f32 %v340, %v391
        %v394 = vadd.f32 %v389, %v392
        %v395 = vadd.f32 %v390, %v393
        %v396 = vstv %s377
        %v397 = vmul.f32 %v351, %v396
        %v398 = vmul.f32 %v348, %v396
        %v399 = vadd.f32 %v394, %v397
        %v400 = vadd.f32 %v395, %v398
        %v401 = vstv %s378
        %v402 = vmul.f32 %v318, %v401
        %v403 = vmul.f32 %v319, %v401
        %v404 = vadd.f32 %v399, %v402
        %v405 = vadd.f32 %v400, %v403
        %v406 = vstv %s379
        %v407 = vmul.f32 %v307, %v406
        %v408 = vmul.f32 %v308, %v406
        %v409 = vadd.f32 %v404, %v407
        %v410 = vadd.f32 %v405, %v408
        %v411 = vstv %s380
        %v412 = vmul.f32 %v327, %v411
        %v413 = vmul.f32 %v328, %v411
        %v414 = vadd.f32 %v409, %v412
        %v415 = vadd.f32 %v410, %v413
        %v416 = vstv %s381
        %v417 = vmul.f32 %v355, %v416
        %v418 = vmul.f32 %v358, %v416
        %v419 = vadd.f32 %v414, %v417
        %v420 = vadd.f32 %v415, %v418
        %v421 = vstv %s382
        %v422 = vmul.f32 %v361, %v421
        %v423 = vmul.f32 %v364, %v421
        %v424 = vadd.f32 %v419, %v422
        %v425 = vadd.f32 %v420, %v423
        %v426 = vstv %s383
        %v427 = vmul.f32 %v367, %v426
        %v428 = vmul.f32 %v370, %v426
        %v429 = vadd.f32 %v424, %v427
        %v430 = vadd.f32 %v425, %v428
        %v431 = vmax.f32 %v429, 0.0
        %v432 = vmax.f32 %v430, 0.0
        %v433 = vmul.f32 %v431, %v305
        %v434 = vmul.f32 %v432, %v306
        %437 = vrot.lane.b32.xlu0 %v433, 1
        %v438 = vpop.permute.xlu0 %437
        %439 = vrot.lane.b32.xlu0 %v434, 1
        %v440 = vpop.permute.xlu0 %439
        %v443 = vsel %vm317, 0.0, %v438
        %v444 = vsel %vm317, 0.0, %v440
        %445 = vrot.lane.b32.xlu0 %v433, 127
        %v446 = vpop.permute.xlu0 %445
        %447 = vrot.lane.b32.xlu0 %v434, 127
        %v448 = vpop.permute.xlu0 %447
        %v451 = vsel %vm326, %v446, 0.0
        %v452 = vsel %vm326, %v448, 0.0
        %v455 = vrot.slane %v443, 7
        %v456 = vrot.slane %v444, 7
        %v457 = vsel %vm331, %v455, %v456
        %v460 = vsel %vm331, 0.0, %v455
        %v461 = vrot.slane %v433, 7
        %v462 = vrot.slane %v434, 7
        %v463 = vsel %vm331, %v461, %v462
        %v466 = vsel %vm331, 0.0, %v461
        %v469 = vrot.slane %v451, 7
        %v470 = vrot.slane %v452, 7
        %v471 = vsel %vm331, %v469, %v470
        %v474 = vsel %vm331, 0.0, %v469
        %v475 = vrot.slane %v443, 1
        %v476 = vrot.slane %v444, 1
        %v477 = vsel %vm352, %v475, %v476
        %v480 = vsel %vm352, %v476, 0.0
        %v481 = vrot.slane %v433, 1
        %v482 = vrot.slane %v434, 1
        %v483 = vsel %vm352, %v481, %v482
        %v486 = vsel %vm352, %v482, 0.0
        %v487 = vrot.slane %v451, 1
        %v488 = vrot.slane %v452, 1
        %v489 = vsel %vm352, %v487, %v488
        %v492 = vsel %vm352, %v488, 0.0
        %s493 = sld [smem:[#allocation9]]
        %s494 = sld [smem:[#allocation9 + $0x10]]
        %s495 = sld [smem:[#allocation9 + $0x20]]
        %s496 = sld [smem:[#allocation9 + $0x30]]
        %s497 = sld [smem:[#allocation9 + $0x40]]
        %s498 = sld [smem:[#allocation9 + $0x50]]
        %s499 = sld [smem:[#allocation9 + $0x60]]
        %s500 = sld [smem:[#allocation9 + $0x70]]
        %s501 = sld [smem:[#allocation9 + $0x80]]
        %v502 = vstv %s493
        %v503 = vmul.f32 %v460, %v502
        %v504 = vmul.f32 %v457, %v502
        %v505 = vadd.f32 %v372, %v503
        %v506 = vadd.f32 %v372, %v504
        %v507 = vstv %s494
        %v508 = vmul.f32 %v466, %v507
        %v509 = vmul.f32 %v463, %v507
        %v510 = vadd.f32 %v505, %v508
        %v511 = vadd.f32 %v506, %v509
        %v512 = vstv %s495
        %v513 = vmul.f32 %v474, %v512
        %v514 = vmul.f32 %v471, %v512
        %v515 = vadd.f32 %v510, %v513
        %v516 = vadd.f32 %v511, %v514
        %v517 = vstv %s496
        %v518 = vmul.f32 %v443, %v517
        %v519 = vmul.f32 %v444, %v517
        %v520 = vadd.f32 %v515, %v518
        %v521 = vadd.f32 %v516, %v519
        %v522 = vstv %s497
        %v523 = vmul.f32 %v433, %v522
        %v524 = vmul.f32 %v434, %v522
        %v525 = vadd.f32 %v520, %v523
        %v526 = vadd.f32 %v521, %v524
        %v527 = vstv %s498
        %v528 = vmul.f32 %v451, %v527
        %v529 = vmul.f32 %v452, %v527
        %v530 = vadd.f32 %v525, %v528
        %v531 = vadd.f32 %v526, %v529
        %v532 = vstv %s499
        %v533 = vmul.f32 %v477, %v532
        %v534 = vmul.f32 %v480, %v532
        %v535 = vadd.f32 %v530, %v533
        %v536 = vadd.f32 %v531, %v534
        %v537 = vstv %s500
        %v538 = vmul.f32 %v483, %v537
        %v539 = vmul.f32 %v486, %v537
        %v540 = vadd.f32 %v535, %v538
        %v541 = vadd.f32 %v536, %v539
        %v542 = vstv %s501
        %v543 = vmul.f32 %v489, %v542
        %v544 = vmul.f32 %v492, %v542
        %v545 = vadd.f32 %v540, %v543
        %v546 = vadd.f32 %v541, %v544
        %s547 = sld [smem:[#allocation9 + $0x1]]
        %s548 = sld [smem:[#allocation9 + $0x11]]
        %s549 = sld [smem:[#allocation9 + $0x21]]
        %s550 = sld [smem:[#allocation9 + $0x31]]
        %s551 = sld [smem:[#allocation9 + $0x41]]
        %s552 = sld [smem:[#allocation9 + $0x51]]
        %s553 = sld [smem:[#allocation9 + $0x61]]
        %s554 = sld [smem:[#allocation9 + $0x71]]
        %s555 = sld [smem:[#allocation9 + $0x81]]
        %v556 = vstv %s547
        %v557 = vmul.f32 %v460, %v556
        %v558 = vmul.f32 %v457, %v556
        %v559 = vadd.f32 %v374, %v557
        %v560 = vadd.f32 %v374, %v558
        %v561 = vstv %s548
        %v562 = vmul.f32 %v466, %v561
        %v563 = vmul.f32 %v463, %v561
        %v564 = vadd.f32 %v559, %v562
        %v565 = vadd.f32 %v560, %v563
        %v566 = vstv %s549
        %v567 = vmul.f32 %v474, %v566
        %v568 = vmul.f32 %v471, %v566
        %v569 = vadd.f32 %v564, %v567
        %v570 = vadd.f32 %v565, %v568
        %v571 = vstv %s550
        %v572 = vmul.f32 %v443, %v571
        %v573 = vmul.f32 %v444, %v571
        %v574 = vadd.f32 %v569, %v572
        %v575 = vadd.f32 %v570, %v573
        %v576 = vstv %s551
        %v577 = vmul.f32 %v433, %v576
        %v578 = vmul.f32 %v434, %v576
        %v579 = vadd.f32 %v574, %v577
        %v580 = vadd.f32 %v575, %v578
        %v581 = vstv %s552
        %v582 = vmul.f32 %v451, %v581
        %v583 = vmul.f32 %v452, %v581
        %v584 = vadd.f32 %v579, %v582
        %v585 = vadd.f32 %v580, %v583
        %v586 = vstv %s553
        %v587 = vmul.f32 %v477, %v586
        %v588 = vmul.f32 %v480, %v586
        %v589 = vadd.f32 %v584, %v587
        %v590 = vadd.f32 %v585, %v588
        %v591 = vstv %s554
        %v592 = vmul.f32 %v483, %v591
        %v593 = vmul.f32 %v486, %v591
        %v594 = vadd.f32 %v589, %v592
        %v595 = vadd.f32 %v590, %v593
        %v596 = vstv %s555
        %v597 = vmul.f32 %v489, %v596
        %v598 = vmul.f32 %v492, %v596
        %v599 = vadd.f32 %v594, %v597
        %v600 = vadd.f32 %v595, %v598
        %s601 = sld [smem:[#allocation7 + $0x1]]
        %s602 = sld [smem:[#allocation7 + $0x9]]
        %s603 = sld [smem:[#allocation7 + $0x11]]
        %s604 = sld [smem:[#allocation7 + $0x19]]
        %s605 = sld [smem:[#allocation7 + $0x21]]
        %s606 = sld [smem:[#allocation7 + $0x29]]
        %s607 = sld [smem:[#allocation7 + $0x31]]
        %s608 = sld [smem:[#allocation7 + $0x39]]
        %s609 = sld [smem:[#allocation7 + $0x41]]
        %s610 = sld [smem:[#allocation8 + $0x1]]
        %v611 = vstv %s610
        %v612 = vstv %s601
        %v613 = vmul.f32 %v337, %v612
        %v614 = vmul.f32 %v334, %v612
        %v615 = vadd.f32 %v611, %v613
        %v616 = vadd.f32 %v611, %v614
        %v617 = vstv %s602
        %v618 = vmul.f32 %v343, %v617
        %v619 = vmul.f32 %v340, %v617
        %v620 = vadd.f32 %v615, %v618
        %v621 = vadd.f32 %v616, %v619
        %v622 = vstv %s603
        %v623 = vmul.f32 %v351, %v622
        %v624 = vmul.f32 %v348, %v622
        %v625 = vadd.f32 %v620, %v623
        %v626 = vadd.f32 %v621, %v624
        %v627 = vstv %s604
        %v628 = vmul.f32 %v318, %v627
        %v629 = vmul.f32 %v319, %v627
        %v630 = vadd.f32 %v625, %v628
        %v631 = vadd.f32 %v626, %v629
        %v632 = vstv %s605
        %v633 = vmul.f32 %v307, %v632
        %v634 = vmul.f32 %v308, %v632
        %v635 = vadd.f32 %v630, %v633
        %v636 = vadd.f32 %v631, %v634
        %v637 = vstv %s606
        %v638 = vmul.f32 %v327, %v637
        %v639 = vmul.f32 %v328, %v637
        %v640 = vadd.f32 %v635, %v638
        %v641 = vadd.f32 %v636, %v639
        %v642 = vstv %s607
        %v643 = vmul.f32 %v355, %v642
        %v644 = vmul.f32 %v358, %v642
        %v645 = vadd.f32 %v640, %v643
        %v646 = vadd.f32 %v641, %v644
        %v647 = vstv %s608
        %v648 = vmul.f32 %v361, %v647
        %v649 = vmul.f32 %v364, %v647
        %v650 = vadd.f32 %v645, %v648
        %v651 = vadd.f32 %v646, %v649
        %v652 = vstv %s609
        %v653 = vmul.f32 %v367, %v652
        %v654 = vmul.f32 %v370, %v652
        %v655 = vadd.f32 %v650, %v653
        %v656 = vadd.f32 %v651, %v654
        %v657 = vmax.f32 %v655, 0.0
        %v658 = vmax.f32 %v656, 0.0
        %v659 = vmul.f32 %v657, %v305
        %v660 = vmul.f32 %v658, %v306
        %663 = vrot.lane.b32.xlu0 %v659, 1
        %v664 = vpop.permute.xlu0 %663
        %665 = vrot.lane.b32.xlu0 %v660, 1
        %v666 = vpop.permute.xlu0 %665
        %v669 = vsel %vm317, 0.0, %v664
        %v670 = vsel %vm317, 0.0, %v666
        %671 = vrot.lane.b32.xlu0 %v659, 127
        %v672 = vpop.permute.xlu0 %671
        %673 = vrot.lane.b32.xlu0 %v660, 127
        %v674 = vpop.permute.xlu0 %673
        %v677 = vsel %vm326, %v672, 0.0
        %v678 = vsel %vm326, %v674, 0.0
        %v681 = vrot.slane %v669, 7
        %v682 = vrot.slane %v670, 7
        %v683 = vsel %vm331, %v681, %v682
        %v686 = vsel %vm331, 0.0, %v681
        %v687 = vrot.slane %v659, 7
        %v688 = vrot.slane %v660, 7
        %v689 = vsel %vm331, %v687, %v688
        %v692 = vsel %vm331, 0.0, %v687
        %v695 = vrot.slane %v677, 7
        %v696 = vrot.slane %v678, 7
        %v697 = vsel %vm331, %v695, %v696
        %v700 = vsel %vm331, 0.0, %v695
        %v701 = vrot.slane %v669, 1
        %v702 = vrot.slane %v670, 1
        %v703 = vsel %vm352, %v701, %v702
        %v706 = vsel %vm352, %v702, 0.0
        %v707 = vrot.slane %v659, 1
        %v708 = vrot.slane %v660, 1
        %v709 = vsel %vm352, %v707, %v708
        %v712 = vsel %vm352, %v708, 0.0
        %v713 = vrot.slane %v677, 1
        %v714 = vrot.slane %v678, 1
        %v715 = vsel %vm352, %v713, %v714
        %v718 = vsel %vm352, %v714, 0.0
        %s719 = sld [smem:[#allocation9 + $0x2]]
        %s720 = sld [smem:[#allocation9 + $0x12]]
        %s721 = sld [smem:[#allocation9 + $0x22]]
        %s722 = sld [smem:[#allocation9 + $0x32]]
        %s723 = sld [smem:[#allocation9 + $0x42]]
        %s724 = sld [smem:[#allocation9 + $0x52]]
        %s725 = sld [smem:[#allocation9 + $0x62]]
        %s726 = sld [smem:[#allocation9 + $0x72]]
        %s727 = sld [smem:[#allocation9 + $0x82]]
        %v728 = vstv %s719
        %v729 = vmul.f32 %v686, %v728
        %v730 = vmul.f32 %v683, %v728
        %v731 = vadd.f32 %v545, %v729
        %v732 = vadd.f32 %v546, %v730
        %v733 = vstv %s720
        %v734 = vmul.f32 %v692, %v733
        %v735 = vmul.f32 %v689, %v733
        %v736 = vadd.f32 %v731, %v734
        %v737 = vadd.f32 %v732, %v735
        %v738 = vstv %s721
        %v739 = vmul.f32 %v700, %v738
        %v740 = vmul.f32 %v697, %v738
        %v741 = vadd.f32 %v736, %v739
        %v742 = vadd.f32 %v737, %v740
        %v743 = vstv %s722
        %v744 = vmul.f32 %v669, %v743
        %v745 = vmul.f32 %v670, %v743
        %v746 = vadd.f32 %v741, %v744
        %v747 = vadd.f32 %v742, %v745
        %v748 = vstv %s723
        %v749 = vmul.f32 %v659, %v748
        %v750 = vmul.f32 %v660, %v748
        %v751 = vadd.f32 %v746, %v749
        %v752 = vadd.f32 %v747, %v750
        %v753 = vstv %s724
        %v754 = vmul.f32 %v677, %v753
        %v755 = vmul.f32 %v678, %v753
        %v756 = vadd.f32 %v751, %v754
        %v757 = vadd.f32 %v752, %v755
        %v758 = vstv %s725
        %v759 = vmul.f32 %v703, %v758
        %v760 = vmul.f32 %v706, %v758
        %v761 = vadd.f32 %v756, %v759
        %v762 = vadd.f32 %v757, %v760
        %v763 = vstv %s726
        %v764 = vmul.f32 %v709, %v763
        %v765 = vmul.f32 %v712, %v763
        %v766 = vadd.f32 %v761, %v764
        %v767 = vadd.f32 %v762, %v765
        %v768 = vstv %s727
        %v769 = vmul.f32 %v715, %v768
        %v770 = vmul.f32 %v718, %v768
        %v771 = vadd.f32 %v766, %v769
        %v772 = vadd.f32 %v767, %v770
        %s773 = sld [smem:[#allocation9 + $0x3]]
        %s774 = sld [smem:[#allocation9 + $0x13]]
        %s775 = sld [smem:[#allocation9 + $0x23]]
        %s776 = sld [smem:[#allocation9 + $0x33]]
        %s777 = sld [smem:[#allocation9 + $0x43]]
        %s778 = sld [smem:[#allocation9 + $0x53]]
        %s779 = sld [smem:[#allocation9 + $0x63]]
        %s780 = sld [smem:[#allocation9 + $0x73]]
        %s781 = sld [smem:[#allocation9 + $0x83]]
        %v782 = vstv %s773
        %v783 = vmul.f32 %v686, %v782
        %v784 = vmul.f32 %v683, %v782
        %v785 = vadd.f32 %v599, %v783
        %v786 = vadd.f32 %v600, %v784
        %v787 = vstv %s774
        %v788 = vmul.f32 %v692, %v787
        %v789 = vmul.f32 %v689, %v787
        %v790 = vadd.f32 %v785, %v788
        %v791 = vadd.f32 %v786, %v789
        %v792 = vstv %s775
        %v793 = vmul.f32 %v700, %v792
        %v794 = vmul.f32 %v697, %v792
        %v795 = vadd.f32 %v790, %v793
        %v796 = vadd.f32 %v791, %v794
        %v797 = vstv %s776
        %v798 = vmul.f32 %v669, %v797
        %v799 = vmul.f32 %v670, %v797
        %v800 = vadd.f32 %v795, %v798
        %v801 = vadd.f32 %v796, %v799
        %v802 = vstv %s777
        %v803 = vmul.f32 %v659, %v802
        %v804 = vmul.f32 %v660, %v802
        %v805 = vadd.f32 %v800, %v803
        %v806 = vadd.f32 %v801, %v804
        %v807 = vstv %s778
        %v808 = vmul.f32 %v677, %v807
        %v809 = vmul.f32 %v678, %v807
        %v810 = vadd.f32 %v805, %v808
        %v811 = vadd.f32 %v806, %v809
        %v812 = vstv %s779
        %v813 = vmul.f32 %v703, %v812
        %v814 = vmul.f32 %v706, %v812
        %v815 = vadd.f32 %v810, %v813
        %v816 = vadd.f32 %v811, %v814
        %v817 = vstv %s780
        %v818 = vmul.f32 %v709, %v817
        %v819 = vmul.f32 %v712, %v817
        %v820 = vadd.f32 %v815, %v818
        %v821 = vadd.f32 %v816, %v819
        %v822 = vstv %s781
        %v823 = vmul.f32 %v715, %v822
        %v824 = vmul.f32 %v718, %v822
        %v825 = vadd.f32 %v820, %v823
        %v826 = vadd.f32 %v821, %v824
        %s827 = sld [smem:[#allocation7 + $0x2]]
        %s828 = sld [smem:[#allocation7 + $0xa]]
        %s829 = sld [smem:[#allocation7 + $0x12]]
        %s830 = sld [smem:[#allocation7 + $0x1a]]
        %s831 = sld [smem:[#allocation7 + $0x22]]
        %s832 = sld [smem:[#allocation7 + $0x2a]]
        %s833 = sld [smem:[#allocation7 + $0x32]]
        %s834 = sld [smem:[#allocation7 + $0x3a]]
        %s835 = sld [smem:[#allocation7 + $0x42]]
        %s836 = sld [smem:[#allocation8 + $0x2]]
        %v837 = vstv %s836
        %v838 = vstv %s827
        %v839 = vmul.f32 %v337, %v838
        %v840 = vmul.f32 %v334, %v838
        %v841 = vadd.f32 %v837, %v839
        %v842 = vadd.f32 %v837, %v840
        %v843 = vstv %s828
        %v844 = vmul.f32 %v343, %v843
        %v845 = vmul.f32 %v340, %v843
        %v846 = vadd.f32 %v841, %v844
        %v847 = vadd.f32 %v842, %v845
        %v848 = vstv %s829
        %v849 = vmul.f32 %v351, %v848
        %v850 = vmul.f32 %v348, %v848
        %v851 = vadd.f32 %v846, %v849
        %v852 = vadd.f32 %v847, %v850
        %v853 = vstv %s830
        %v854 = vmul.f32 %v318, %v853
        %v855 = vmul.f32 %v319, %v853
        %v856 = vadd.f32 %v851, %v854
        %v857 = vadd.f32 %v852, %v855
        %v858 = vstv %s831
        %v859 = vmul.f32 %v307, %v858
        %v860 = vmul.f32 %v308, %v858
        %v861 = vadd.f32 %v856, %v859
        %v862 = vadd.f32 %v857, %v860
        %v863 = vstv %s832
        %v864 = vmul.f32 %v327, %v863
        %v865 = vmul.f32 %v328, %v863
        %v866 = vadd.f32 %v861, %v864
        %v867 = vadd.f32 %v862, %v865
        %v868 = vstv %s833
        %v869 = vmul.f32 %v355, %v868
        %v870 = vmul.f32 %v358, %v868
        %v871 = vadd.f32 %v866, %v869
        %v872 = vadd.f32 %v867, %v870
        %v873 = vstv %s834
        %v874 = vmul.f32 %v361, %v873
        %v875 = vmul.f32 %v364, %v873
        %v876 = vadd.f32 %v871, %v874
        %v877 = vadd.f32 %v872, %v875
        %v878 = vstv %s835
        %v879 = vmul.f32 %v367, %v878
        %v880 = vmul.f32 %v370, %v878
        %v881 = vadd.f32 %v876, %v879
        %v882 = vadd.f32 %v877, %v880
        %v883 = vmax.f32 %v881, 0.0
        %v884 = vmax.f32 %v882, 0.0
        %v885 = vmul.f32 %v883, %v305
        %v886 = vmul.f32 %v884, %v306
        %889 = vrot.lane.b32.xlu0 %v885, 1
        %v890 = vpop.permute.xlu0 %889
        %891 = vrot.lane.b32.xlu0 %v886, 1
        %v892 = vpop.permute.xlu0 %891
        %v895 = vsel %vm317, 0.0, %v890
        %v896 = vsel %vm317, 0.0, %v892
        %897 = vrot.lane.b32.xlu0 %v885, 127
        %v898 = vpop.permute.xlu0 %897
        %899 = vrot.lane.b32.xlu0 %v886, 127
        %v900 = vpop.permute.xlu0 %899
        %v903 = vsel %vm326, %v898, 0.0
        %v904 = vsel %vm326, %v900, 0.0
        %v907 = vrot.slane %v895, 7
        %v908 = vrot.slane %v896, 7
        %v909 = vsel %vm331, %v907, %v908
        %v912 = vsel %vm331, 0.0, %v907
        %v913 = vrot.slane %v885, 7
        %v914 = vrot.slane %v886, 7
        %v915 = vsel %vm331, %v913, %v914
        %v918 = vsel %vm331, 0.0, %v913
        %v921 = vrot.slane %v903, 7
        %v922 = vrot.slane %v904, 7
        %v923 = vsel %vm331, %v921, %v922
        %v926 = vsel %vm331, 0.0, %v921
        %v927 = vrot.slane %v895, 1
        %v928 = vrot.slane %v896, 1
        %v929 = vsel %vm352, %v927, %v928
        %v932 = vsel %vm352, %v928, 0.0
        %v933 = vrot.slane %v885, 1
        %v934 = vrot.slane %v886, 1
        %v935 = vsel %vm352, %v933, %v934
        %v938 = vsel %vm352, %v934, 0.0
        %v939 = vrot.slane %v903, 1
        %v940 = vrot.slane %v904, 1
        %v941 = vsel %vm352, %v939, %v940
        %v944 = vsel %vm352, %v940, 0.0
        %s945 = sld [smem:[#allocation9 + $0x4]]
        %s946 = sld [smem:[#allocation9 + $0x14]]
        %s947 = sld [smem:[#allocation9 + $0x24]]
        %s948 = sld [smem:[#allocation9 + $0x34]]
        %s949 = sld [smem:[#allocation9 + $0x44]]
        %s950 = sld [smem:[#allocation9 + $0x54]]
        %s951 = sld [smem:[#allocation9 + $0x64]]
        %s952 = sld [smem:[#allocation9 + $0x74]]
        %s953 = sld [smem:[#allocation9 + $0x84]]
        %v954 = vstv %s945
        %v955 = vmul.f32 %v912, %v954
        %v956 = vmul.f32 %v909, %v954
        %v957 = vadd.f32 %v771, %v955
        %v958 = vadd.f32 %v772, %v956
        %v959 = vstv %s946
        %v960 = vmul.f32 %v918, %v959
        %v961 = vmul.f32 %v915, %v959
        %v962 = vadd.f32 %v957, %v960
        %v963 = vadd.f32 %v958, %v961
        %v964 = vstv %s947
        %v965 = vmul.f32 %v926, %v964
        %v966 = vmul.f32 %v923, %v964
        %v967 = vadd.f32 %v962, %v965
        %v968 = vadd.f32 %v963, %v966
        %v969 = vstv %s948
        %v970 = vmul.f32 %v895, %v969
        %v971 = vmul.f32 %v896, %v969
        %v972 = vadd.f32 %v967, %v970
        %v973 = vadd.f32 %v968, %v971
        %v974 = vstv %s949
        %v975 = vmul.f32 %v885, %v974
        %v976 = vmul.f32 %v886, %v974
        %v977 = vadd.f32 %v972, %v975
        %v978 = vadd.f32 %v973, %v976
        %v979 = vstv %s950
        %v980 = vmul.f32 %v903, %v979
        %v981 = vmul.f32 %v904, %v979
        %v982 = vadd.f32 %v977, %v980
        %v983 = vadd.f32 %v978, %v981
        %v984 = vstv %s951
        %v985 = vmul.f32 %v929, %v984
        %v986 = vmul.f32 %v932, %v984
        %v987 = vadd.f32 %v982, %v985
        %v988 = vadd.f32 %v983, %v986
        %v989 = vstv %s952
        %v990 = vmul.f32 %v935, %v989
        %v991 = vmul.f32 %v938, %v989
        %v992 = vadd.f32 %v987, %v990
        %v993 = vadd.f32 %v988, %v991
        %v994 = vstv %s953
        %v995 = vmul.f32 %v941, %v994
        %v996 = vmul.f32 %v944, %v994
        %v997 = vadd.f32 %v992, %v995
        %v998 = vadd.f32 %v993, %v996
        %s999 = sld [smem:[#allocation9 + $0x5]]
        %s1000 = sld [smem:[#allocation9 + $0x15]]
        %s1001 = sld [smem:[#allocation9 + $0x25]]
        %s1002 = sld [smem:[#allocation9 + $0x35]]
        %s1003 = sld [smem:[#allocation9 + $0x45]]
        %s1004 = sld [smem:[#allocation9 + $0x55]]
        %s1005 = sld [smem:[#allocation9 + $0x65]]
        %s1006 = sld [smem:[#allocation9 + $0x75]]
        %s1007 = sld [smem:[#allocation9 + $0x85]]
        %v1008 = vstv %s999
        %v1009 = vmul.f32 %v912, %v1008
        %v1010 = vmul.f32 %v909, %v1008
        %v1011 = vadd.f32 %v825, %v1009
        %v1012 = vadd.f32 %v826, %v1010
        %v1013 = vstv %s1000
        %v1014 = vmul.f32 %v918, %v1013
        %v1015 = vmul.f32 %v915, %v1013
        %v1016 = vadd.f32 %v1011, %v1014
        %v1017 = vadd.f32 %v1012, %v1015
        %v1018 = vstv %s1001
        %v1019 = vmul.f32 %v926, %v1018
        %v1020 = vmul.f32 %v923, %v1018
        %v1021 = vadd.f32 %v1016, %v1019
        %v1022 = vadd.f32 %v1017, %v1020
        %v1023 = vstv %s1002
        %v1024 = vmul.f32 %v895, %v1023
        %v1025 = vmul.f32 %v896, %v1023
        %v1026 = vadd.f32 %v1021, %v1024
        %v1027 = vadd.f32 %v1022, %v1025
        %v1028 = vstv %s1003
        %v1029 = vmul.f32 %v885, %v1028
        %v1030 = vmul.f32 %v886, %v1028
        %v1031 = vadd.f32 %v1026, %v1029
        %v1032 = vadd.f32 %v1027, %v1030
        %v1033 = vstv %s1004
        %v1034 = vmul.f32 %v903, %v1033
        %v1035 = vmul.f32 %v904, %v1033
        %v1036 = vadd.f32 %v1031, %v1034
        %v1037 = vadd.f32 %v1032, %v1035
        %v1038 = vstv %s1005
        %v1039 = vmul.f32 %v929, %v1038
        %v1040 = vmul.f32 %v932, %v1038
        %v1041 = vadd.f32 %v1036, %v1039
        %v1042 = vadd.f32 %v1037, %v1040
        %v1043 = vstv %s1006
        %v1044 = vmul.f32 %v935, %v1043
        %v1045 = vmul.f32 %v938, %v1043
        %v1046 = vadd.f32 %v1041, %v1044
        %v1047 = vadd.f32 %v1042, %v1045
        %v1048 = vstv %s1007
        %v1049 = vmul.f32 %v941, %v1048
        %v1050 = vmul.f32 %v944, %v1048
        %v1051 = vadd.f32 %v1046, %v1049
        %v1052 = vadd.f32 %v1047, %v1050
        %s1053 = sld [smem:[#allocation7 + $0x3]]
        %s1054 = sld [smem:[#allocation7 + $0xb]]
        %s1055 = sld [smem:[#allocation7 + $0x13]]
        %s1056 = sld [smem:[#allocation7 + $0x1b]]
        %s1057 = sld [smem:[#allocation7 + $0x23]]
        %s1058 = sld [smem:[#allocation7 + $0x2b]]
        %s1059 = sld [smem:[#allocation7 + $0x33]]
        %s1060 = sld [smem:[#allocation7 + $0x3b]]
        %s1061 = sld [smem:[#allocation7 + $0x43]]
        %s1062 = sld [smem:[#allocation8 + $0x3]]
        %v1063 = vstv %s1062
        %v1064 = vstv %s1053
        %v1065 = vmul.f32 %v337, %v1064
        %v1066 = vmul.f32 %v334, %v1064
        %v1067 = vadd.f32 %v1063, %v1065
        %v1068 = vadd.f32 %v1063, %v1066
        %v1069 = vstv %s1054
        %v1070 = vmul.f32 %v343, %v1069
        %v1071 = vmul.f32 %v340, %v1069
        %v1072 = vadd.f32 %v1067, %v1070
        %v1073 = vadd.f32 %v1068, %v1071
        %v1074 = vstv %s1055
        %v1075 = vmul.f32 %v351, %v1074
        %v1076 = vmul.f32 %v348, %v1074
        %v1077 = vadd.f32 %v1072, %v1075
        %v1078 = vadd.f32 %v1073, %v1076
        %v1079 = vstv %s1056
        %v1080 = vmul.f32 %v318, %v1079
        %v1081 = vmul.f32 %v319, %v1079
        %v1082 = vadd.f32 %v1077, %v1080
        %v1083 = vadd.f32 %v1078, %v1081
        %v1084 = vstv %s1057
        %v1085 = vmul.f32 %v307, %v1084
        %v1086 = vmul.f32 %v308, %v1084
        %v1087 = vadd.f32 %v1082, %v1085
        %v1088 = vadd.f32 %v1083, %v1086
        %v1089 = vstv %s1058
        %v1090 = vmul.f32 %v327, %v1089
        %v1091 = vmul.f32 %v328, %v1089
        %v1092 = vadd.f32 %v1087, %v1090
        %v1093 = vadd.f32 %v1088, %v1091
        %v1094 = vstv %s1059
        %v1095 = vmul.f32 %v355, %v1094
        %v1096 = vmul.f32 %v358, %v1094
        %v1097 = vadd.f32 %v1092, %v1095
        %v1098 = vadd.f32 %v1093, %v1096
        %v1099 = vstv %s1060
        %v1100 = vmul.f32 %v361, %v1099
        %v1101 = vmul.f32 %v364, %v1099
        %v1102 = vadd.f32 %v1097, %v1100
        %v1103 = vadd.f32 %v1098, %v1101
        %v1104 = vstv %s1061
        %v1105 = vmul.f32 %v367, %v1104
        %v1106 = vmul.f32 %v370, %v1104
        %v1107 = vadd.f32 %v1102, %v1105
        %v1108 = vadd.f32 %v1103, %v1106
        %v1109 = vmax.f32 %v1107, 0.0
        %v1110 = vmax.f32 %v1108, 0.0
        %v1111 = vmul.f32 %v1109, %v305
        %v1112 = vmul.f32 %v1110, %v306
        %1115 = vrot.lane.b32.xlu0 %v1111, 1
        %v1116 = vpop.permute.xlu0 %1115
        %1117 = vrot.lane.b32.xlu0 %v1112, 1
        %v1118 = vpop.permute.xlu0 %1117
        %v1121 = vsel %vm317, 0.0, %v1116
        %v1122 = vsel %vm317, 0.0, %v1118
        %1123 = vrot.lane.b32.xlu0 %v1111, 127
        %v1124 = vpop.permute.xlu0 %1123
        %1125 = vrot.lane.b32.xlu0 %v1112, 127
        %v1126 = vpop.permute.xlu0 %1125
        %v1129 = vsel %vm326, %v1124, 0.0
        %v1130 = vsel %vm326, %v1126, 0.0
        %v1133 = vrot.slane %v1121, 7
        %v1134 = vrot.slane %v1122, 7
        %v1135 = vsel %vm331, %v1133, %v1134
        %v1138 = vsel %vm331, 0.0, %v1133
        %v1139 = vrot.slane %v1111, 7
        %v1140 = vrot.slane %v1112, 7
        %v1141 = vsel %vm331, %v1139, %v1140
        %v1144 = vsel %vm331, 0.0, %v1139
        %v1147 = vrot.slane %v1129, 7
        %v1148 = vrot.slane %v1130, 7
        %v1149 = vsel %vm331, %v1147, %v1148
        %v1152 = vsel %vm331, 0.0, %v1147
        %v1153 = vrot.slane %v1121, 1
        %v1154 = vrot.slane %v1122, 1
        %v1155 = vsel %vm352, %v1153, %v1154
        %v1158 = vsel %vm352, %v1154, 0.0
        %v1159 = vrot.slane %v1111, 1
        %v1160 = vrot.slane %v1112, 1
        %v1161 = vsel %vm352, %v1159, %v1160
        %v1164 = vsel %vm352, %v1160, 0.0
        %v1165 = vrot.slane %v1129, 1
        %v1166 = vrot.slane %v1130, 1
        %v1167 = vsel %vm352, %v1165, %v1166
        %v1170 = vsel %vm352, %v1166, 0.0
        %s1171 = sld [smem:[#allocation9 + $0x6]]
        %s1172 = sld [smem:[#allocation9 + $0x16]]
        %s1173 = sld [smem:[#allocation9 + $0x26]]
        %s1174 = sld [smem:[#allocation9 + $0x36]]
        %s1175 = sld [smem:[#allocation9 + $0x46]]
        %s1176 = sld [smem:[#allocation9 + $0x56]]
        %s1177 = sld [smem:[#allocation9 + $0x66]]
        %s1178 = sld [smem:[#allocation9 + $0x76]]
        %s1179 = sld [smem:[#allocation9 + $0x86]]
        %v1180 = vstv %s1171
        %v1181 = vmul.f32 %v1138, %v1180
        %v1182 = vmul.f32 %v1135, %v1180
        %v1183 = vadd.f32 %v997, %v1181
        %v1184 = vadd.f32 %v998, %v1182
        %v1185 = vstv %s1172
        %v1186 = vmul.f32 %v1144, %v1185
        %v1187 = vmul.f32 %v1141, %v1185
        %v1188 = vadd.f32 %v1183, %v1186
        %v1189 = vadd.f32 %v1184, %v1187
        %v1190 = vstv %s1173
        %v1191 = vmul.f32 %v1152, %v1190
        %v1192 = vmul.f32 %v1149, %v1190
        %v1193 = vadd.f32 %v1188, %v1191
        %v1194 = vadd.f32 %v1189, %v1192
        %v1195 = vstv %s1174
        %v1196 = vmul.f32 %v1121, %v1195
        %v1197 = vmul.f32 %v1122, %v1195
        %v1198 = vadd.f32 %v1193, %v1196
        %v1199 = vadd.f32 %v1194, %v1197
        %v1200 = vstv %s1175
        %v1201 = vmul.f32 %v1111, %v1200
        %v1202 = vmul.f32 %v1112, %v1200
        %v1203 = vadd.f32 %v1198, %v1201
        %v1204 = vadd.f32 %v1199, %v1202
        %v1205 = vstv %s1176
        %v1206 = vmul.f32 %v1129, %v1205
        %v1207 = vmul.f32 %v1130, %v1205
        %v1208 = vadd.f32 %v1203, %v1206
        %v1209 = vadd.f32 %v1204, %v1207
        %v1210 = vstv %s1177
        %v1211 = vmul.f32 %v1155, %v1210
        %v1212 = vmul.f32 %v1158, %v1210
        %v1213 = vadd.f32 %v1208, %v1211
        %v1214 = vadd.f32 %v1209, %v1212
        %v1215 = vstv %s1178
        %v1216 = vmul.f32 %v1161, %v1215
        %v1217 = vmul.f32 %v1164, %v1215
        %v1218 = vadd.f32 %v1213, %v1216
        %v1219 = vadd.f32 %v1214, %v1217
        %v1220 = vstv %s1179
        %v1221 = vmul.f32 %v1167, %v1220
        %v1222 = vmul.f32 %v1170, %v1220
        %v1223 = vadd.f32 %v1218, %v1221
        %v1224 = vadd.f32 %v1219, %v1222
        %s1225 = sld [smem:[#allocation9 + $0x7]]
        %s1226 = sld [smem:[#allocation9 + $0x17]]
        %s1227 = sld [smem:[#allocation9 + $0x27]]
        %s1228 = sld [smem:[#allocation9 + $0x37]]
        %s1229 = sld [smem:[#allocation9 + $0x47]]
        %s1230 = sld [smem:[#allocation9 + $0x57]]
        %s1231 = sld [smem:[#allocation9 + $0x67]]
        %s1232 = sld [smem:[#allocation9 + $0x77]]
        %s1233 = sld [smem:[#allocation9 + $0x87]]
        %v1234 = vstv %s1225
        %v1235 = vmul.f32 %v1138, %v1234
        %v1236 = vmul.f32 %v1135, %v1234
        %v1237 = vadd.f32 %v1051, %v1235
        %v1238 = vadd.f32 %v1052, %v1236
        %v1239 = vstv %s1226
        %v1240 = vmul.f32 %v1144, %v1239
        %v1241 = vmul.f32 %v1141, %v1239
        %v1242 = vadd.f32 %v1237, %v1240
        %v1243 = vadd.f32 %v1238, %v1241
        %v1244 = vstv %s1227
        %v1245 = vmul.f32 %v1152, %v1244
        %v1246 = vmul.f32 %v1149, %v1244
        %v1247 = vadd.f32 %v1242, %v1245
        %v1248 = vadd.f32 %v1243, %v1246
        %v1249 = vstv %s1228
        %v1250 = vmul.f32 %v1121, %v1249
        %v1251 = vmul.f32 %v1122, %v1249
        %v1252 = vadd.f32 %v1247, %v1250
        %v1253 = vadd.f32 %v1248, %v1251
        %v1254 = vstv %s1229
        %v1255 = vmul.f32 %v1111, %v1254
        %v1256 = vmul.f32 %v1112, %v1254
        %v1257 = vadd.f32 %v1252, %v1255
        %v1258 = vadd.f32 %v1253, %v1256
        %v1259 = vstv %s1230
        %v1260 = vmul.f32 %v1129, %v1259
        %v1261 = vmul.f32 %v1130, %v1259
        %v1262 = vadd.f32 %v1257, %v1260
        %v1263 = vadd.f32 %v1258, %v1261
        %v1264 = vstv %s1231
        %v1265 = vmul.f32 %v1155, %v1264
        %v1266 = vmul.f32 %v1158, %v1264
        %v1267 = vadd.f32 %v1262, %v1265
        %v1268 = vadd.f32 %v1263, %v1266
        %v1269 = vstv %s1232
        %v1270 = vmul.f32 %v1161, %v1269
        %v1271 = vmul.f32 %v1164, %v1269
        %v1272 = vadd.f32 %v1267, %v1270
        %v1273 = vadd.f32 %v1268, %v1271
        %v1274 = vstv %s1233
        %v1275 = vmul.f32 %v1167, %v1274
        %v1276 = vmul.f32 %v1170, %v1274
        %v1277 = vadd.f32 %v1272, %v1275
        %v1278 = vadd.f32 %v1273, %v1276
        %s1279 = sld [smem:[#allocation7 + $0x4]]
        %s1280 = sld [smem:[#allocation7 + $0xc]]
        %s1281 = sld [smem:[#allocation7 + $0x14]]
        %s1282 = sld [smem:[#allocation7 + $0x1c]]
        %s1283 = sld [smem:[#allocation7 + $0x24]]
        %s1284 = sld [smem:[#allocation7 + $0x2c]]
        %s1285 = sld [smem:[#allocation7 + $0x34]]
        %s1286 = sld [smem:[#allocation7 + $0x3c]]
        %s1287 = sld [smem:[#allocation7 + $0x44]]
        %s1288 = sld [smem:[#allocation8 + $0x4]]
        %v1289 = vstv %s1288
        %v1290 = vstv %s1279
        %v1291 = vmul.f32 %v337, %v1290
        %v1292 = vmul.f32 %v334, %v1290
        %v1293 = vadd.f32 %v1289, %v1291
        %v1294 = vadd.f32 %v1289, %v1292
        %v1295 = vstv %s1280
        %v1296 = vmul.f32 %v343, %v1295
        %v1297 = vmul.f32 %v340, %v1295
        %v1298 = vadd.f32 %v1293, %v1296
        %v1299 = vadd.f32 %v1294, %v1297
        %v1300 = vstv %s1281
        %v1301 = vmul.f32 %v351, %v1300
        %v1302 = vmul.f32 %v348, %v1300
        %v1303 = vadd.f32 %v1298, %v1301
        %v1304 = vadd.f32 %v1299, %v1302
        %v1305 = vstv %s1282
        %v1306 = vmul.f32 %v318, %v1305
        %v1307 = vmul.f32 %v319, %v1305
        %v1308 = vadd.f32 %v1303, %v1306
        %v1309 = vadd.f32 %v1304, %v1307
        %v1310 = vstv %s1283
        %v1311 = vmul.f32 %v307, %v1310
        %v1312 = vmul.f32 %v308, %v1310
        %v1313 = vadd.f32 %v1308, %v1311
        %v1314 = vadd.f32 %v1309, %v1312
        %v1315 = vstv %s1284
        %v1316 = vmul.f32 %v327, %v1315
        %v1317 = vmul.f32 %v328, %v1315
        %v1318 = vadd.f32 %v1313, %v1316
        %v1319 = vadd.f32 %v1314, %v1317
        %v1320 = vstv %s1285
        %v1321 = vmul.f32 %v355, %v1320
        %v1322 = vmul.f32 %v358, %v1320
        %v1323 = vadd.f32 %v1318, %v1321
        %v1324 = vadd.f32 %v1319, %v1322
        %v1325 = vstv %s1286
        %v1326 = vmul.f32 %v361, %v1325
        %v1327 = vmul.f32 %v364, %v1325
        %v1328 = vadd.f32 %v1323, %v1326
        %v1329 = vadd.f32 %v1324, %v1327
        %v1330 = vstv %s1287
        %v1331 = vmul.f32 %v367, %v1330
        %v1332 = vmul.f32 %v370, %v1330
        %v1333 = vadd.f32 %v1328, %v1331
        %v1334 = vadd.f32 %v1329, %v1332
        %v1335 = vmax.f32 %v1333, 0.0
        %v1336 = vmax.f32 %v1334, 0.0
        %v1337 = vmul.f32 %v1335, %v305
        %v1338 = vmul.f32 %v1336, %v306
        %1341 = vrot.lane.b32.xlu0 %v1337, 1
        %v1342 = vpop.permute.xlu0 %1341
        %1343 = vrot.lane.b32.xlu0 %v1338, 1
        %v1344 = vpop.permute.xlu0 %1343
        %v1347 = vsel %vm317, 0.0, %v1342
        %v1348 = vsel %vm317, 0.0, %v1344
        %1349 = vrot.lane.b32.xlu0 %v1337, 127
        %v1350 = vpop.permute.xlu0 %1349
        %1351 = vrot.lane.b32.xlu0 %v1338, 127
        %v1352 = vpop.permute.xlu0 %1351
        %v1355 = vsel %vm326, %v1350, 0.0
        %v1356 = vsel %vm326, %v1352, 0.0
        %v1359 = vrot.slane %v1347, 7
        %v1360 = vrot.slane %v1348, 7
        %v1361 = vsel %vm331, %v1359, %v1360
        %v1364 = vsel %vm331, 0.0, %v1359
        %v1365 = vrot.slane %v1337, 7
        %v1366 = vrot.slane %v1338, 7
        %v1367 = vsel %vm331, %v1365, %v1366
        %v1370 = vsel %vm331, 0.0, %v1365
        %v1373 = vrot.slane %v1355, 7
        %v1374 = vrot.slane %v1356, 7
        %v1375 = vsel %vm331, %v1373, %v1374
        %v1378 = vsel %vm331, 0.0, %v1373
        %v1379 = vrot.slane %v1347, 1
        %v1380 = vrot.slane %v1348, 1
        %v1381 = vsel %vm352, %v1379, %v1380
        %v1384 = vsel %vm352, %v1380, 0.0
        %v1385 = vrot.slane %v1337, 1
        %v1386 = vrot.slane %v1338, 1
        %v1387 = vsel %vm352, %v1385, %v1386
        %v1390 = vsel %vm352, %v1386, 0.0
        %v1391 = vrot.slane %v1355, 1
        %v1392 = vrot.slane %v1356, 1
        %v1393 = vsel %vm352, %v1391, %v1392
        %v1396 = vsel %vm352, %v1392, 0.0
        %s1397 = sld [smem:[#allocation9 + $0x8]]
        %s1398 = sld [smem:[#allocation9 + $0x18]]
        %s1399 = sld [smem:[#allocation9 + $0x28]]
        %s1400 = sld [smem:[#allocation9 + $0x38]]
        %s1401 = sld [smem:[#allocation9 + $0x48]]
        %s1402 = sld [smem:[#allocation9 + $0x58]]
        %s1403 = sld [smem:[#allocation9 + $0x68]]
        %s1404 = sld [smem:[#allocation9 + $0x78]]
        %s1405 = sld [smem:[#allocation9 + $0x88]]
        %v1406 = vstv %s1397
        %v1407 = vmul.f32 %v1364, %v1406
        %v1408 = vmul.f32 %v1361, %v1406
        %v1409 = vadd.f32 %v1223, %v1407
        %v1410 = vadd.f32 %v1224, %v1408
        %v1411 = vstv %s1398
        %v1412 = vmul.f32 %v1370, %v1411
        %v1413 = vmul.f32 %v1367, %v1411
        %v1414 = vadd.f32 %v1409, %v1412
        %v1415 = vadd.f32 %v1410, %v1413
        %v1416 = vstv %s1399
        %v1417 = vmul.f32 %v1378, %v1416
        %v1418 = vmul.f32 %v1375, %v1416
        %v1419 = vadd.f32 %v1414, %v1417
        %v1420 = vadd.f32 %v1415, %v1418
        %v1421 = vstv %s1400
        %v1422 = vmul.f32 %v1347, %v1421
        %v1423 = vmul.f32 %v1348, %v1421
        %v1424 = vadd.f32 %v1419, %v1422
        %v1425 = vadd.f32 %v1420, %v1423
        %v1426 = vstv %s1401
        %v1427 = vmul.f32 %v1337, %v1426
        %v1428 = vmul.f32 %v1338, %v1426
        %v1429 = vadd.f32 %v1424, %v1427
        %v1430 = vadd.f32 %v1425, %v1428
        %v1431 = vstv %s1402
        %v1432 = vmul.f32 %v1355, %v1431
        %v1433 = vmul.f32 %v1356, %v1431
        %v1434 = vadd.f32 %v1429, %v1432
        %v1435 = vadd.f32 %v1430, %v1433
        %v1436 = vstv %s1403
        %v1437 = vmul.f32 %v1381, %v1436
        %v1438 = vmul.f32 %v1384, %v1436
        %v1439 = vadd.f32 %v1434, %v1437
        %v1440 = vadd.f32 %v1435, %v1438
        %v1441 = vstv %s1404
        %v1442 = vmul.f32 %v1387, %v1441
        %v1443 = vmul.f32 %v1390, %v1441
        %v1444 = vadd.f32 %v1439, %v1442
        %v1445 = vadd.f32 %v1440, %v1443
        %v1446 = vstv %s1405
        %v1447 = vmul.f32 %v1393, %v1446
        %v1448 = vmul.f32 %v1396, %v1446
        %v1449 = vadd.f32 %v1444, %v1447
        %v1450 = vadd.f32 %v1445, %v1448
        %s1451 = sld [smem:[#allocation9 + $0x9]]
        %s1452 = sld [smem:[#allocation9 + $0x19]]
        %s1453 = sld [smem:[#allocation9 + $0x29]]
        %s1454 = sld [smem:[#allocation9 + $0x39]]
        %s1455 = sld [smem:[#allocation9 + $0x49]]
        %s1456 = sld [smem:[#allocation9 + $0x59]]
        %s1457 = sld [smem:[#allocation9 + $0x69]]
        %s1458 = sld [smem:[#allocation9 + $0x79]]
        %s1459 = sld [smem:[#allocation9 + $0x89]]
        %v1460 = vstv %s1451
        %v1461 = vmul.f32 %v1364, %v1460
        %v1462 = vmul.f32 %v1361, %v1460
        %v1463 = vadd.f32 %v1277, %v1461
        %v1464 = vadd.f32 %v1278, %v1462
        %v1465 = vstv %s1452
        %v1466 = vmul.f32 %v1370, %v1465
        %v1467 = vmul.f32 %v1367, %v1465
        %v1468 = vadd.f32 %v1463, %v1466
        %v1469 = vadd.f32 %v1464, %v1467
        %v1470 = vstv %s1453
        %v1471 = vmul.f32 %v1378, %v1470
        %v1472 = vmul.f32 %v1375, %v1470
        %v1473 = vadd.f32 %v1468, %v1471
        %v1474 = vadd.f32 %v1469, %v1472
        %v1475 = vstv %s1454
        %v1476 = vmul.f32 %v1347, %v1475
        %v1477 = vmul.f32 %v1348, %v1475
        %v1478 = vadd.f32 %v1473, %v1476
        %v1479 = vadd.f32 %v1474, %v1477
        %v1480 = vstv %s1455
        %v1481 = vmul.f32 %v1337, %v1480
        %v1482 = vmul.f32 %v1338, %v1480
        %v1483 = vadd.f32 %v1478, %v1481
        %v1484 = vadd.f32 %v1479, %v1482
        %v1485 = vstv %s1456
        %v1486 = vmul.f32 %v1355, %v1485
        %v1487 = vmul.f32 %v1356, %v1485
        %v1488 = vadd.f32 %v1483, %v1486
        %v1489 = vadd.f32 %v1484, %v1487
        %v1490 = vstv %s1457
        %v1491 = vmul.f32 %v1381, %v1490
        %v1492 = vmul.f32 %v1384, %v1490
        %v1493 = vadd.f32 %v1488, %v1491
        %v1494 = vadd.f32 %v1489, %v1492
        %v1495 = vstv %s1458
        %v1496 = vmul.f32 %v1387, %v1495
        %v1497 = vmul.f32 %v1390, %v1495
        %v1498 = vadd.f32 %v1493, %v1496
        %v1499 = vadd.f32 %v1494, %v1497
        %v1500 = vstv %s1459
        %v1501 = vmul.f32 %v1393, %v1500
        %v1502 = vmul.f32 %v1396, %v1500
        %v1503 = vadd.f32 %v1498, %v1501
        %v1504 = vadd.f32 %v1499, %v1502
        %s1505 = sld [smem:[#allocation7 + $0x5]]
        %s1506 = sld [smem:[#allocation7 + $0xd]]
        %s1507 = sld [smem:[#allocation7 + $0x15]]
        %s1508 = sld [smem:[#allocation7 + $0x1d]]
        %s1509 = sld [smem:[#allocation7 + $0x25]]
        %s1510 = sld [smem:[#allocation7 + $0x2d]]
        %s1511 = sld [smem:[#allocation7 + $0x35]]
        %s1512 = sld [smem:[#allocation7 + $0x3d]]
        %s1513 = sld [smem:[#allocation7 + $0x45]]
        %s1514 = sld [smem:[#allocation8 + $0x5]]
        %v1515 = vstv %s1514
        %v1516 = vstv %s1505
        %v1517 = vmul.f32 %v337, %v1516
        %v1518 = vmul.f32 %v334, %v1516
        %v1519 = vadd.f32 %v1515, %v1517
        %v1520 = vadd.f32 %v1515, %v1518
        %v1521 = vstv %s1506
        %v1522 = vmul.f32 %v343, %v1521
        %v1523 = vmul.f32 %v340, %v1521
        %v1524 = vadd.f32 %v1519, %v1522
        %v1525 = vadd.f32 %v1520, %v1523
        %v1526 = vstv %s1507
        %v1527 = vmul.f32 %v351, %v1526
        %v1528 = vmul.f32 %v348, %v1526
        %v1529 = vadd.f32 %v1524, %v1527
        %v1530 = vadd.f32 %v1525, %v1528
        %v1531 = vstv %s1508
        %v1532 = vmul.f32 %v318, %v1531
        %v1533 = vmul.f32 %v319, %v1531
        %v1534 = vadd.f32 %v1529, %v1532
        %v1535 = vadd.f32 %v1530, %v1533
        %v1536 = vstv %s1509
        %v1537 = vmul.f32 %v307, %v1536
        %v1538 = vmul.f32 %v308, %v1536
        %v1539 = vadd.f32 %v1534, %v1537
        %v1540 = vadd.f32 %v1535, %v1538
        %v1541 = vstv %s1510
        %v1542 = vmul.f32 %v327, %v1541
        %v1543 = vmul.f32 %v328, %v1541
        %v1544 = vadd.f32 %v1539, %v1542
        %v1545 = vadd.f32 %v1540, %v1543
        %v1546 = vstv %s1511
        %v1547 = vmul.f32 %v355, %v1546
        %v1548 = vmul.f32 %v358, %v1546
        %v1549 = vadd.f32 %v1544, %v1547
        %v1550 = vadd.f32 %v1545, %v1548
        %v1551 = vstv %s1512
        %v1552 = vmul.f32 %v361, %v1551
        %v1553 = vmul.f32 %v364, %v1551
        %v1554 = vadd.f32 %v1549, %v1552
        %v1555 = vadd.f32 %v1550, %v1553
        %v1556 = vstv %s1513
        %v1557 = vmul.f32 %v367, %v1556
        %v1558 = vmul.f32 %v370, %v1556
        %v1559 = vadd.f32 %v1554, %v1557
        %v1560 = vadd.f32 %v1555, %v1558
        %v1561 = vmax.f32 %v1559, 0.0
        %v1562 = vmax.f32 %v1560, 0.0
        %v1563 = vmul.f32 %v1561, %v305
        %v1564 = vmul.f32 %v1562, %v306
        %1567 = vrot.lane.b32.xlu0 %v1563, 1
        %v1568 = vpop.permute.xlu0 %1567
        %1569 = vrot.lane.b32.xlu0 %v1564, 1
        %v1570 = vpop.permute.xlu0 %1569
        %v1573 = vsel %vm317, 0.0, %v1568
        %v1574 = vsel %vm317, 0.0, %v1570
        %1575 = vrot.lane.b32.xlu0 %v1563, 127
        %v1576 = vpop.permute.xlu0 %1575
        %1577 = vrot.lane.b32.xlu0 %v1564, 127
        %v1578 = vpop.permute.xlu0 %1577
        %v1581 = vsel %vm326, %v1576, 0.0
        %v1582 = vsel %vm326, %v1578, 0.0
        %v1585 = vrot.slane %v1573, 7
        %v1586 = vrot.slane %v1574, 7
        %v1587 = vsel %vm331, %v1585, %v1586
        %v1590 = vsel %vm331, 0.0, %v1585
        %v1591 = vrot.slane %v1563, 7
        %v1592 = vrot.slane %v1564, 7
        %v1593 = vsel %vm331, %v1591, %v1592
        %v1596 = vsel %vm331, 0.0, %v1591
        %v1599 = vrot.slane %v1581, 7
        %v1600 = vrot.slane %v1582, 7
        %v1601 = vsel %vm331, %v1599, %v1600
        %v1604 = vsel %vm331, 0.0, %v1599
        %v1605 = vrot.slane %v1573, 1
        %v1606 = vrot.slane %v1574, 1
        %v1607 = vsel %vm352, %v1605, %v1606
        %v1610 = vsel %vm352, %v1606, 0.0
        %v1611 = vrot.slane %v1563, 1
        %v1612 = vrot.slane %v1564, 1
        %v1613 = vsel %vm352, %v1611, %v1612
        %v1616 = vsel %vm352, %v1612, 0.0
        %v1617 = vrot.slane %v1581, 1
        %v1618 = vrot.slane %v1582, 1
        %v1619 = vsel %vm352, %v1617, %v1618
        %v1622 = vsel %vm352, %v1618, 0.0
        %s1623 = sld [smem:[#allocation9 + $0xa]]
        %s1624 = sld [smem:[#allocation9 + $0x1a]]
        %s1625 = sld [smem:[#allocation9 + $0x2a]]
        %s1626 = sld [smem:[#allocation9 + $0x3a]]
        %s1627 = sld [smem:[#allocation9 + $0x4a]]
        %s1628 = sld [smem:[#allocation9 + $0x5a]]
        %s1629 = sld [smem:[#allocation9 + $0x6a]]
        %s1630 = sld [smem:[#allocation9 + $0x7a]]
        %s1631 = sld [smem:[#allocation9 + $0x8a]]
        %v1632 = vstv %s1623
        %v1633 = vmul.f32 %v1590, %v1632
        %v1634 = vmul.f32 %v1587, %v1632
        %v1635 = vadd.f32 %v1449, %v1633
        %v1636 = vadd.f32 %v1450, %v1634
        %v1637 = vstv %s1624
        %v1638 = vmul.f32 %v1596, %v1637
        %v1639 = vmul.f32 %v1593, %v1637
        %v1640 = vadd.f32 %v1635, %v1638
        %v1641 = vadd.f32 %v1636, %v1639
        %v1642 = vstv %s1625
        %v1643 = vmul.f32 %v1604, %v1642
        %v1644 = vmul.f32 %v1601, %v1642
        %v1645 = vadd.f32 %v1640, %v1643
        %v1646 = vadd.f32 %v1641, %v1644
        %v1647 = vstv %s1626
        %v1648 = vmul.f32 %v1573, %v1647
        %v1649 = vmul.f32 %v1574, %v1647
        %v1650 = vadd.f32 %v1645, %v1648
        %v1651 = vadd.f32 %v1646, %v1649
        %v1652 = vstv %s1627
        %v1653 = vmul.f32 %v1563, %v1652
        %v1654 = vmul.f32 %v1564, %v1652
        %v1655 = vadd.f32 %v1650, %v1653
        %v1656 = vadd.f32 %v1651, %v1654
        %v1657 = vstv %s1628
        %v1658 = vmul.f32 %v1581, %v1657
        %v1659 = vmul.f32 %v1582, %v1657
        %v1660 = vadd.f32 %v1655, %v1658
        %v1661 = vadd.f32 %v1656, %v1659
        %v1662 = vstv %s1629
        %v1663 = vmul.f32 %v1607, %v1662
        %v1664 = vmul.f32 %v1610, %v1662
        %v1665 = vadd.f32 %v1660, %v1663
        %v1666 = vadd.f32 %v1661, %v1664
        %v1667 = vstv %s1630
        %v1668 = vmul.f32 %v1613, %v1667
        %v1669 = vmul.f32 %v1616, %v1667
        %v1670 = vadd.f32 %v1665, %v1668
        %v1671 = vadd.f32 %v1666, %v1669
        %v1672 = vstv %s1631
        %v1673 = vmul.f32 %v1619, %v1672
        %v1674 = vmul.f32 %v1622, %v1672
        %v1675 = vadd.f32 %v1670, %v1673
        %v1676 = vadd.f32 %v1671, %v1674
        %s1677 = sld [smem:[#allocation9 + $0xb]]
        %s1678 = sld [smem:[#allocation9 + $0x1b]]
        %s1679 = sld [smem:[#allocation9 + $0x2b]]
        %s1680 = sld [smem:[#allocation9 + $0x3b]]
        %s1681 = sld [smem:[#allocation9 + $0x4b]]
        %s1682 = sld [smem:[#allocation9 + $0x5b]]
        %s1683 = sld [smem:[#allocation9 + $0x6b]]
        %s1684 = sld [smem:[#allocation9 + $0x7b]]
        %s1685 = sld [smem:[#allocation9 + $0x8b]]
        %v1686 = vstv %s1677
        %v1687 = vmul.f32 %v1590, %v1686
        %v1688 = vmul.f32 %v1587, %v1686
        %v1689 = vadd.f32 %v1503, %v1687
        %v1690 = vadd.f32 %v1504, %v1688
        %v1691 = vstv %s1678
        %v1692 = vmul.f32 %v1596, %v1691
        %v1693 = vmul.f32 %v1593, %v1691
        %v1694 = vadd.f32 %v1689, %v1692
        %v1695 = vadd.f32 %v1690, %v1693
        %v1696 = vstv %s1679
        %v1697 = vmul.f32 %v1604, %v1696
        %v1698 = vmul.f32 %v1601, %v1696
        %v1699 = vadd.f32 %v1694, %v1697
        %v1700 = vadd.f32 %v1695, %v1698
        %v1701 = vstv %s1680
        %v1702 = vmul.f32 %v1573, %v1701
        %v1703 = vmul.f32 %v1574, %v1701
        %v1704 = vadd.f32 %v1699, %v1702
        %v1705 = vadd.f32 %v1700, %v1703
        %v1706 = vstv %s1681
        %v1707 = vmul.f32 %v1563, %v1706
        %v1708 = vmul.f32 %v1564, %v1706
        %v1709 = vadd.f32 %v1704, %v1707
        %v1710 = vadd.f32 %v1705, %v1708
        %v1711 = vstv %s1682
        %v1712 = vmul.f32 %v1581, %v1711
        %v1713 = vmul.f32 %v1582, %v1711
        %v1714 = vadd.f32 %v1709, %v1712
        %v1715 = vadd.f32 %v1710, %v1713
        %v1716 = vstv %s1683
        %v1717 = vmul.f32 %v1607, %v1716
        %v1718 = vmul.f32 %v1610, %v1716
        %v1719 = vadd.f32 %v1714, %v1717
        %v1720 = vadd.f32 %v1715, %v1718
        %v1721 = vstv %s1684
        %v1722 = vmul.f32 %v1613, %v1721
        %v1723 = vmul.f32 %v1616, %v1721
        %v1724 = vadd.f32 %v1719, %v1722
        %v1725 = vadd.f32 %v1720, %v1723
        %v1726 = vstv %s1685
        %v1727 = vmul.f32 %v1619, %v1726
        %v1728 = vmul.f32 %v1622, %v1726
        %v1729 = vadd.f32 %v1724, %v1727
        %v1730 = vadd.f32 %v1725, %v1728
        %s1731 = sld [smem:[#allocation7 + $0x6]]
        %s1732 = sld [smem:[#allocation7 + $0xe]]
        %s1733 = sld [smem:[#allocation7 + $0x16]]
        %s1734 = sld [smem:[#allocation7 + $0x1e]]
        %s1735 = sld [smem:[#allocation7 + $0x26]]
        %s1736 = sld [smem:[#allocation7 + $0x2e]]
        %s1737 = sld [smem:[#allocation7 + $0x36]]
        %s1738 = sld [smem:[#allocation7 + $0x3e]]
        %s1739 = sld [smem:[#allocation7 + $0x46]]
        %s1740 = sld [smem:[#allocation8 + $0x6]]
        %v1741 = vstv %s1740
        %v1742 = vstv %s1731
        %v1743 = vmul.f32 %v337, %v1742
        %v1744 = vmul.f32 %v334, %v1742
        %v1745 = vadd.f32 %v1741, %v1743
        %v1746 = vadd.f32 %v1741, %v1744
        %v1747 = vstv %s1732
        %v1748 = vmul.f32 %v343, %v1747
        %v1749 = vmul.f32 %v340, %v1747
        %v1750 = vadd.f32 %v1745, %v1748
        %v1751 = vadd.f32 %v1746, %v1749
        %v1752 = vstv %s1733
        %v1753 = vmul.f32 %v351, %v1752
        %v1754 = vmul.f32 %v348, %v1752
        %v1755 = vadd.f32 %v1750, %v1753
        %v1756 = vadd.f32 %v1751, %v1754
        %v1757 = vstv %s1734
        %v1758 = vmul.f32 %v318, %v1757
        %v1759 = vmul.f32 %v319, %v1757
        %v1760 = vadd.f32 %v1755, %v1758
        %v1761 = vadd.f32 %v1756, %v1759
        %v1762 = vstv %s1735
        %v1763 = vmul.f32 %v307, %v1762
        %v1764 = vmul.f32 %v308, %v1762
        %v1765 = vadd.f32 %v1760, %v1763
        %v1766 = vadd.f32 %v1761, %v1764
        %v1767 = vstv %s1736
        %v1768 = vmul.f32 %v327, %v1767
        %v1769 = vmul.f32 %v328, %v1767
        %v1770 = vadd.f32 %v1765, %v1768
        %v1771 = vadd.f32 %v1766, %v1769
        %v1772 = vstv %s1737
        %v1773 = vmul.f32 %v355, %v1772
        %v1774 = vmul.f32 %v358, %v1772
        %v1775 = vadd.f32 %v1770, %v1773
        %v1776 = vadd.f32 %v1771, %v1774
        %v1777 = vstv %s1738
        %v1778 = vmul.f32 %v361, %v1777
        %v1779 = vmul.f32 %v364, %v1777
        %v1780 = vadd.f32 %v1775, %v1778
        %v1781 = vadd.f32 %v1776, %v1779
        %v1782 = vstv %s1739
        %v1783 = vmul.f32 %v367, %v1782
        %v1784 = vmul.f32 %v370, %v1782
        %v1785 = vadd.f32 %v1780, %v1783
        %v1786 = vadd.f32 %v1781, %v1784
        %v1787 = vmax.f32 %v1785, 0.0
        %v1788 = vmax.f32 %v1786, 0.0
        %v1789 = vmul.f32 %v1787, %v305
        %v1790 = vmul.f32 %v1788, %v306
        %1793 = vrot.lane.b32.xlu0 %v1789, 1
        %v1794 = vpop.permute.xlu0 %1793
        %1795 = vrot.lane.b32.xlu0 %v1790, 1
        %v1796 = vpop.permute.xlu0 %1795
        %v1799 = vsel %vm317, 0.0, %v1794
        %v1800 = vsel %vm317, 0.0, %v1796
        %1801 = vrot.lane.b32.xlu0 %v1789, 127
        %v1802 = vpop.permute.xlu0 %1801
        %1803 = vrot.lane.b32.xlu0 %v1790, 127
        %v1804 = vpop.permute.xlu0 %1803
        %v1807 = vsel %vm326, %v1802, 0.0
        %v1808 = vsel %vm326, %v1804, 0.0
        %v1811 = vrot.slane %v1799, 7
        %v1812 = vrot.slane %v1800, 7
        %v1813 = vsel %vm331, %v1811, %v1812
        %v1816 = vsel %vm331, 0.0, %v1811
        %v1817 = vrot.slane %v1789, 7
        %v1818 = vrot.slane %v1790, 7
        %v1819 = vsel %vm331, %v1817, %v1818
        %v1822 = vsel %vm331, 0.0, %v1817
        %v1825 = vrot.slane %v1807, 7
        %v1826 = vrot.slane %v1808, 7
        %v1827 = vsel %vm331, %v1825, %v1826
        %v1830 = vsel %vm331, 0.0, %v1825
        %v1831 = vrot.slane %v1799, 1
        %v1832 = vrot.slane %v1800, 1
        %v1833 = vsel %vm352, %v1831, %v1832
        %v1836 = vsel %vm352, %v1832, 0.0
        %v1837 = vrot.slane %v1789, 1
        %v1838 = vrot.slane %v1790, 1
        %v1839 = vsel %vm352, %v1837, %v1838
        %v1842 = vsel %vm352, %v1838, 0.0
        %v1843 = vrot.slane %v1807, 1
        %v1844 = vrot.slane %v1808, 1
        %v1845 = vsel %vm352, %v1843, %v1844
        %v1848 = vsel %vm352, %v1844, 0.0
        %s1849 = sld [smem:[#allocation9 + $0xc]]
        %s1850 = sld [smem:[#allocation9 + $0x1c]]
        %s1851 = sld [smem:[#allocation9 + $0x2c]]
        %s1852 = sld [smem:[#allocation9 + $0x3c]]
        %s1853 = sld [smem:[#allocation9 + $0x4c]]
        %s1854 = sld [smem:[#allocation9 + $0x5c]]
        %s1855 = sld [smem:[#allocation9 + $0x6c]]
        %s1856 = sld [smem:[#allocation9 + $0x7c]]
        %s1857 = sld [smem:[#allocation9 + $0x8c]]
        %v1858 = vstv %s1849
        %v1859 = vmul.f32 %v1816, %v1858
        %v1860 = vmul.f32 %v1813, %v1858
        %v1861 = vadd.f32 %v1675, %v1859
        %v1862 = vadd.f32 %v1676, %v1860
        %v1863 = vstv %s1850
        %v1864 = vmul.f32 %v1822, %v1863
        %v1865 = vmul.f32 %v1819, %v1863
        %v1866 = vadd.f32 %v1861, %v1864
        %v1867 = vadd.f32 %v1862, %v1865
        %v1868 = vstv %s1851
        %v1869 = vmul.f32 %v1830, %v1868
        %v1870 = vmul.f32 %v1827, %v1868
        %v1871 = vadd.f32 %v1866, %v1869
        %v1872 = vadd.f32 %v1867, %v1870
        %v1873 = vstv %s1852
        %v1874 = vmul.f32 %v1799, %v1873
        %v1875 = vmul.f32 %v1800, %v1873
        %v1876 = vadd.f32 %v1871, %v1874
        %v1877 = vadd.f32 %v1872, %v1875
        %v1878 = vstv %s1853
        %v1879 = vmul.f32 %v1789, %v1878
        %v1880 = vmul.f32 %v1790, %v1878
        %v1881 = vadd.f32 %v1876, %v1879
        %v1882 = vadd.f32 %v1877, %v1880
        %v1883 = vstv %s1854
        %v1884 = vmul.f32 %v1807, %v1883
        %v1885 = vmul.f32 %v1808, %v1883
        %v1886 = vadd.f32 %v1881, %v1884
        %v1887 = vadd.f32 %v1882, %v1885
        %v1888 = vstv %s1855
        %v1889 = vmul.f32 %v1833, %v1888
        %v1890 = vmul.f32 %v1836, %v1888
        %v1891 = vadd.f32 %v1886, %v1889
        %v1892 = vadd.f32 %v1887, %v1890
        %v1893 = vstv %s1856
        %v1894 = vmul.f32 %v1839, %v1893
        %v1895 = vmul.f32 %v1842, %v1893
        %v1896 = vadd.f32 %v1891, %v1894
        %v1897 = vadd.f32 %v1892, %v1895
        %v1898 = vstv %s1857
        %v1899 = vmul.f32 %v1845, %v1898
        %v1900 = vmul.f32 %v1848, %v1898
        %v1901 = vadd.f32 %v1896, %v1899
        %v1902 = vadd.f32 %v1897, %v1900
        %s1903 = sld [smem:[#allocation9 + $0xd]]
        %s1904 = sld [smem:[#allocation9 + $0x1d]]
        %s1905 = sld [smem:[#allocation9 + $0x2d]]
        %s1906 = sld [smem:[#allocation9 + $0x3d]]
        %s1907 = sld [smem:[#allocation9 + $0x4d]]
        %s1908 = sld [smem:[#allocation9 + $0x5d]]
        %s1909 = sld [smem:[#allocation9 + $0x6d]]
        %s1910 = sld [smem:[#allocation9 + $0x7d]]
        %s1911 = sld [smem:[#allocation9 + $0x8d]]
        %v1912 = vstv %s1903
        %v1913 = vmul.f32 %v1816, %v1912
        %v1914 = vmul.f32 %v1813, %v1912
        %v1915 = vadd.f32 %v1729, %v1913
        %v1916 = vadd.f32 %v1730, %v1914
        %v1917 = vstv %s1904
        %v1918 = vmul.f32 %v1822, %v1917
        %v1919 = vmul.f32 %v1819, %v1917
        %v1920 = vadd.f32 %v1915, %v1918
        %v1921 = vadd.f32 %v1916, %v1919
        %v1922 = vstv %s1905
        %v1923 = vmul.f32 %v1830, %v1922
        %v1924 = vmul.f32 %v1827, %v1922
        %v1925 = vadd.f32 %v1920, %v1923
        %v1926 = vadd.f32 %v1921, %v1924
        %v1927 = vstv %s1906
        %v1928 = vmul.f32 %v1799, %v1927
        %v1929 = vmul.f32 %v1800, %v1927
        %v1930 = vadd.f32 %v1925, %v1928
        %v1931 = vadd.f32 %v1926, %v1929
        %v1932 = vstv %s1907
        %v1933 = vmul.f32 %v1789, %v1932
        %v1934 = vmul.f32 %v1790, %v1932
        %v1935 = vadd.f32 %v1930, %v1933
        %v1936 = vadd.f32 %v1931, %v1934
        %v1937 = vstv %s1908
        %v1938 = vmul.f32 %v1807, %v1937
        %v1939 = vmul.f32 %v1808, %v1937
        %v1940 = vadd.f32 %v1935, %v1938
        %v1941 = vadd.f32 %v1936, %v1939
        %v1942 = vstv %s1909
        %v1943 = vmul.f32 %v1833, %v1942
        %v1944 = vmul.f32 %v1836, %v1942
        %v1945 = vadd.f32 %v1940, %v1943
        %v1946 = vadd.f32 %v1941, %v1944
        %v1947 = vstv %s1910
        %v1948 = vmul.f32 %v1839, %v1947
        %v1949 = vmul.f32 %v1842, %v1947
        %v1950 = vadd.f32 %v1945, %v1948
        %v1951 = vadd.f32 %v1946, %v1949
        %v1952 = vstv %s1911
        %v1953 = vmul.f32 %v1845, %v1952
        %v1954 = vmul.f32 %v1848, %v1952
        %v1955 = vadd.f32 %v1950, %v1953
        %v1956 = vadd.f32 %v1951, %v1954
        %s1957 = sld [smem:[#allocation7 + $0x7]]
        %s1958 = sld [smem:[#allocation7 + $0xf]]
        %s1959 = sld [smem:[#allocation7 + $0x17]]
        %s1960 = sld [smem:[#allocation7 + $0x1f]]
        %s1961 = sld [smem:[#allocation7 + $0x27]]
        %s1962 = sld [smem:[#allocation7 + $0x2f]]
        %s1963 = sld [smem:[#allocation7 + $0x37]]
        %s1964 = sld [smem:[#allocation7 + $0x3f]]
        %s1965 = sld [smem:[#allocation7 + $0x47]]
        %s1966 = sld [smem:[#allocation8 + $0x7]]
        %v1967 = vstv %s1966
        %v1968 = vstv %s1957
        %v1969 = vmul.f32 %v337, %v1968
        %v1970 = vmul.f32 %v334, %v1968
        %v1971 = vadd.f32 %v1967, %v1969
        %v1972 = vadd.f32 %v1967, %v1970
        %v1973 = vstv %s1958
        %v1974 = vmul.f32 %v343, %v1973
        %v1975 = vmul.f32 %v340, %v1973
        %v1976 = vadd.f32 %v1971, %v1974
        %v1977 = vadd.f32 %v1972, %v1975
        %v1978 = vstv %s1959
        %v1979 = vmul.f32 %v351, %v1978
        %v1980 = vmul.f32 %v348, %v1978
        %v1981 = vadd.f32 %v1976, %v1979
        %v1982 = vadd.f32 %v1977, %v1980
        %v1983 = vstv %s1960
        %v1984 = vmul.f32 %v318, %v1983
        %v1985 = vmul.f32 %v319, %v1983
        %v1986 = vadd.f32 %v1981, %v1984
        %v1987 = vadd.f32 %v1982, %v1985
        %v1988 = vstv %s1961
        %v1989 = vmul.f32 %v307, %v1988
        %v1990 = vmul.f32 %v308, %v1988
        %v1991 = vadd.f32 %v1986, %v1989
        %v1992 = vadd.f32 %v1987, %v1990
        %v1993 = vstv %s1962
        %v1994 = vmul.f32 %v327, %v1993
        %v1995 = vmul.f32 %v328, %v1993
        %v1996 = vadd.f32 %v1991, %v1994
        %v1997 = vadd.f32 %v1992, %v1995
        %v1998 = vstv %s1963
        %v1999 = vmul.f32 %v355, %v1998
        %v2000 = vmul.f32 %v358, %v1998
        %v2001 = vadd.f32 %v1996, %v1999
        %v2002 = vadd.f32 %v1997, %v2000
        %v2003 = vstv %s1964
        %v2004 = vmul.f32 %v361, %v2003
        %v2005 = vmul.f32 %v364, %v2003
        %v2006 = vadd.f32 %v2001, %v2004
        %v2007 = vadd.f32 %v2002, %v2005
        %v2008 = vstv %s1965
        %v2009 = vmul.f32 %v367, %v2008
        %v2010 = vmul.f32 %v370, %v2008
        %v2011 = vadd.f32 %v2006, %v2009
        %v2012 = vadd.f32 %v2007, %v2010
        %v2013 = vmax.f32 %v2011, 0.0
        %v2014 = vmax.f32 %v2012, 0.0
        %v2015 = vmul.f32 %v2013, %v305
        %v2016 = vmul.f32 %v2014, %v306
        %2019 = vrot.lane.b32.xlu0 %v2015, 1
        %v2020 = vpop.permute.xlu0 %2019
        %2021 = vrot.lane.b32.xlu0 %v2016, 1
        %v2022 = vpop.permute.xlu0 %2021
        %v2025 = vsel %vm317, 0.0, %v2020
        %v2026 = vsel %vm317, 0.0, %v2022
        %2027 = vrot.lane.b32.xlu0 %v2015, 127
        %v2028 = vpop.permute.xlu0 %2027
        %2029 = vrot.lane.b32.xlu0 %v2016, 127
        %v2030 = vpop.permute.xlu0 %2029
        %v2033 = vsel %vm326, %v2028, 0.0
        %v2034 = vsel %vm326, %v2030, 0.0
        %v2037 = vrot.slane %v2025, 7
        %v2038 = vrot.slane %v2026, 7
        %v2039 = vsel %vm331, %v2037, %v2038
        %v2042 = vsel %vm331, 0.0, %v2037
        %v2043 = vrot.slane %v2015, 7
        %v2044 = vrot.slane %v2016, 7
        %v2045 = vsel %vm331, %v2043, %v2044
        %v2048 = vsel %vm331, 0.0, %v2043
        %v2051 = vrot.slane %v2033, 7
        %v2052 = vrot.slane %v2034, 7
        %v2053 = vsel %vm331, %v2051, %v2052
        %v2056 = vsel %vm331, 0.0, %v2051
        %v2057 = vrot.slane %v2025, 1
        %v2058 = vrot.slane %v2026, 1
        %v2059 = vsel %vm352, %v2057, %v2058
        %v2062 = vsel %vm352, %v2058, 0.0
        %v2063 = vrot.slane %v2015, 1
        %v2064 = vrot.slane %v2016, 1
        %v2065 = vsel %vm352, %v2063, %v2064
        %v2068 = vsel %vm352, %v2064, 0.0
        %v2069 = vrot.slane %v2033, 1
        %v2070 = vrot.slane %v2034, 1
        %v2071 = vsel %vm352, %v2069, %v2070
        %v2074 = vsel %vm352, %v2070, 0.0
        %s2075 = sld [smem:[#allocation9 + $0xe]]
        %s2076 = sld [smem:[#allocation9 + $0x1e]]
        %s2077 = sld [smem:[#allocation9 + $0x2e]]
        %s2078 = sld [smem:[#allocation9 + $0x3e]]
        %s2079 = sld [smem:[#allocation9 + $0x4e]]
        %s2080 = sld [smem:[#allocation9 + $0x5e]]
        %s2081 = sld [smem:[#allocation9 + $0x6e]]
        %s2082 = sld [smem:[#allocation9 + $0x7e]]
        %s2083 = sld [smem:[#allocation9 + $0x8e]]
        %v2084 = vstv %s2075
        %v2085 = vmul.f32 %v2042, %v2084
        %v2086 = vmul.f32 %v2039, %v2084
        %v2087 = vadd.f32 %v1901, %v2085
        %v2088 = vadd.f32 %v1902, %v2086
        %v2089 = vstv %s2076
        %v2090 = vmul.f32 %v2048, %v2089
        %v2091 = vmul.f32 %v2045, %v2089
        %v2092 = vadd.f32 %v2087, %v2090
        %v2093 = vadd.f32 %v2088, %v2091
        %v2094 = vstv %s2077
        %v2095 = vmul.f32 %v2056, %v2094
        %v2096 = vmul.f32 %v2053, %v2094
        %v2097 = vadd.f32 %v2092, %v2095
        %v2098 = vadd.f32 %v2093, %v2096
        %v2099 = vstv %s2078
        %v2100 = vmul.f32 %v2025, %v2099
        %v2101 = vmul.f32 %v2026, %v2099
        %v2102 = vadd.f32 %v2097, %v2100
        %v2103 = vadd.f32 %v2098, %v2101
        %v2104 = vstv %s2079
        %v2105 = vmul.f32 %v2015, %v2104
        %v2106 = vmul.f32 %v2016, %v2104
        %v2107 = vadd.f32 %v2102, %v2105
        %v2108 = vadd.f32 %v2103, %v2106
        %v2109 = vstv %s2080
        %v2110 = vmul.f32 %v2033, %v2109
        %v2111 = vmul.f32 %v2034, %v2109
        %v2112 = vadd.f32 %v2107, %v2110
        %v2113 = vadd.f32 %v2108, %v2111
        %v2114 = vstv %s2081
        %v2115 = vmul.f32 %v2059, %v2114
        %v2116 = vmul.f32 %v2062, %v2114
        %v2117 = vadd.f32 %v2112, %v2115
        %v2118 = vadd.f32 %v2113, %v2116
        %v2119 = vstv %s2082
        %v2120 = vmul.f32 %v2065, %v2119
        %v2121 = vmul.f32 %v2068, %v2119
        %v2122 = vadd.f32 %v2117, %v2120
        %v2123 = vadd.f32 %v2118, %v2121
        %v2124 = vstv %s2083
        %v2125 = vmul.f32 %v2071, %v2124
        %v2126 = vmul.f32 %v2074, %v2124
        %v2127 = vadd.f32 %v2122, %v2125
        %v2128 = vadd.f32 %v2123, %v2126
        %s2129 = sld [smem:[#allocation9 + $0xf]]
        %s2130 = sld [smem:[#allocation9 + $0x1f]]
        %s2131 = sld [smem:[#allocation9 + $0x2f]]
        %s2132 = sld [smem:[#allocation9 + $0x3f]]
        %s2133 = sld [smem:[#allocation9 + $0x4f]]
        %s2134 = sld [smem:[#allocation9 + $0x5f]]
        %s2135 = sld [smem:[#allocation9 + $0x6f]]
        %s2136 = sld [smem:[#allocation9 + $0x7f]]
        %s2137 = sld [smem:[#allocation9 + $0x8f]]
        %v2138 = vstv %s2129
        %v2139 = vmul.f32 %v2042, %v2138
        %v2140 = vmul.f32 %v2039, %v2138
        %v2141 = vadd.f32 %v1955, %v2139
        %v2142 = vadd.f32 %v1956, %v2140
        %v2143 = vstv %s2130
        %v2144 = vmul.f32 %v2048, %v2143
        %v2145 = vmul.f32 %v2045, %v2143
        %v2146 = vadd.f32 %v2141, %v2144
        %v2147 = vadd.f32 %v2142, %v2145
        %v2148 = vstv %s2131
        %v2149 = vmul.f32 %v2056, %v2148
        %v2150 = vmul.f32 %v2053, %v2148
        %v2151 = vadd.f32 %v2146, %v2149
        %v2152 = vadd.f32 %v2147, %v2150
        %v2153 = vstv %s2132
        %v2154 = vmul.f32 %v2025, %v2153
        %v2155 = vmul.f32 %v2026, %v2153
        %v2156 = vadd.f32 %v2151, %v2154
        %v2157 = vadd.f32 %v2152, %v2155
        %v2158 = vstv %s2133
        %v2159 = vmul.f32 %v2015, %v2158
        %v2160 = vmul.f32 %v2016, %v2158
        %v2161 = vadd.f32 %v2156, %v2159
        %v2162 = vadd.f32 %v2157, %v2160
        %v2163 = vstv %s2134
        %v2164 = vmul.f32 %v2033, %v2163
        %v2165 = vmul.f32 %v2034, %v2163
        %v2166 = vadd.f32 %v2161, %v2164
        %v2167 = vadd.f32 %v2162, %v2165
        %v2168 = vstv %s2135
        %v2169 = vmul.f32 %v2059, %v2168
        %v2170 = vmul.f32 %v2062, %v2168
        %v2171 = vadd.f32 %v2166, %v2169
        %v2172 = vadd.f32 %v2167, %v2170
        %v2173 = vstv %s2136
        %v2174 = vmul.f32 %v2065, %v2173
        %v2175 = vmul.f32 %v2068, %v2173
        %v2176 = vadd.f32 %v2171, %v2174
        %v2177 = vadd.f32 %v2172, %v2175
        %v2178 = vstv %s2137
        %v2179 = vmul.f32 %v2071, %v2178
        %v2180 = vmul.f32 %v2074, %v2178
        %v2181 = vadd.f32 %v2176, %v2179
        %v2182 = vadd.f32 %v2177, %v2180
        %v2183 = vtanh.pop %v2127
        %v2184 = vtanh.pop %v2128
        %2185 = vst [vmem:[%s292] sm:$0xff] %v2183
        %2186 = vst [vmem:[%s292 + $0x8] sm:$0xff] %v2184
        %v2187 = vtanh.pop %v2181
        %v2188 = vtanh.pop %v2182
        %s2189 = scalar_lea.vmem %s292, 16 [#allocation12]
        %2190 = vst [vmem:[%s2189] sm:$0xff] %v2187
        %2191 = vst [vmem:[%s2189 + $0x8] sm:$0xff] %v2188
        %s2192 = sand.u32 %s143, 1
        %s2193 = scalar_lea.sflag [#allocation4], %s2192
        %s2194 = sand.u32 %s143, 1
        %s2195 = smul.addr %s2194, 32
        %s2196 = scalar_lea.vmem [#allocation12], %s2195
        // Predicated region
        $region61: #{tpu_custom_call.1} parent=39 // pred_check
          %p2197 = pneg %p153
        $region62: #{tpu_custom_call.1} parent=39 // pred_check_branch
          %2199 = sbr.rel (%p2197) target = $region64
        $region63: #{tpu_custom_call.1} parent=39 // pred_region
          %s2201 = ssub.s32 512, 512
          %2202 = vsyncadd %s2193, %s2201
          %s2203 = smul.addr %s25, 4
          %s2204 = smul.addr %s2203, 128
          %s2205 = scalar_lea.hbm %s5, %s2204
          %s2206 = sshll.u32 %s2196, 4
          %s2207 = int_to_ptr.vmem [resolvable:$true] %s2206
          %2212 = dma.vmem_to_hbm [thread:$0]  %s2207, 512, %s2205, %s2193, 128, 128, 8
        $region64: #{tpu_custom_call.1} parent=39 // pred_fallthru
          _
      $region40: #{tpu_custom_call.1} parent=5 // pred_fallthru
        _
      %p2213 = scmp.le.s32.totalorder 2, %s20
      // Predicated region
      $region65: #{tpu_custom_call.1} parent=5 // pred_check
        %p2214 = pneg %p2213
      $region66: #{tpu_custom_call.1} parent=5 // pred_check_branch
        %2216 = sbr.rel (%p2214) target = $region68
      $region67: #{tpu_custom_call.1} parent=5 // pred_region
        %s2217 = ssub.s32 %s20, 2
        // Predicated region
        $region69: #{tpu_custom_call.1} parent=67 // pred_check
          %p2218 = pneg %p159
        $region70: #{tpu_custom_call.1} parent=67 // pred_check_branch
          %2220 = sbr.rel (%p2218) target = $region72
        $region71: #{tpu_custom_call.1} parent=67 // pred_region
          %s2221 = sand.u32 %s144, 1
          %s2222 = scalar_lea.sflag [#allocation4], %s2221
          %s2223 = sand.u32 %s144, 1
          %s2224 = smul.addr %s2223, 32
          %s2225 = scalar_lea.vmem [#allocation12], %s2224
          %2226 = dma.done %s2222, 512
        $region72: #{tpu_custom_call.1} parent=67 // pred_fallthru
          _
      $region68: #{tpu_custom_call.1} parent=5 // pred_fallthru
        _
    $region6: #{tpu_custom_call.1} parent=1 // loop_footer
      %s24 = sadd.s32 1, %s20
    $region7: #{tpu_custom_call.1} parent=1 // loop_footer_branch
      %19 = sbr.rel target = $region3
    $region8: #{tpu_custom_call.1} parent=1 // loop_exit
      _
    %2227 = vsyncpa [#allocation3], 1
    %s2228 = scalar_lea.sflag [#allocation3], 1
    %2229 = vsyncpa %s2228, 1
    %2230 = vsyncpa [#allocation4], 1
    %s2231 = scalar_lea.sflag [#allocation4], 1
    %2232 = vsyncpa %s2231, 1
    %2233 = vsyncpa [#allocation5], 1
    %s2234 = scalar_lea.sflag [#allocation5], 1
    %2235 = vsyncpa %s2234, 1
    %2236 = vsyncpa [#allocation6], 1
    %s2237 = scalar_lea.sflag [#allocation6], 1
    %2238 = vsyncpa %s2237, 1
    %2239 = vsyncpa [#allocation10], 1

</llo_original>
